<compile_context>
chip_gen: v6e
topology: v6e:2x2x1
jax: 0.10.0
libtpu: 0.0.40
codegen_flags: <defaults>
</compile_context>

<pallas_src>
import functools
import math

import jax
import jax.numpy as jnp
from jax.experimental import pallas as pl
from jax.experimental.pallas import tpu as pltpu


# ----------------------------- in-kernel helpers ---------------------------

def _layernorm_f32(x, g, b, eps=1e-6):
    """Annotated-Transformer LayerNorm: unbiased std, eps added to std."""
    D = x.shape[-1]
    mean = jnp.mean(x, axis=-1, keepdims=True)
    sumsq = jnp.sum(x * x, axis=-1, keepdims=True)
    var_unbiased = (sumsq - jnp.float32(D) * mean * mean) / jnp.float32(D - 1)
    std = jnp.sqrt(jnp.maximum(var_unbiased, 0.0))
    return g * (x - mean) / (std + jnp.float32(eps)) + b


def _mha_core(q, k, v, add_mask, wo_bf, H):
    """Multi-head attention + output projection, accumulated per head.

    q: (Tq, D) f32, already scaled by 1/sqrt(dk).  k, v: (Tk, D) f32.
    add_mask: (Tq, Tk) f32 additive mask (0 valid / -1e9 masked).
    wo_bf: (D, D) bf16 output-projection weight (bias added by caller).
    Returns (Tq, D) f32 = concat_h(softmax(q_h k_h^T + m) v_h) @ Wo.
    """
    Tq, D = q.shape
    dk = D // H
    qb = q.astype(jnp.bfloat16)
    kb = k.astype(jnp.bfloat16)
    vb = v.astype(jnp.bfloat16)
    out = jnp.zeros((Tq, D), jnp.float32)
    for h in range(H):                     # static unroll; H is small
        sl = slice(h * dk, (h + 1) * dk)
        # scores = q_h @ k_h^T  (contract the dk axis of both operands)
        s = jax.lax.dot_general(
            qb[:, sl], kb[:, sl], (((1,), (1,)), ((), ())),
            preferred_element_type=jnp.float32)
        s = s + add_mask
        s = s - jnp.max(s, axis=-1, keepdims=True)
        p = jnp.exp(s)
        p = p * pl.reciprocal(jnp.sum(p, axis=-1, keepdims=True), approx=True)
        ctx = jnp.dot(p.astype(jnp.bfloat16), vb[:, sl],
                      preferred_element_type=jnp.float32)
        # Fold the output projection per head: ctx_h @ Wo[h*dk:(h+1)*dk, :]
        out = out + jnp.dot(ctx.astype(jnp.bfloat16), wo_bf[sl, :],
                            preferred_element_type=jnp.float32)
    return out


# ----------------------------- Pallas kernels ------------------------------

def _self_attn_sublayer_kernel(x_ref, m_ref, g_ref, b_ref,
                               wqkv_ref, bqkv_ref, wo_ref, bo_ref, o_ref, *, H):
    x = x_ref[0]                                      # (T, D) f32
    T, D = x.shape
    dk = D // H
    nx = _layernorm_f32(x, g_ref[...], b_ref[...])
    qkv = jnp.dot(nx.astype(jnp.bfloat16), wqkv_ref[...],
                  preferred_element_type=jnp.float32) + bqkv_ref[...]
    scale = jnp.float32(1.0 / math.sqrt(dk))
    q = qkv[:, 0:D] * scale
    k = qkv[:, D:2 * D]
    v = qkv[:, 2 * D:3 * D]
    attn = _mha_core(q, k, v, m_ref[0], wo_ref[...], H)
    o_ref[0] = x + attn + bo_ref[...]                 # residual + out-proj bias


def _src_attn_sublayer_kernel(x_ref, mem_ref, m_ref, g_ref, b_ref,
                              wq_ref, bq_ref, wkv_ref, bkv_ref,
                              wo_ref, bo_ref, o_ref, *, H):
    x = x_ref[0]                                      # (T, D) f32
    mem = mem_ref[0]                                  # (S, D) f32 (NOT normed)
    T, D = x.shape
    dk = D // H
    nx = _layernorm_f32(x, g_ref[...], b_ref[...])
    q = (jnp.dot(nx.astype(jnp.bfloat16), wq_ref[...],
                 preferred_element_type=jnp.float32)
         + bq_ref[...]) * jnp.float32(1.0 / math.sqrt(dk))
    kv = jnp.dot(mem.astype(jnp.bfloat16), wkv_ref[...],
                 preferred_element_type=jnp.float32) + bkv_ref[...]
    k = kv[:, 0:D]
    v = kv[:, D:2 * D]
    attn = _mha_core(q, k, v, m_ref[0], wo_ref[...], H)
    o_ref[0] = x + attn + bo_ref[...]


def _ffn_sublayer_kernel(x_ref, g_ref, b_ref, w1_ref, b1_ref, w2_ref, b2_ref,
                         o_ref):
    x = x_ref[...]                                    # (tm, D) f32
    nx = _layernorm_f32(x, g_ref[...], b_ref[...])
    h = jnp.dot(nx.astype(jnp.bfloat16), w1_ref[...],
                preferred_element_type=jnp.float32) + b1_ref[...]
    h = jnp.maximum(h, 0.0)
    y = jnp.dot(h.astype(jnp.bfloat16), w2_ref[...],
                preferred_element_type=jnp.float32) + b2_ref[...]
    o_ref[...] = x + y                                # residual


# ----------------------------- wrappers -------------------------------------

def self_attn_sublayer(x, add_mask, fp, H):
    B, T, D = x.shape
    kernel = functools.partial(_self_attn_sublayer_kernel, H=H)
    return pl.pallas_call(
        kernel,
        out_shape=jax.ShapeDtypeStruct((B, T, D), jnp.float32),
        grid=(B,),
        in_specs=[
            pl.BlockSpec((1, T, D), lambda b: (b, 0, 0)),        # x
            pl.BlockSpec((1, T, T), lambda b: (b, 0, 0)),        # additive mask
            pl.BlockSpec((1, D), lambda b: (0, 0)),              # ln gamma
            pl.BlockSpec((1, D), lambda b: (0, 0)),              # ln beta
            pl.BlockSpec((D, 3 * D), lambda b: (0, 0)),          # Wqkv (bf16)
            pl.BlockSpec((1, 3 * D), lambda b: (0, 0)),          # bqkv
            pl.BlockSpec((D, D), lambda b: (0, 0)),              # Wo (bf16)
            pl.BlockSpec((1, D), lambda b: (0, 0)),              # bo
        ],
        out_specs=pl.BlockSpec((1, T, D), lambda b: (b, 0, 0)),
        compiler_params=pltpu.CompilerParams(
            dimension_semantics=("parallel",)),
    )(x, add_mask, fp["ln0_g"], fp["ln0_b"],
      fp["sa_wqkv"], fp["sa_bqkv"], fp["sa_wo"], fp["sa_bo"])


def src_attn_sublayer(x, memory, add_mask, fp, H):
    B, T, D = x.shape
    S = memory.shape[1]
    kernel = functools.partial(_src_attn_sublayer_kernel, H=H)
    return pl.pallas_call(
        kernel,
        out_shape=jax.ShapeDtypeStruct((B, T, D), jnp.float32),
        grid=(B,),
        in_specs=[
            pl.BlockSpec((1, T, D), lambda b: (b, 0, 0)),        # x
            pl.BlockSpec((1, S, D), lambda b: (b, 0, 0)),        # memory
            pl.BlockSpec((1, T, S), lambda b: (b, 0, 0)),        # additive mask
            pl.BlockSpec((1, D), lambda b: (0, 0)),              # ln gamma
            pl.BlockSpec((1, D), lambda b: (0, 0)),              # ln beta
            pl.BlockSpec((D, D), lambda b: (0, 0)),              # Wq (bf16)
            pl.BlockSpec((1, D), lambda b: (0, 0)),              # bq
            pl.BlockSpec((D, 2 * D), lambda b: (0, 0)),          # Wkv (bf16)
            pl.BlockSpec((1, 2 * D), lambda b: (0, 0)),          # bkv
            pl.BlockSpec((D, D), lambda b: (0, 0)),              # Wo (bf16)
            pl.BlockSpec((1, D), lambda b: (0, 0)),              # bo
        ],
        out_specs=pl.BlockSpec((1, T, D), lambda b: (b, 0, 0)),
        compiler_params=pltpu.CompilerParams(
            dimension_semantics=("parallel",)),
    )(x, memory, add_mask, fp["ln1_g"], fp["ln1_b"],
      fp["ca_wq"], fp["ca_bq"], fp["ca_wkv"], fp["ca_bkv"],
      fp["ca_wo"], fp["ca_bo"])


def ffn_sublayer(x, fp):
    B, T, D = x.shape
    M = B * T
    F = fp["ffn_w1"].shape[1]
    x2d = x.reshape(M, D)
    # Row-tile M; weights stay resident in VMEM (constant block index).
    # tm kept modest so the (tm,D)+(tm,F) activations + weights fit v7x's
    # 64 MiB VMEM even with double-buffering at production D / D_ff.
    tm = M if M <= 256 else 256
    out = pl.pallas_call(
        _ffn_sublayer_kernel,
        out_shape=jax.ShapeDtypeStruct((M, D), jnp.float32),
        grid=(pl.cdiv(M, tm),),
        in_specs=[
            pl.BlockSpec((tm, D), lambda i: (i, 0)),             # x rows
            pl.BlockSpec((1, D), lambda i: (0, 0)),              # ln gamma
            pl.BlockSpec((1, D), lambda i: (0, 0)),              # ln beta
            pl.BlockSpec((D, F), lambda i: (0, 0)),              # W1 (bf16)
            pl.BlockSpec((1, F), lambda i: (0, 0)),              # b1
            pl.BlockSpec((F, D), lambda i: (0, 0)),              # W2 (bf16)
            pl.BlockSpec((1, D), lambda i: (0, 0)),              # b2
        ],
        out_specs=pl.BlockSpec((tm, D), lambda i: (i, 0)),
        compiler_params=pltpu.CompilerParams(
            dimension_semantics=("parallel",)),
    )(x2d, fp["ln2_g"], fp["ln2_b"],
      fp["ffn_w1"], fp["ffn_b1"], fp["ffn_w2"], fp["ffn_b2"])
    return out.reshape(B, T, D)


def decoder_layer(x, memory, src_mask, tgt_mask, fp, H):
    """SublayerConnection: x + sublayer(norm(x)); dropout is identity."""
    # Precompute additive masks once (0 for valid, -1e9 for masked).
    add_tgt = (1.0 - tgt_mask.astype(jnp.float32)) * jnp.float32(-1e9)
    add_src = (1.0 - src_mask.astype(jnp.float32)) * jnp.float32(-1e9)
    x = self_attn_sublayer(x, add_tgt, fp, H)
    x = src_attn_sublayer(x, memory, add_src, fp, H)
    x = ffn_sublayer(x, fp)
    return x


decoder_layer_jit = jax.jit(decoder_layer, static_argnames=("H",))


# ----------------------------- param prep -----------------------------------

def prepare_params(params):
    """Fuse QKV / KV projections and cast matmul weights to bf16 (once)."""
    bf = jnp.bfloat16
    sa, ca = params["self_attn"], params["src_attn"]
    return {
        "ln0_g": params["ln0_g"].reshape(1, -1),
        "ln0_b": params["ln0_b"].reshape(1, -1),
        "ln1_g": params["ln1_g"].reshape(1, -1),
        "ln1_b": params["ln1_b"].reshape(1, -1),
        "ln2_g": params["ln2_g"].reshape(1, -1),
        "ln2_b": params["ln2_b"].reshape(1, -1),
        "sa_wqkv": jnp.concatenate([sa["wq"], sa["wk"], sa["wv"]], axis=1).astype(bf),
        "sa_bqkv": jnp.concatenate([sa["bq"], sa["bk"], sa["bv"]]).reshape(1, -1),
        "sa_wo": sa["wo"].astype(bf),
        "sa_bo": sa["bo"].reshape(1, -1),
        "ca_wq": ca["wq"].astype(bf),
        "ca_bq": ca["bq"].reshape(1, -1),
        "ca_wkv": jnp.concatenate([ca["wk"], ca["wv"]], axis=1).astype(bf),
        "ca_bkv": jnp.concatenate([ca["bk"], ca["bv"]]).reshape(1, -1),
        "ca_wo": ca["wo"].astype(bf),
        "ca_bo": ca["bo"].reshape(1, -1),
        "ffn_w1": params["ffn_w1"].astype(bf),
        "ffn_b1": params["ffn_b1"].reshape(1, -1),
        "ffn_w2": params["ffn_w2"].astype(bf),
        "ffn_b2": params["ffn_b2"].reshape(1, -1),
    }


def _attn_params(key, D):
    ks = jax.random.split(key, 4)
    return {
        "wq": 0.02 * jax.random.normal(ks[0], (D, D), jnp.float32),
        "bq": jnp.zeros((D,), jnp.float32),
        "wk": 0.02 * jax.random.normal(ks[1], (D, D), jnp.float32),
        "bk": jnp.zeros((D,), jnp.float32),
        "wv": 0.02 * jax.random.normal(ks[2], (D, D), jnp.float32),
        "bv": jnp.zeros((D,), jnp.float32),
        "wo": 0.02 * jax.random.normal(ks[3], (D, D), jnp.float32),
        "bo": jnp.zeros((D,), jnp.float32),
    }


# --------------------------------- main --------------------------------------

if __name__ == "__main__":
    B, T, S, D, H, DFF = 2, 8, 8, 32, 4, 64

    key = jax.random.PRNGKey(0)
    k_x, k_m, k_sa, k_ca, k_f1, k_f2 = jax.random.split(key, 6)

    params = {
        "ln0_g": jnp.ones((D,), jnp.float32), "ln0_b": jnp.zeros((D,), jnp.float32),
        "ln1_g": jnp.ones((D,), jnp.float32), "ln1_b": jnp.zeros((D,), jnp.float32),
        "ln2_g": jnp.ones((D,), jnp.float32), "ln2_b": jnp.zeros((D,), jnp.float32),
        "self_attn": _attn_params(k_sa, D),
        "src_attn": _attn_params(k_ca, D),
        "ffn_w1": 0.02 * jax.random.normal(k_f1, (D, DFF), jnp.float32),
        "ffn_b1": jnp.zeros((DFF,), jnp.float32),
        "ffn_w2": 0.02 * jax.random.normal(k_f2, (DFF, D), jnp.float32),
        "ffn_b2": jnp.zeros((D,), jnp.float32),
    }

    fp = prepare_params(params)

    x = jax.random.normal(k_x, (B, T, D), jnp.float32)
    memory = jax.random.normal(k_m, (B, S, D), jnp.float32)

    # tgt_mask: causal (subsequent) mask broadcast over batch; src_mask: ones.
    tgt_mask = jnp.broadcast_to(jnp.tril(jnp.ones((T, T), jnp.float32)), (B, T, T))
    src_mask = jnp.ones((B, T, S), jnp.float32)

    out = decoder_layer_jit(x, memory, src_mask, tgt_mask, fp, H)
    jax.block_until_ready(out)
    assert out.shape == (B, T, D)
    assert bool(jnp.all(jnp.isfinite(out)))
    print("KERNEL_OK")
</pallas_src>

<mosaic_0001>
module attributes {stable_mosaic.version = 11 : i64} {
  func.func @_self_attn_sublayer_kernel(%arg0: i32, %arg1: memref<1x8x32xf32, #tpu.memory_space<vmem>>, %arg2: memref<1x8x8xf32, #tpu.memory_space<vmem>>, %arg3: memref<1x32xf32, #tpu.memory_space<vmem>>, %arg4: memref<1x32xf32, #tpu.memory_space<vmem>>, %arg5: memref<32x96xbf16, #tpu.memory_space<vmem>>, %arg6: memref<1x96xf32, #tpu.memory_space<vmem>>, %arg7: memref<32x32xbf16, #tpu.memory_space<vmem>>, %arg8: memref<1x32xf32, #tpu.memory_space<vmem>>, %arg9: memref<1x8x32xf32, #tpu.memory_space<vmem>>) attributes {dimension_semantics = [#tpu.dimension_semantics<parallel>], iteration_bounds = array<i64: 2>, scalar_prefetch = 0 : i64, scratch_operands = 0 : i64, tpu.core_type = #tpu.core_type<tc>, window_params = [{transform_indices = @transform_0, window_bounds = array<i64: 1, 8, 32>}, {transform_indices = @transform_1, window_bounds = array<i64: 1, 8, 8>}, {pipeline_mode = #tpu.pipeline_mode<synchronous>, transform_indices = @transform_2, window_bounds = array<i64: 1, 32>}, {pipeline_mode = #tpu.pipeline_mode<synchronous>, transform_indices = @transform_3, window_bounds = array<i64: 1, 32>}, {pipeline_mode = #tpu.pipeline_mode<synchronous>, transform_indices = @transform_4, window_bounds = array<i64: 32, 96>}, {pipeline_mode = #tpu.pipeline_mode<synchronous>, transform_indices = @transform_5, window_bounds = array<i64: 1, 96>}, {pipeline_mode = #tpu.pipeline_mode<synchronous>, transform_indices = @transform_6, window_bounds = array<i64: 32, 32>}, {pipeline_mode = #tpu.pipeline_mode<synchronous>, transform_indices = @transform_7, window_bounds = array<i64: 1, 32>}, {transform_indices = @transform_8, window_bounds = array<i64: 1, 8, 32>}]} {
    %c0 = arith.constant 0 : index
    %c0_0 = arith.constant 0 : index
    %c0_1 = arith.constant 0 : index
    %0 = vector.load %arg1[%c0, %c0_0, %c0_1] : memref<1x8x32xf32, #tpu.memory_space<vmem>>, vector<1x8x32xf32>
    %1 = vector.shape_cast %0 : vector<1x8x32xf32> to vector<8x32xf32>
    %c0_2 = arith.constant 0 : index
    %c0_3 = arith.constant 0 : index
    %2 = vector.load %arg3[%c0_2, %c0_3] : memref<1x32xf32, #tpu.memory_space<vmem>>, vector<1x32xf32>
    %c0_4 = arith.constant 0 : index
    %c0_5 = arith.constant 0 : index
    %3 = vector.load %arg4[%c0_4, %c0_5] : memref<1x32xf32, #tpu.memory_space<vmem>>, vector<1x32xf32>
    %cst = arith.constant dense<0.000000e+00> : vector<8xf32>
    %4 = vector.multi_reduction <add>, %1, %cst [1] : vector<8x32xf32> to vector<8xf32>
    %5 = vector.shape_cast %4 : vector<8xf32> to vector<8x1xf32>
    %cst_6 = arith.constant 3.200000e+01 : f32
    %6 = vector.broadcast %cst_6 : f32 to vector<8x1xf32>
    %7 = arith.divf %5, %6 : vector<8x1xf32>
    %8 = arith.mulf %1, %1 : vector<8x32xf32>
    %cst_7 = arith.constant dense<0.000000e+00> : vector<8xf32>
    %9 = vector.multi_reduction <add>, %8, %cst_7 [1] : vector<8x32xf32> to vector<8xf32>
    %10 = vector.shape_cast %9 : vector<8xf32> to vector<8x1xf32>
    %cst_8 = arith.constant 3.200000e+01 : f32
    %11 = vector.broadcast %cst_8 : f32 to vector<8x1xf32>
    %12 = arith.mulf %11, %7 : vector<8x1xf32>
    %13 = arith.mulf %12, %7 : vector<8x1xf32>
    %14 = arith.subf %10, %13 : vector<8x1xf32>
    %cst_9 = arith.constant 3.100000e+01 : f32
    %15 = vector.broadcast %cst_9 : f32 to vector<8x1xf32>
    %16 = arith.divf %14, %15 : vector<8x1xf32>
    %cst_10 = arith.constant 0.000000e+00 : f32
    %17 = vector.broadcast %cst_10 : f32 to vector<8x1xf32>
    %18 = arith.maximumf %16, %17 : vector<8x1xf32>
    %19 = math.sqrt %18 : vector<8x1xf32>
    %20 = vector.broadcast %7 : vector<8x1xf32> to vector<8x32xf32>
    %21 = arith.subf %1, %20 : vector<8x32xf32>
    %22 = vector.broadcast %2 : vector<1x32xf32> to vector<8x32xf32>
    %23 = arith.mulf %22, %21 : vector<8x32xf32>
    %cst_11 = arith.constant 9.99999997E-7 : f32
    %24 = vector.broadcast %cst_11 : f32 to vector<8x1xf32>
    %25 = arith.addf %19, %24 : vector<8x1xf32>
    %26 = vector.broadcast %25 : vector<8x1xf32> to vector<8x32xf32>
    %27 = arith.divf %23, %26 : vector<8x32xf32>
    %28 = vector.broadcast %3 : vector<1x32xf32> to vector<8x32xf32>
    %29 = arith.addf %27, %28 : vector<8x32xf32>
    %30 = arith.truncf %29 : vector<8x32xf32> to vector<8x32xbf16>
    %c0_12 = arith.constant 0 : index
    %c0_13 = arith.constant 0 : index
    %31 = vector.load %arg5[%c0_12, %c0_13] : memref<32x96xbf16, #tpu.memory_space<vmem>>, vector<32x96xbf16>
    %cst_14 = arith.constant dense<0.000000e+00> : vector<8x96xf32>
    %32 = tpu.matmul %30, %31, %cst_14 {dimension_numbers = #tpu.dot_dimension_numbers<[1], [0], [0], [1], [0, 0, 1, 1], [], []>} : vector<8x32xbf16>, vector<32x96xbf16>, vector<8x96xf32> -> vector<8x96xf32>
    %c0_15 = arith.constant 0 : index
    %c0_16 = arith.constant 0 : index
    %33 = vector.load %arg6[%c0_15, %c0_16] : memref<1x96xf32, #tpu.memory_space<vmem>>, vector<1x96xf32>
    %34 = vector.broadcast %33 : vector<1x96xf32> to vector<8x96xf32>
    %35 = arith.addf %32, %34 : vector<8x96xf32>
    %36 = vector.extract_strided_slice %35 {offsets = [0, 0], sizes = [8, 32], strides = [1, 1]} : vector<8x96xf32> to vector<8x32xf32>
    %cst_17 = arith.constant 0.353553385 : f32
    %37 = vector.broadcast %cst_17 : f32 to vector<8x32xf32>
    %38 = arith.mulf %36, %37 : vector<8x32xf32>
    %39 = vector.extract_strided_slice %35 {offsets = [0, 32], sizes = [8, 32], strides = [1, 1]} : vector<8x96xf32> to vector<8x32xf32>
    %40 = vector.extract_strided_slice %35 {offsets = [0, 64], sizes = [8, 32], strides = [1, 1]} : vector<8x96xf32> to vector<8x32xf32>
    %c0_18 = arith.constant 0 : index
    %c0_19 = arith.constant 0 : index
    %c0_20 = arith.constant 0 : index
    %41 = vector.load %arg2[%c0_18, %c0_19, %c0_20] : memref<1x8x8xf32, #tpu.memory_space<vmem>>, vector<1x8x8xf32>
    %42 = vector.shape_cast %41 : vector<1x8x8xf32> to vector<8x8xf32>
    %c0_21 = arith.constant 0 : index
    %c0_22 = arith.constant 0 : index
    %43 = vector.load %arg7[%c0_21, %c0_22] : memref<32x32xbf16, #tpu.memory_space<vmem>>, vector<32x32xbf16>
    %44 = arith.truncf %38 : vector<8x32xf32> to vector<8x32xbf16>
    %45 = arith.truncf %39 : vector<8x32xf32> to vector<8x32xbf16>
    %46 = arith.truncf %40 : vector<8x32xf32> to vector<8x32xbf16>
    %cst_23 = arith.constant 0.000000e+00 : f32
    %47 = vector.broadcast %cst_23 : f32 to vector<8x32xf32>
    %48 = vector.extract_strided_slice %44 {offsets = [0, 0], sizes = [8, 8], strides = [1, 1]} : vector<8x32xbf16> to vector<8x8xbf16>
    %49 = vector.extract_strided_slice %45 {offsets = [0, 0], sizes = [8, 8], strides = [1, 1]} : vector<8x32xbf16> to vector<8x8xbf16>
    %cst_24 = arith.constant dense<0.000000e+00> : vector<8x8xf32>
    %50 = tpu.matmul %48, %49, %cst_24 {dimension_numbers = #tpu.dot_dimension_numbers<[1], [1], [0], [0], [0, 0, 1, 0], [], []>} : vector<8x8xbf16>, vector<8x8xbf16>, vector<8x8xf32> -> vector<8x8xf32>
    %51 = arith.addf %50, %42 : vector<8x8xf32>
    %cst_25 = arith.constant dense<0xFF800000> : vector<8xf32>
    %52 = vector.multi_reduction <maximumf>, %51, %cst_25 [1] : vector<8x8xf32> to vector<8xf32>
    %53 = vector.shape_cast %52 : vector<8xf32> to vector<8x1xf32>
    %54 = vector.broadcast %53 : vector<8x1xf32> to vector<8x8xf32>
    %55 = arith.subf %51, %54 : vector<8x8xf32>
    %56 = math.exp %55 : vector<8x8xf32>
    %cst_26 = arith.constant dense<0.000000e+00> : vector<8xf32>
    %57 = vector.multi_reduction <add>, %56, %cst_26 [1] : vector<8x8xf32> to vector<8xf32>
    %58 = vector.shape_cast %57 : vector<8xf32> to vector<8x1xf32>
    %59 = tpu.reciprocal %58 {approx = true} : vector<8x1xf32> -> vector<8x1xf32>
    %60 = vector.broadcast %59 : vector<8x1xf32> to vector<8x8xf32>
    %61 = arith.mulf %56, %60 : vector<8x8xf32>
    %62 = arith.truncf %61 : vector<8x8xf32> to vector<8x8xbf16>
    %63 = vector.extract_strided_slice %46 {offsets = [0, 0], sizes = [8, 8], strides = [1, 1]} : vector<8x32xbf16> to vector<8x8xbf16>
    %cst_27 = arith.constant dense<0.000000e+00> : vector<8x8xf32>
    %64 = tpu.matmul %62, %63, %cst_27 {dimension_numbers = #tpu.dot_dimension_numbers<[1], [0], [0], [1], [0, 0, 1, 1], [], []>} : vector<8x8xbf16>, vector<8x8xbf16>, vector<8x8xf32> -> vector<8x8xf32>
    %65 = arith.truncf %64 : vector<8x8xf32> to vector<8x8xbf16>
    %66 = vector.extract_strided_slice %43 {offsets = [0, 0], sizes = [8, 32], strides = [1, 1]} : vector<32x32xbf16> to vector<8x32xbf16>
    %cst_28 = arith.constant dense<0.000000e+00> : vector<8x32xf32>
    %67 = tpu.matmul %65, %66, %cst_28 {dimension_numbers = #tpu.dot_dimension_numbers<[1], [0], [0], [1], [0, 0, 1, 1], [], []>} : vector<8x8xbf16>, vector<8x32xbf16>, vector<8x32xf32> -> vector<8x32xf32>
    %68 = arith.addf %47, %67 : vector<8x32xf32>
    %69 = vector.extract_strided_slice %44 {offsets = [0, 8], sizes = [8, 8], strides = [1, 1]} : vector<8x32xbf16> to vector<8x8xbf16>
    %70 = vector.extract_strided_slice %45 {offsets = [0, 8], sizes = [8, 8], strides = [1, 1]} : vector<8x32xbf16> to vector<8x8xbf16>
    %cst_29 = arith.constant dense<0.000000e+00> : vector<8x8xf32>
    %71 = tpu.matmul %69, %70, %cst_29 {dimension_numbers = #tpu.dot_dimension_numbers<[1], [1], [0], [0], [0, 0, 1, 0], [], []>} : vector<8x8xbf16>, vector<8x8xbf16>, vector<8x8xf32> -> vector<8x8xf32>
    %72 = arith.addf %71, %42 : vector<8x8xf32>
    %cst_30 = arith.constant dense<0xFF800000> : vector<8xf32>
    %73 = vector.multi_reduction <maximumf>, %72, %cst_30 [1] : vector<8x8xf32> to vector<8xf32>
    %74 = vector.shape_cast %73 : vector<8xf32> to vector<8x1xf32>
    %75 = vector.broadcast %74 : vector<8x1xf32> to vector<8x8xf32>
    %76 = arith.subf %72, %75 : vector<8x8xf32>
    %77 = math.exp %76 : vector<8x8xf32>
    %cst_31 = arith.constant dense<0.000000e+00> : vector<8xf32>
    %78 = vector.multi_reduction <add>, %77, %cst_31 [1] : vector<8x8xf32> to vector<8xf32>
    %79 = vector.shape_cast %78 : vector<8xf32> to vector<8x1xf32>
    %80 = tpu.reciprocal %79 {approx = true} : vector<8x1xf32> -> vector<8x1xf32>
    %81 = vector.broadcast %80 : vector<8x1xf32> to vector<8x8xf32>
    %82 = arith.mulf %77, %81 : vector<8x8xf32>
    %83 = arith.truncf %82 : vector<8x8xf32> to vector<8x8xbf16>
    %84 = vector.extract_strided_slice %46 {offsets = [0, 8], sizes = [8, 8], strides = [1, 1]} : vector<8x32xbf16> to vector<8x8xbf16>
    %cst_32 = arith.constant dense<0.000000e+00> : vector<8x8xf32>
    %85 = tpu.matmul %83, %84, %cst_32 {dimension_numbers = #tpu.dot_dimension_numbers<[1], [0], [0], [1], [0, 0, 1, 1], [], []>} : vector<8x8xbf16>, vector<8x8xbf16>, vector<8x8xf32> -> vector<8x8xf32>
    %86 = arith.truncf %85 : vector<8x8xf32> to vector<8x8xbf16>
    %87 = vector.extract_strided_slice %43 {offsets = [8, 0], sizes = [8, 32], strides = [1, 1]} : vector<32x32xbf16> to vector<8x32xbf16>
    %cst_33 = arith.constant dense<0.000000e+00> : vector<8x32xf32>
    %88 = tpu.matmul %86, %87, %cst_33 {dimension_numbers = #tpu.dot_dimension_numbers<[1], [0], [0], [1], [0, 0, 1, 1], [], []>} : vector<8x8xbf16>, vector<8x32xbf16>, vector<8x32xf32> -> vector<8x32xf32>
    %89 = arith.addf %68, %88 : vector<8x32xf32>
    %90 = vector.extract_strided_slice %44 {offsets = [0, 16], sizes = [8, 8], strides = [1, 1]} : vector<8x32xbf16> to vector<8x8xbf16>
    %91 = vector.extract_strided_slice %45 {offsets = [0, 16], sizes = [8, 8], strides = [1, 1]} : vector<8x32xbf16> to vector<8x8xbf16>
    %cst_34 = arith.constant dense<0.000000e+00> : vector<8x8xf32>
    %92 = tpu.matmul %90, %91, %cst_34 {dimension_numbers = #tpu.dot_dimension_numbers<[1], [1], [0], [0], [0, 0, 1, 0], [], []>} : vector<8x8xbf16>, vector<8x8xbf16>, vector<8x8xf32> -> vector<8x8xf32>
    %93 = arith.addf %92, %42 : vector<8x8xf32>
    %cst_35 = arith.constant dense<0xFF800000> : vector<8xf32>
    %94 = vector.multi_reduction <maximumf>, %93, %cst_35 [1] : vector<8x8xf32> to vector<8xf32>
    %95 = vector.shape_cast %94 : vector<8xf32> to vector<8x1xf32>
    %96 = vector.broadcast %95 : vector<8x1xf32> to vector<8x8xf32>
    %97 = arith.subf %93, %96 : vector<8x8xf32>
    %98 = math.exp %97 : vector<8x8xf32>
    %cst_36 = arith.constant dense<0.000000e+00> : vector<8xf32>
    %99 = vector.multi_reduction <add>, %98, %cst_36 [1] : vector<8x8xf32> to vector<8xf32>
    %100 = vector.shape_cast %99 : vector<8xf32> to vector<8x1xf32>
    %101 = tpu.reciprocal %100 {approx = true} : vector<8x1xf32> -> vector<8x1xf32>
    %102 = vector.broadcast %101 : vector<8x1xf32> to vector<8x8xf32>
    %103 = arith.mulf %98, %102 : vector<8x8xf32>
    %104 = arith.truncf %103 : vector<8x8xf32> to vector<8x8xbf16>
    %105 = vector.extract_strided_slice %46 {offsets = [0, 16], sizes = [8, 8], strides = [1, 1]} : vector<8x32xbf16> to vector<8x8xbf16>
    %cst_37 = arith.constant dense<0.000000e+00> : vector<8x8xf32>
    %106 = tpu.matmul %104, %105, %cst_37 {dimension_numbers = #tpu.dot_dimension_numbers<[1], [0], [0], [1], [0, 0, 1, 1], [], []>} : vector<8x8xbf16>, vector<8x8xbf16>, vector<8x8xf32> -> vector<8x8xf32>
    %107 = arith.truncf %106 : vector<8x8xf32> to vector<8x8xbf16>
    %108 = vector.extract_strided_slice %43 {offsets = [16, 0], sizes = [8, 32], strides = [1, 1]} : vector<32x32xbf16> to vector<8x32xbf16>
    %cst_38 = arith.constant dense<0.000000e+00> : vector<8x32xf32>
    %109 = tpu.matmul %107, %108, %cst_38 {dimension_numbers = #tpu.dot_dimension_numbers<[1], [0], [0], [1], [0, 0, 1, 1], [], []>} : vector<8x8xbf16>, vector<8x32xbf16>, vector<8x32xf32> -> vector<8x32xf32>
    %110 = arith.addf %89, %109 : vector<8x32xf32>
    %111 = vector.extract_strided_slice %44 {offsets = [0, 24], sizes = [8, 8], strides = [1, 1]} : vector<8x32xbf16> to vector<8x8xbf16>
    %112 = vector.extract_strided_slice %45 {offsets = [0, 24], sizes = [8, 8], strides = [1, 1]} : vector<8x32xbf16> to vector<8x8xbf16>
    %cst_39 = arith.constant dense<0.000000e+00> : vector<8x8xf32>
    %113 = tpu.matmul %111, %112, %cst_39 {dimension_numbers = #tpu.dot_dimension_numbers<[1], [1], [0], [0], [0, 0, 1, 0], [], []>} : vector<8x8xbf16>, vector<8x8xbf16>, vector<8x8xf32> -> vector<8x8xf32>
    %114 = arith.addf %113, %42 : vector<8x8xf32>
    %cst_40 = arith.constant dense<0xFF800000> : vector<8xf32>
    %115 = vector.multi_reduction <maximumf>, %114, %cst_40 [1] : vector<8x8xf32> to vector<8xf32>
    %116 = vector.shape_cast %115 : vector<8xf32> to vector<8x1xf32>
    %117 = vector.broadcast %116 : vector<8x1xf32> to vector<8x8xf32>
    %118 = arith.subf %114, %117 : vector<8x8xf32>
    %119 = math.exp %118 : vector<8x8xf32>
    %cst_41 = arith.constant dense<0.000000e+00> : vector<8xf32>
    %120 = vector.multi_reduction <add>, %119, %cst_41 [1] : vector<8x8xf32> to vector<8xf32>
    %121 = vector.shape_cast %120 : vector<8xf32> to vector<8x1xf32>
    %122 = tpu.reciprocal %121 {approx = true} : vector<8x1xf32> -> vector<8x1xf32>
    %123 = vector.broadcast %122 : vector<8x1xf32> to vector<8x8xf32>
    %124 = arith.mulf %119, %123 : vector<8x8xf32>
    %125 = arith.truncf %124 : vector<8x8xf32> to vector<8x8xbf16>
    %126 = vector.extract_strided_slice %46 {offsets = [0, 24], sizes = [8, 8], strides = [1, 1]} : vector<8x32xbf16> to vector<8x8xbf16>
    %cst_42 = arith.constant dense<0.000000e+00> : vector<8x8xf32>
    %127 = tpu.matmul %125, %126, %cst_42 {dimension_numbers = #tpu.dot_dimension_numbers<[1], [0], [0], [1], [0, 0, 1, 1], [], []>} : vector<8x8xbf16>, vector<8x8xbf16>, vector<8x8xf32> -> vector<8x8xf32>
    %128 = arith.truncf %127 : vector<8x8xf32> to vector<8x8xbf16>
    %129 = vector.extract_strided_slice %43 {offsets = [24, 0], sizes = [8, 32], strides = [1, 1]} : vector<32x32xbf16> to vector<8x32xbf16>
    %cst_43 = arith.constant dense<0.000000e+00> : vector<8x32xf32>
    %130 = tpu.matmul %128, %129, %cst_43 {dimension_numbers = #tpu.dot_dimension_numbers<[1], [0], [0], [1], [0, 0, 1, 1], [], []>} : vector<8x8xbf16>, vector<8x32xbf16>, vector<8x32xf32> -> vector<8x32xf32>
    %131 = arith.addf %110, %130 : vector<8x32xf32>
    %132 = arith.addf %1, %131 : vector<8x32xf32>
    %c0_44 = arith.constant 0 : index
    %c0_45 = arith.constant 0 : index
    %133 = vector.load %arg8[%c0_44, %c0_45] : memref<1x32xf32, #tpu.memory_space<vmem>>, vector<1x32xf32>
    %134 = vector.broadcast %133 : vector<1x32xf32> to vector<8x32xf32>
    %135 = arith.addf %132, %134 : vector<8x32xf32>
    %c0_46 = arith.constant 0 : index
    %c0_47 = arith.constant 0 : index
    %c0_48 = arith.constant 0 : index
    %136 = vector.load %arg9[%c0_46, %c0_47, %c0_48] : memref<1x8x32xf32, #tpu.memory_space<vmem>>, vector<1x8x32xf32>
    %137 = vector.shape_cast %136 : vector<1x8x32xf32> to vector<8x32xf32>
    %138 = vector.shape_cast %135 : vector<8x32xf32> to vector<1x8x32xf32>
    tpu.vector_store %arg9[%c0_46, %c0_47, %c0_48], %138 {strides = array<i32>} : memref<1x8x32xf32, #tpu.memory_space<vmem>>, vector<1x8x32xf32>,
    return
  }
  func.func @transform_0(%arg0: i32) -> (i32, i32, i32) {
    %c0_i32 = arith.constant 0 : i32
    %c0_i32_0 = arith.constant 0 : i32
    %c0_i32_1 = arith.constant 0 : i32
    return %arg0, %c0_i32, %c0_i32_0 : i32, i32, i32
  }
  func.func @transform_1(%arg0: i32) -> (i32, i32, i32) {
    %c0_i32 = arith.constant 0 : i32
    %c0_i32_0 = arith.constant 0 : i32
    %c0_i32_1 = arith.constant 0 : i32
    return %arg0, %c0_i32, %c0_i32_0 : i32, i32, i32
  }
  func.func @transform_2(%arg0: i32) -> (i32, i32) {
    %c0_i32 = arith.constant 0 : i32
    %c0_i32_0 = arith.constant 0 : i32
    %c0_i32_1 = arith.constant 0 : i32
    return %c0_i32, %c0_i32_0 : i32, i32
  }
  func.func @transform_3(%arg0: i32) -> (i32, i32) {
    %c0_i32 = arith.constant 0 : i32
    %c0_i32_0 = arith.constant 0 : i32
    %c0_i32_1 = arith.constant 0 : i32
    return %c0_i32, %c0_i32_0 : i32, i32
  }
  func.func @transform_4(%arg0: i32) -> (i32, i32) {
    %c0_i32 = arith.constant 0 : i32
    %c0_i32_0 = arith.constant 0 : i32
    %c0_i32_1 = arith.constant 0 : i32
    return %c0_i32, %c0_i32_0 : i32, i32
  }
  func.func @transform_5(%arg0: i32) -> (i32, i32) {
    %c0_i32 = arith.constant 0 : i32
    %c0_i32_0 = arith.constant 0 : i32
    %c0_i32_1 = arith.constant 0 : i32
    return %c0_i32, %c0_i32_0 : i32, i32
  }
  func.func @transform_6(%arg0: i32) -> (i32, i32) {
    %c0_i32 = arith.constant 0 : i32
    %c0_i32_0 = arith.constant 0 : i32
    %c0_i32_1 = arith.constant 0 : i32
    return %c0_i32, %c0_i32_0 : i32, i32
  }
  func.func @transform_7(%arg0: i32) -> (i32, i32) {
    %c0_i32 = arith.constant 0 : i32
    %c0_i32_0 = arith.constant 0 : i32
    %c0_i32_1 = arith.constant 0 : i32
    return %c0_i32, %c0_i32_0 : i32, i32
  }
  func.func @transform_8(%arg0: i32) -> (i32, i32, i32) {
    %c0_i32 = arith.constant 0 : i32
    %c0_i32_0 = arith.constant 0 : i32
    %c0_i32_1 = arith.constant 0 : i32
    return %arg0, %c0_i32, %c0_i32_0 : i32, i32, i32
  }
}

module attributes {stable_mosaic.version = 11 : i64} {
  func.func @_src_attn_sublayer_kernel(%arg0: i32, %arg1: memref<1x8x32xf32, #tpu.memory_space<vmem>>, %arg2: memref<1x8x32xf32, #tpu.memory_space<vmem>>, %arg3: memref<1x8x8xf32, #tpu.memory_space<vmem>>, %arg4: memref<1x32xf32, #tpu.memory_space<vmem>>, %arg5: memref<1x32xf32, #tpu.memory_space<vmem>>, %arg6: memref<32x32xbf16, #tpu.memory_space<vmem>>, %arg7: memref<1x32xf32, #tpu.memory_space<vmem>>, %arg8: memref<32x64xbf16, #tpu.memory_space<vmem>>, %arg9: memref<1x64xf32, #tpu.memory_space<vmem>>, %arg10: memref<32x32xbf16, #tpu.memory_space<vmem>>, %arg11: memref<1x32xf32, #tpu.memory_space<vmem>>, %arg12: memref<1x8x32xf32, #tpu.memory_space<vmem>>) attributes {dimension_semantics = [#tpu.dimension_semantics<parallel>], iteration_bounds = array<i64: 2>, scalar_prefetch = 0 : i64, scratch_operands = 0 : i64, tpu.core_type = #tpu.core_type<tc>, window_params = [{transform_indices = @transform_0, window_bounds = array<i64: 1, 8, 32>}, {transform_indices = @transform_1, window_bounds = array<i64: 1, 8, 32>}, {transform_indices = @transform_2, window_bounds = array<i64: 1, 8, 8>}, {pipeline_mode = #tpu.pipeline_mode<synchronous>, transform_indices = @transform_3, window_bounds = array<i64: 1, 32>}, {pipeline_mode = #tpu.pipeline_mode<synchronous>, transform_indices = @transform_4, window_bounds = array<i64: 1, 32>}, {pipeline_mode = #tpu.pipeline_mode<synchronous>, transform_indices = @transform_5, window_bounds = array<i64: 32, 32>}, {pipeline_mode = #tpu.pipeline_mode<synchronous>, transform_indices = @transform_6, window_bounds = array<i64: 1, 32>}, {pipeline_mode = #tpu.pipeline_mode<synchronous>, transform_indices = @transform_7, window_bounds = array<i64: 32, 64>}, {pipeline_mode = #tpu.pipeline_mode<synchronous>, transform_indices = @transform_8, window_bounds = array<i64: 1, 64>}, {pipeline_mode = #tpu.pipeline_mode<synchronous>, transform_indices = @transform_9, window_bounds = array<i64: 32, 32>}, {pipeline_mode = #tpu.pipeline_mode<synchronous>, transform_indices = @transform_10, window_bounds = array<i64: 1, 32>}, {transform_indices = @transform_11, window_bounds = array<i64: 1, 8, 32>}]} {
    %c0 = arith.constant 0 : index
    %c0_0 = arith.constant 0 : index
    %c0_1 = arith.constant 0 : index
    %0 = vector.load %arg1[%c0, %c0_0, %c0_1] : memref<1x8x32xf32, #tpu.memory_space<vmem>>, vector<1x8x32xf32>
    %1 = vector.shape_cast %0 : vector<1x8x32xf32> to vector<8x32xf32>
    %c0_2 = arith.constant 0 : index
    %c0_3 = arith.constant 0 : index
    %c0_4 = arith.constant 0 : index
    %2 = vector.load %arg2[%c0_2, %c0_3, %c0_4] : memref<1x8x32xf32, #tpu.memory_space<vmem>>, vector<1x8x32xf32>
    %3 = vector.shape_cast %2 : vector<1x8x32xf32> to vector<8x32xf32>
    %c0_5 = arith.constant 0 : index
    %c0_6 = arith.constant 0 : index
    %4 = vector.load %arg4[%c0_5, %c0_6] : memref<1x32xf32, #tpu.memory_space<vmem>>, vector<1x32xf32>
    %c0_7 = arith.constant 0 : index
    %c0_8 = arith.constant 0 : index
    %5 = vector.load %arg5[%c0_7, %c0_8] : memref<1x32xf32, #tpu.memory_space<vmem>>, vector<1x32xf32>
    %cst = arith.constant dense<0.000000e+00> : vector<8xf32>
    %6 = vector.multi_reduction <add>, %1, %cst [1] : vector<8x32xf32> to vector<8xf32>
    %7 = vector.shape_cast %6 : vector<8xf32> to vector<8x1xf32>
    %cst_9 = arith.constant 3.200000e+01 : f32
    %8 = vector.broadcast %cst_9 : f32 to vector<8x1xf32>
    %9 = arith.divf %7, %8 : vector<8x1xf32>
    %10 = arith.mulf %1, %1 : vector<8x32xf32>
    %cst_10 = arith.constant dense<0.000000e+00> : vector<8xf32>
    %11 = vector.multi_reduction <add>, %10, %cst_10 [1] : vector<8x32xf32> to vector<8xf32>
    %12 = vector.shape_cast %11 : vector<8xf32> to vector<8x1xf32>
    %cst_11 = arith.constant 3.200000e+01 : f32
    %13 = vector.broadcast %cst_11 : f32 to vector<8x1xf32>
    %14 = arith.mulf %13, %9 : vector<8x1xf32>
    %15 = arith.mulf %14, %9 : vector<8x1xf32>
    %16 = arith.subf %12, %15 : vector<8x1xf32>
    %cst_12 = arith.constant 3.100000e+01 : f32
    %17 = vector.broadcast %cst_12 : f32 to vector<8x1xf32>
    %18 = arith.divf %16, %17 : vector<8x1xf32>
    %cst_13 = arith.constant 0.000000e+00 : f32
    %19 = vector.broadcast %cst_13 : f32 to vector<8x1xf32>
    %20 = arith.maximumf %18, %19 : vector<8x1xf32>
    %21 = math.sqrt %20 : vector<8x1xf32>
    %22 = vector.broadcast %9 : vector<8x1xf32> to vector<8x32xf32>
    %23 = arith.subf %1, %22 : vector<8x32xf32>
    %24 = vector.broadcast %4 : vector<1x32xf32> to vector<8x32xf32>
    %25 = arith.mulf %24, %23 : vector<8x32xf32>
    %cst_14 = arith.constant 9.99999997E-7 : f32
    %26 = vector.broadcast %cst_14 : f32 to vector<8x1xf32>
    %27 = arith.addf %21, %26 : vector<8x1xf32>
    %28 = vector.broadcast %27 : vector<8x1xf32> to vector<8x32xf32>
    %29 = arith.divf %25, %28 : vector<8x32xf32>
    %30 = vector.broadcast %5 : vector<1x32xf32> to vector<8x32xf32>
    %31 = arith.addf %29, %30 : vector<8x32xf32>
    %32 = arith.truncf %31 : vector<8x32xf32> to vector<8x32xbf16>
    %c0_15 = arith.constant 0 : index
    %c0_16 = arith.constant 0 : index
    %33 = vector.load %arg6[%c0_15, %c0_16] : memref<32x32xbf16, #tpu.memory_space<vmem>>, vector<32x32xbf16>
    %cst_17 = arith.constant dense<0.000000e+00> : vector<8x32xf32>
    %34 = tpu.matmul %32, %33, %cst_17 {dimension_numbers = #tpu.dot_dimension_numbers<[1], [0], [0], [1], [0, 0, 1, 1], [], []>} : vector<8x32xbf16>, vector<32x32xbf16>, vector<8x32xf32> -> vector<8x32xf32>
    %c0_18 = arith.constant 0 : index
    %c0_19 = arith.constant 0 : index
    %35 = vector.load %arg7[%c0_18, %c0_19] : memref<1x32xf32, #tpu.memory_space<vmem>>, vector<1x32xf32>
    %36 = vector.broadcast %35 : vector<1x32xf32> to vector<8x32xf32>
    %37 = arith.addf %34, %36 : vector<8x32xf32>
    %cst_20 = arith.constant 0.353553385 : f32
    %38 = vector.broadcast %cst_20 : f32 to vector<8x32xf32>
    %39 = arith.mulf %37, %38 : vector<8x32xf32>
    %40 = arith.truncf %3 : vector<8x32xf32> to vector<8x32xbf16>
    %c0_21 = arith.constant 0 : index
    %c0_22 = arith.constant 0 : index
    %41 = vector.load %arg8[%c0_21, %c0_22] : memref<32x64xbf16, #tpu.memory_space<vmem>>, vector<32x64xbf16>
    %cst_23 = arith.constant dense<0.000000e+00> : vector<8x64xf32>
    %42 = tpu.matmul %40, %41, %cst_23 {dimension_numbers = #tpu.dot_dimension_numbers<[1], [0], [0], [1], [0, 0, 1, 1], [], []>} : vector<8x32xbf16>, vector<32x64xbf16>, vector<8x64xf32> -> vector<8x64xf32>
    %c0_24 = arith.constant 0 : index
    %c0_25 = arith.constant 0 : index
    %43 = vector.load %arg9[%c0_24, %c0_25] : memref<1x64xf32, #tpu.memory_space<vmem>>, vector<1x64xf32>
    %44 = vector.broadcast %43 : vector<1x64xf32> to vector<8x64xf32>
    %45 = arith.addf %42, %44 : vector<8x64xf32>
    %46 = vector.extract_strided_slice %45 {offsets = [0, 0], sizes = [8, 32], strides = [1, 1]} : vector<8x64xf32> to vector<8x32xf32>
    %47 = vector.extract_strided_slice %45 {offsets = [0, 32], sizes = [8, 32], strides = [1, 1]} : vector<8x64xf32> to vector<8x32xf32>
    %c0_26 = arith.constant 0 : index
    %c0_27 = arith.constant 0 : index
    %c0_28 = arith.constant 0 : index
    %48 = vector.load %arg3[%c0_26, %c0_27, %c0_28] : memref<1x8x8xf32, #tpu.memory_space<vmem>>, vector<1x8x8xf32>
    %49 = vector.shape_cast %48 : vector<1x8x8xf32> to vector<8x8xf32>
    %c0_29 = arith.constant 0 : index
    %c0_30 = arith.constant 0 : index
    %50 = vector.load %arg10[%c0_29, %c0_30] : memref<32x32xbf16, #tpu.memory_space<vmem>>, vector<32x32xbf16>
    %51 = arith.truncf %39 : vector<8x32xf32> to vector<8x32xbf16>
    %52 = arith.truncf %46 : vector<8x32xf32> to vector<8x32xbf16>
    %53 = arith.truncf %47 : vector<8x32xf32> to vector<8x32xbf16>
    %cst_31 = arith.constant 0.000000e+00 : f32
    %54 = vector.broadcast %cst_31 : f32 to vector<8x32xf32>
    %55 = vector.extract_strided_slice %51 {offsets = [0, 0], sizes = [8, 8], strides = [1, 1]} : vector<8x32xbf16> to vector<8x8xbf16>
    %56 = vector.extract_strided_slice %52 {offsets = [0, 0], sizes = [8, 8], strides = [1, 1]} : vector<8x32xbf16> to vector<8x8xbf16>
    %cst_32 = arith.constant dense<0.000000e+00> : vector<8x8xf32>
    %57 = tpu.matmul %55, %56, %cst_32 {dimension_numbers = #tpu.dot_dimension_numbers<[1], [1], [0], [0], [0, 0, 1, 0], [], []>} : vector<8x8xbf16>, vector<8x8xbf16>, vector<8x8xf32> -> vector<8x8xf32>
    %58 = arith.addf %57, %49 : vector<8x8xf32>
    %cst_33 = arith.constant dense<0xFF800000> : vector<8xf32>
    %59 = vector.multi_reduction <maximumf>, %58, %cst_33 [1] : vector<8x8xf32> to vector<8xf32>
    %60 = vector.shape_cast %59 : vector<8xf32> to vector<8x1xf32>
    %61 = vector.broadcast %60 : vector<8x1xf32> to vector<8x8xf32>
    %62 = arith.subf %58, %61 : vector<8x8xf32>
    %63 = math.exp %62 : vector<8x8xf32>
    %cst_34 = arith.constant dense<0.000000e+00> : vector<8xf32>
    %64 = vector.multi_reduction <add>, %63, %cst_34 [1] : vector<8x8xf32> to vector<8xf32>
    %65 = vector.shape_cast %64 : vector<8xf32> to vector<8x1xf32>
    %66 = tpu.reciprocal %65 {approx = true} : vector<8x1xf32> -> vector<8x1xf32>
    %67 = vector.broadcast %66 : vector<8x1xf32> to vector<8x8xf32>
    %68 = arith.mulf %63, %67 : vector<8x8xf32>
    %69 = arith.truncf %68 : vector<8x8xf32> to vector<8x8xbf16>
    %70 = vector.extract_strided_slice %53 {offsets = [0, 0], sizes = [8, 8], strides = [1, 1]} : vector<8x32xbf16> to vector<8x8xbf16>
    %cst_35 = arith.constant dense<0.000000e+00> : vector<8x8xf32>
    %71 = tpu.matmul %69, %70, %cst_35 {dimension_numbers = #tpu.dot_dimension_numbers<[1], [0], [0], [1], [0, 0, 1, 1], [], []>} : vector<8x8xbf16>, vector<8x8xbf16>, vector<8x8xf32> -> vector<8x8xf32>
    %72 = arith.truncf %71 : vector<8x8xf32> to vector<8x8xbf16>
    %73 = vector.extract_strided_slice %50 {offsets = [0, 0], sizes = [8, 32], strides = [1, 1]} : vector<32x32xbf16> to vector<8x32xbf16>
    %cst_36 = arith.constant dense<0.000000e+00> : vector<8x32xf32>
    %74 = tpu.matmul %72, %73, %cst_36 {dimension_numbers = #tpu.dot_dimension_numbers<[1], [0], [0], [1], [0, 0, 1, 1], [], []>} : vector<8x8xbf16>, vector<8x32xbf16>, vector<8x32xf32> -> vector<8x32xf32>
    %75 = arith.addf %54, %74 : vector<8x32xf32>
    %76 = vector.extract_strided_slice %51 {offsets = [0, 8], sizes = [8, 8], strides = [1, 1]} : vector<8x32xbf16> to vector<8x8xbf16>
    %77 = vector.extract_strided_slice %52 {offsets = [0, 8], sizes = [8, 8], strides = [1, 1]} : vector<8x32xbf16> to vector<8x8xbf16>
    %cst_37 = arith.constant dense<0.000000e+00> : vector<8x8xf32>
    %78 = tpu.matmul %76, %77, %cst_37 {dimension_numbers = #tpu.dot_dimension_numbers<[1], [1], [0], [0], [0, 0, 1, 0], [], []>} : vector<8x8xbf16>, vector<8x8xbf16>, vector<8x8xf32> -> vector<8x8xf32>
    %79 = arith.addf %78, %49 : vector<8x8xf32>
    %cst_38 = arith.constant dense<0xFF800000> : vector<8xf32>
    %80 = vector.multi_reduction <maximumf>, %79, %cst_38 [1] : vector<8x8xf32> to vector<8xf32>
    %81 = vector.shape_cast %80 : vector<8xf32> to vector<8x1xf32>
    %82 = vector.broadcast %81 : vector<8x1xf32> to vector<8x8xf32>
    %83 = arith.subf %79, %82 : vector<8x8xf32>
    %84 = math.exp %83 : vector<8x8xf32>
    %cst_39 = arith.constant dense<0.000000e+00> : vector<8xf32>
    %85 = vector.multi_reduction <add>, %84, %cst_39 [1] : vector<8x8xf32> to vector<8xf32>
    %86 = vector.shape_cast %85 : vector<8xf32> to vector<8x1xf32>
    %87 = tpu.reciprocal %86 {approx = true} : vector<8x1xf32> -> vector<8x1xf32>
    %88 = vector.broadcast %87 : vector<8x1xf32> to vector<8x8xf32>
    %89 = arith.mulf %84, %88 : vector<8x8xf32>
    %90 = arith.truncf %89 : vector<8x8xf32> to vector<8x8xbf16>
    %91 = vector.extract_strided_slice %53 {offsets = [0, 8], sizes = [8, 8], strides = [1, 1]} : vector<8x32xbf16> to vector<8x8xbf16>
    %cst_40 = arith.constant dense<0.000000e+00> : vector<8x8xf32>
    %92 = tpu.matmul %90, %91, %cst_40 {dimension_numbers = #tpu.dot_dimension_numbers<[1], [0], [0], [1], [0, 0, 1, 1], [], []>} : vector<8x8xbf16>, vector<8x8xbf16>, vector<8x8xf32> -> vector<8x8xf32>
    %93 = arith.truncf %92 : vector<8x8xf32> to vector<8x8xbf16>
    %94 = vector.extract_strided_slice %50 {offsets = [8, 0], sizes = [8, 32], strides = [1, 1]} : vector<32x32xbf16> to vector<8x32xbf16>
    %cst_41 = arith.constant dense<0.000000e+00> : vector<8x32xf32>
    %95 = tpu.matmul %93, %94, %cst_41 {dimension_numbers = #tpu.dot_dimension_numbers<[1], [0], [0], [1], [0, 0, 1, 1], [], []>} : vector<8x8xbf16>, vector<8x32xbf16>, vector<8x32xf32> -> vector<8x32xf32>
    %96 = arith.addf %75, %95 : vector<8x32xf32>
    %97 = vector.extract_strided_slice %51 {offsets = [0, 16], sizes = [8, 8], strides = [1, 1]} : vector<8x32xbf16> to vector<8x8xbf16>
    %98 = vector.extract_strided_slice %52 {offsets = [0, 16], sizes = [8, 8], strides = [1, 1]} : vector<8x32xbf16> to vector<8x8xbf16>
    %cst_42 = arith.constant dense<0.000000e+00> : vector<8x8xf32>
    %99 = tpu.matmul %97, %98, %cst_42 {dimension_numbers = #tpu.dot_dimension_numbers<[1], [1], [0], [0], [0, 0, 1, 0], [], []>} : vector<8x8xbf16>, vector<8x8xbf16>, vector<8x8xf32> -> vector<8x8xf32>
    %100 = arith.addf %99, %49 : vector<8x8xf32>
    %cst_43 = arith.constant dense<0xFF800000> : vector<8xf32>
    %101 = vector.multi_reduction <maximumf>, %100, %cst_43 [1] : vector<8x8xf32> to vector<8xf32>
    %102 = vector.shape_cast %101 : vector<8xf32> to vector<8x1xf32>
    %103 = vector.broadcast %102 : vector<8x1xf32> to vector<8x8xf32>
    %104 = arith.subf %100, %103 : vector<8x8xf32>
    %105 = math.exp %104 : vector<8x8xf32>
    %cst_44 = arith.constant dense<0.000000e+00> : vector<8xf32>
    %106 = vector.multi_reduction <add>, %105, %cst_44 [1] : vector<8x8xf32> to vector<8xf32>
    %107 = vector.shape_cast %106 : vector<8xf32> to vector<8x1xf32>
    %108 = tpu.reciprocal %107 {approx = true} : vector<8x1xf32> -> vector<8x1xf32>
    %109 = vector.broadcast %108 : vector<8x1xf32> to vector<8x8xf32>
    %110 = arith.mulf %105, %109 : vector<8x8xf32>
    %111 = arith.truncf %110 : vector<8x8xf32> to vector<8x8xbf16>
    %112 = vector.extract_strided_slice %53 {offsets = [0, 16], sizes = [8, 8], strides = [1, 1]} : vector<8x32xbf16> to vector<8x8xbf16>
    %cst_45 = arith.constant dense<0.000000e+00> : vector<8x8xf32>
    %113 = tpu.matmul %111, %112, %cst_45 {dimension_numbers = #tpu.dot_dimension_numbers<[1], [0], [0], [1], [0, 0, 1, 1], [], []>} : vector<8x8xbf16>, vector<8x8xbf16>, vector<8x8xf32> -> vector<8x8xf32>
    %114 = arith.truncf %113 : vector<8x8xf32> to vector<8x8xbf16>
    %115 = vector.extract_strided_slice %50 {offsets = [16, 0], sizes = [8, 32], strides = [1, 1]} : vector<32x32xbf16> to vector<8x32xbf16>
    %cst_46 = arith.constant dense<0.000000e+00> : vector<8x32xf32>
    %116 = tpu.matmul %114, %115, %cst_46 {dimension_numbers = #tpu.dot_dimension_numbers<[1], [0], [0], [1], [0, 0, 1, 1], [], []>} : vector<8x8xbf16>, vector<8x32xbf16>, vector<8x32xf32> -> vector<8x32xf32>
    %117 = arith.addf %96, %116 : vector<8x32xf32>
    %118 = vector.extract_strided_slice %51 {offsets = [0, 24], sizes = [8, 8], strides = [1, 1]} : vector<8x32xbf16> to vector<8x8xbf16>
    %119 = vector.extract_strided_slice %52 {offsets = [0, 24], sizes = [8, 8], strides = [1, 1]} : vector<8x32xbf16> to vector<8x8xbf16>
    %cst_47 = arith.constant dense<0.000000e+00> : vector<8x8xf32>
    %120 = tpu.matmul %118, %119, %cst_47 {dimension_numbers = #tpu.dot_dimension_numbers<[1], [1], [0], [0], [0, 0, 1, 0], [], []>} : vector<8x8xbf16>, vector<8x8xbf16>, vector<8x8xf32> -> vector<8x8xf32>
    %121 = arith.addf %120, %49 : vector<8x8xf32>
    %cst_48 = arith.constant dense<0xFF800000> : vector<8xf32>
    %122 = vector.multi_reduction <maximumf>, %121, %cst_48 [1] : vector<8x8xf32> to vector<8xf32>
    %123 = vector.shape_cast %122 : vector<8xf32> to vector<8x1xf32>
    %124 = vector.broadcast %123 : vector<8x1xf32> to vector<8x8xf32>
    %125 = arith.subf %121, %124 : vector<8x8xf32>
    %126 = math.exp %125 : vector<8x8xf32>
    %cst_49 = arith.constant dense<0.000000e+00> : vector<8xf32>
    %127 = vector.multi_reduction <add>, %126, %cst_49 [1] : vector<8x8xf32> to vector<8xf32>
    %128 = vector.shape_cast %127 : vector<8xf32> to vector<8x1xf32>
    %129 = tpu.reciprocal %128 {approx = true} : vector<8x1xf32> -> vector<8x1xf32>
    %130 = vector.broadcast %129 : vector<8x1xf32> to vector<8x8xf32>
    %131 = arith.mulf %126, %130 : vector<8x8xf32>
    %132 = arith.truncf %131 : vector<8x8xf32> to vector<8x8xbf16>
    %133 = vector.extract_strided_slice %53 {offsets = [0, 24], sizes = [8, 8], strides = [1, 1]} : vector<8x32xbf16> to vector<8x8xbf16>
    %cst_50 = arith.constant dense<0.000000e+00> : vector<8x8xf32>
    %134 = tpu.matmul %132, %133, %cst_50 {dimension_numbers = #tpu.dot_dimension_numbers<[1], [0], [0], [1], [0, 0, 1, 1], [], []>} : vector<8x8xbf16>, vector<8x8xbf16>, vector<8x8xf32> -> vector<8x8xf32>
    %135 = arith.truncf %134 : vector<8x8xf32> to vector<8x8xbf16>
    %136 = vector.extract_strided_slice %50 {offsets = [24, 0], sizes = [8, 32], strides = [1, 1]} : vector<32x32xbf16> to vector<8x32xbf16>
    %cst_51 = arith.constant dense<0.000000e+00> : vector<8x32xf32>
    %137 = tpu.matmul %135, %136, %cst_51 {dimension_numbers = #tpu.dot_dimension_numbers<[1], [0], [0], [1], [0, 0, 1, 1], [], []>} : vector<8x8xbf16>, vector<8x32xbf16>, vector<8x32xf32> -> vector<8x32xf32>
    %138 = arith.addf %117, %137 : vector<8x32xf32>
    %139 = arith.addf %1, %138 : vector<8x32xf32>
    %c0_52 = arith.constant 0 : index
    %c0_53 = arith.constant 0 : index
    %140 = vector.load %arg11[%c0_52, %c0_53] : memref<1x32xf32, #tpu.memory_space<vmem>>, vector<1x32xf32>
    %141 = vector.broadcast %140 : vector<1x32xf32> to vector<8x32xf32>
    %142 = arith.addf %139, %141 : vector<8x32xf32>
    %c0_54 = arith.constant 0 : index
    %c0_55 = arith.constant 0 : index
    %c0_56 = arith.constant 0 : index
    %143 = vector.load %arg12[%c0_54, %c0_55, %c0_56] : memref<1x8x32xf32, #tpu.memory_space<vmem>>, vector<1x8x32xf32>
    %144 = vector.shape_cast %143 : vector<1x8x32xf32> to vector<8x32xf32>
    %145 = vector.shape_cast %142 : vector<8x32xf32> to vector<1x8x32xf32>
    tpu.vector_store %arg12[%c0_54, %c0_55, %c0_56], %145 {strides = array<i32>} : memref<1x8x32xf32, #tpu.memory_space<vmem>>, vector<1x8x32xf32>,
    return
  }
  func.func @transform_0(%arg0: i32) -> (i32, i32, i32) {
    %c0_i32 = arith.constant 0 : i32
    %c0_i32_0 = arith.constant 0 : i32
    %c0_i32_1 = arith.constant 0 : i32
    return %arg0, %c0_i32, %c0_i32_0 : i32, i32, i32
  }
  func.func @transform_1(%arg0: i32) -> (i32, i32, i32) {
    %c0_i32 = arith.constant 0 : i32
    %c0_i32_0 = arith.constant 0 : i32
    %c0_i32_1 = arith.constant 0 : i32
    return %arg0, %c0_i32, %c0_i32_0 : i32, i32, i32
  }
  func.func @transform_2(%arg0: i32) -> (i32, i32, i32) {
    %c0_i32 = arith.constant 0 : i32
    %c0_i32_0 = arith.constant 0 : i32
    %c0_i32_1 = arith.constant 0 : i32
    return %arg0, %c0_i32, %c0_i32_0 : i32, i32, i32
  }
  func.func @transform_3(%arg0: i32) -> (i32, i32) {
    %c0_i32 = arith.constant 0 : i32
    %c0_i32_0 = arith.constant 0 : i32
    %c0_i32_1 = arith.constant 0 : i32
    return %c0_i32, %c0_i32_0 : i32, i32
  }
  func.func @transform_4(%arg0: i32) -> (i32, i32) {
    %c0_i32 = arith.constant 0 : i32
    %c0_i32_0 = arith.constant 0 : i32
    %c0_i32_1 = arith.constant 0 : i32
    return %c0_i32, %c0_i32_0 : i32, i32
  }
  func.func @transform_5(%arg0: i32) -> (i32, i32) {
    %c0_i32 = arith.constant 0 : i32
    %c0_i32_0 = arith.constant 0 : i32
    %c0_i32_1 = arith.constant 0 : i32
    return %c0_i32, %c0_i32_0 : i32, i32
  }
  func.func @transform_6(%arg0: i32) -> (i32, i32) {
    %c0_i32 = arith.constant 0 : i32
    %c0_i32_0 = arith.constant 0 : i32
    %c0_i32_1 = arith.constant 0 : i32
    return %c0_i32, %c0_i32_0 : i32, i32
  }
  func.func @transform_7(%arg0: i32) -> (i32, i32) {
    %c0_i32 = arith.constant 0 : i32
    %c0_i32_0 = arith.constant 0 : i32
    %c0_i32_1 = arith.constant 0 : i32
    return %c0_i32, %c0_i32_0 : i32, i32
  }
  func.func @transform_8(%arg0: i32) -> (i32, i32) {
    %c0_i32 = arith.constant 0 : i32
    %c0_i32_0 = arith.constant 0 : i32
    %c0_i32_1 = arith.constant 0 : i32
    return %c0_i32, %c0_i32_0 : i32, i32
  }
  func.func @transform_9(%arg0: i32) -> (i32, i32) {
    %c0_i32 = arith.constant 0 : i32
    %c0_i32_0 = arith.constant 0 : i32
    %c0_i32_1 = arith.constant 0 : i32
    return %c0_i32, %c0_i32_0 : i32, i32
  }
  func.func @transform_10(%arg0: i32) -> (i32, i32) {
    %c0_i32 = arith.constant 0 : i32
    %c0_i32_0 = arith.constant 0 : i32
    %c0_i32_1 = arith.constant 0 : i32
    return %c0_i32, %c0_i32_0 : i32, i32
  }
  func.func @transform_11(%arg0: i32) -> (i32, i32, i32) {
    %c0_i32 = arith.constant 0 : i32
    %c0_i32_0 = arith.constant 0 : i32
    %c0_i32_1 = arith.constant 0 : i32
    return %arg0, %c0_i32, %c0_i32_0 : i32, i32, i32
  }
}

module attributes {stable_mosaic.version = 11 : i64} {
  func.func @_ffn_sublayer_kernel(%arg0: i32, %arg1: memref<16x32xf32, #tpu.memory_space<vmem>>, %arg2: memref<1x32xf32, #tpu.memory_space<vmem>>, %arg3: memref<1x32xf32, #tpu.memory_space<vmem>>, %arg4: memref<32x64xbf16, #tpu.memory_space<vmem>>, %arg5: memref<1x64xf32, #tpu.memory_space<vmem>>, %arg6: memref<64x32xbf16, #tpu.memory_space<vmem>>, %arg7: memref<1x32xf32, #tpu.memory_space<vmem>>, %arg8: memref<16x32xf32, #tpu.memory_space<vmem>>) attributes {dimension_semantics = [#tpu.dimension_semantics<parallel>], iteration_bounds = array<i64: 1>, scalar_prefetch = 0 : i64, scratch_operands = 0 : i64, tpu.core_type = #tpu.core_type<tc>, window_params = [{transform_indices = @transform_0, window_bounds = array<i64: 16, 32>}, {pipeline_mode = #tpu.pipeline_mode<synchronous>, transform_indices = @transform_1, window_bounds = array<i64: 1, 32>}, {pipeline_mode = #tpu.pipeline_mode<synchronous>, transform_indices = @transform_2, window_bounds = array<i64: 1, 32>}, {pipeline_mode = #tpu.pipeline_mode<synchronous>, transform_indices = @transform_3, window_bounds = array<i64: 32, 64>}, {pipeline_mode = #tpu.pipeline_mode<synchronous>, transform_indices = @transform_4, window_bounds = array<i64: 1, 64>}, {pipeline_mode = #tpu.pipeline_mode<synchronous>, transform_indices = @transform_5, window_bounds = array<i64: 64, 32>}, {pipeline_mode = #tpu.pipeline_mode<synchronous>, transform_indices = @transform_6, window_bounds = array<i64: 1, 32>}, {transform_indices = @transform_7, window_bounds = array<i64: 16, 32>}]} {
    %c0 = arith.constant 0 : index
    %c0_0 = arith.constant 0 : index
    %0 = vector.load %arg1[%c0, %c0_0] : memref<16x32xf32, #tpu.memory_space<vmem>>, vector<16x32xf32>
    %c0_1 = arith.constant 0 : index
    %c0_2 = arith.constant 0 : index
    %1 = vector.load %arg2[%c0_1, %c0_2] : memref<1x32xf32, #tpu.memory_space<vmem>>, vector<1x32xf32>
    %c0_3 = arith.constant 0 : index
    %c0_4 = arith.constant 0 : index
    %2 = vector.load %arg3[%c0_3, %c0_4] : memref<1x32xf32, #tpu.memory_space<vmem>>, vector<1x32xf32>
    %cst = arith.constant dense<0.000000e+00> : vector<16xf32>
    %3 = vector.multi_reduction <add>, %0, %cst [1] : vector<16x32xf32> to vector<16xf32>
    %4 = vector.shape_cast %3 : vector<16xf32> to vector<16x1xf32>
    %cst_5 = arith.constant 3.200000e+01 : f32
    %5 = vector.broadcast %cst_5 : f32 to vector<16x1xf32>
    %6 = arith.divf %4, %5 : vector<16x1xf32>
    %7 = arith.mulf %0, %0 : vector<16x32xf32>
    %cst_6 = arith.constant dense<0.000000e+00> : vector<16xf32>
    %8 = vector.multi_reduction <add>, %7, %cst_6 [1] : vector<16x32xf32> to vector<16xf32>
    %9 = vector.shape_cast %8 : vector<16xf32> to vector<16x1xf32>
    %cst_7 = arith.constant 3.200000e+01 : f32
    %10 = vector.broadcast %cst_7 : f32 to vector<16x1xf32>
    %11 = arith.mulf %10, %6 : vector<16x1xf32>
    %12 = arith.mulf %11, %6 : vector<16x1xf32>
    %13 = arith.subf %9, %12 : vector<16x1xf32>
    %cst_8 = arith.constant 3.100000e+01 : f32
    %14 = vector.broadcast %cst_8 : f32 to vector<16x1xf32>
    %15 = arith.divf %13, %14 : vector<16x1xf32>
    %cst_9 = arith.constant 0.000000e+00 : f32
    %16 = vector.broadcast %cst_9 : f32 to vector<16x1xf32>
    %17 = arith.maximumf %15, %16 : vector<16x1xf32>
    %18 = math.sqrt %17 : vector<16x1xf32>
    %19 = vector.broadcast %6 : vector<16x1xf32> to vector<16x32xf32>
    %20 = arith.subf %0, %19 : vector<16x32xf32>
    %21 = vector.broadcast %1 : vector<1x32xf32> to vector<16x32xf32>
    %22 = arith.mulf %21, %20 : vector<16x32xf32>
    %cst_10 = arith.constant 9.99999997E-7 : f32
    %23 = vector.broadcast %cst_10 : f32 to vector<16x1xf32>
    %24 = arith.addf %18, %23 : vector<16x1xf32>
    %25 = vector.broadcast %24 : vector<16x1xf32> to vector<16x32xf32>
    %26 = arith.divf %22, %25 : vector<16x32xf32>
    %27 = vector.broadcast %2 : vector<1x32xf32> to vector<16x32xf32>
    %28 = arith.addf %26, %27 : vector<16x32xf32>
    %29 = arith.truncf %28 : vector<16x32xf32> to vector<16x32xbf16>
    %c0_11 = arith.constant 0 : index
    %c0_12 = arith.constant 0 : index
    %30 = vector.load %arg4[%c0_11, %c0_12] : memref<32x64xbf16, #tpu.memory_space<vmem>>, vector<32x64xbf16>
    %cst_13 = arith.constant dense<0.000000e+00> : vector<16x64xf32>
    %31 = tpu.matmul %29, %30, %cst_13 {dimension_numbers = #tpu.dot_dimension_numbers<[1], [0], [0], [1], [0, 0, 1, 1], [], []>} : vector<16x32xbf16>, vector<32x64xbf16>, vector<16x64xf32> -> vector<16x64xf32>
    %c0_14 = arith.constant 0 : index
    %c0_15 = arith.constant 0 : index
    %32 = vector.load %arg5[%c0_14, %c0_15] : memref<1x64xf32, #tpu.memory_space<vmem>>, vector<1x64xf32>
    %33 = vector.broadcast %32 : vector<1x64xf32> to vector<16x64xf32>
    %34 = arith.addf %31, %33 : vector<16x64xf32>
    %cst_16 = arith.constant 0.000000e+00 : f32
    %35 = vector.broadcast %cst_16 : f32 to vector<16x64xf32>
    %36 = arith.maximumf %34, %35 : vector<16x64xf32>
    %37 = arith.truncf %36 : vector<16x64xf32> to vector<16x64xbf16>
    %c0_17 = arith.constant 0 : index
    %c0_18 = arith.constant 0 : index
    %38 = vector.load %arg6[%c0_17, %c0_18] : memref<64x32xbf16, #tpu.memory_space<vmem>>, vector<64x32xbf16>
    %cst_19 = arith.constant dense<0.000000e+00> : vector<16x32xf32>
    %39 = tpu.matmul %37, %38, %cst_19 {dimension_numbers = #tpu.dot_dimension_numbers<[1], [0], [0], [1], [0, 0, 1, 1], [], []>} : vector<16x64xbf16>, vector<64x32xbf16>, vector<16x32xf32> -> vector<16x32xf32>
    %c0_20 = arith.constant 0 : index
    %c0_21 = arith.constant 0 : index
    %40 = vector.load %arg7[%c0_20, %c0_21] : memref<1x32xf32, #tpu.memory_space<vmem>>, vector<1x32xf32>
    %41 = vector.broadcast %40 : vector<1x32xf32> to vector<16x32xf32>
    %42 = arith.addf %39, %41 : vector<16x32xf32>
    %43 = arith.addf %0, %42 : vector<16x32xf32>
    %c0_22 = arith.constant 0 : index
    %c0_23 = arith.constant 0 : index
    %44 = vector.load %arg8[%c0_22, %c0_23] : memref<16x32xf32, #tpu.memory_space<vmem>>, vector<16x32xf32>
    tpu.vector_store %arg8[%c0_22, %c0_23], %43 {strides = array<i32>} : memref<16x32xf32, #tpu.memory_space<vmem>>, vector<16x32xf32>,
    return
  }
  func.func @transform_0(%arg0: i32) -> (i32, i32) {
    %c0_i32 = arith.constant 0 : i32
    %c0_i32_0 = arith.constant 0 : i32
    return %arg0, %c0_i32 : i32, i32
  }
  func.func @transform_1(%arg0: i32) -> (i32, i32) {
    %c0_i32 = arith.constant 0 : i32
    %c0_i32_0 = arith.constant 0 : i32
    %c0_i32_1 = arith.constant 0 : i32
    return %c0_i32, %c0_i32_0 : i32, i32
  }
  func.func @transform_2(%arg0: i32) -> (i32, i32) {
    %c0_i32 = arith.constant 0 : i32
    %c0_i32_0 = arith.constant 0 : i32
    %c0_i32_1 = arith.constant 0 : i32
    return %c0_i32, %c0_i32_0 : i32, i32
  }
  func.func @transform_3(%arg0: i32) -> (i32, i32) {
    %c0_i32 = arith.constant 0 : i32
    %c0_i32_0 = arith.constant 0 : i32
    %c0_i32_1 = arith.constant 0 : i32
    return %c0_i32, %c0_i32_0 : i32, i32
  }
  func.func @transform_4(%arg0: i32) -> (i32, i32) {
    %c0_i32 = arith.constant 0 : i32
    %c0_i32_0 = arith.constant 0 : i32
    %c0_i32_1 = arith.constant 0 : i32
    return %c0_i32, %c0_i32_0 : i32, i32
  }
  func.func @transform_5(%arg0: i32) -> (i32, i32) {
    %c0_i32 = arith.constant 0 : i32
    %c0_i32_0 = arith.constant 0 : i32
    %c0_i32_1 = arith.constant 0 : i32
    return %c0_i32, %c0_i32_0 : i32, i32
  }
  func.func @transform_6(%arg0: i32) -> (i32, i32) {
    %c0_i32 = arith.constant 0 : i32
    %c0_i32_0 = arith.constant 0 : i32
    %c0_i32_1 = arith.constant 0 : i32
    return %c0_i32, %c0_i32_0 : i32, i32
  }
  func.func @transform_7(%arg0: i32) -> (i32, i32) {
    %c0_i32 = arith.constant 0 : i32
    %c0_i32_0 = arith.constant 0 : i32
    return %arg0, %c0_i32 : i32, i32
  }
}

</mosaic_0001>

<llo_original>
// kernel: decoder_layer.5
$region0: #{decoder_layer.5}
  #allocation0 [shape = 'u32[]', space=smem, size = 0x4, offset = 0x4, fixed_abs, tag = 'smem constant byte address 0x4 - core index']
  #allocation1 [shape = 'u32[144,128]{1,0:T(1,128)}', space=vmem, size = 0x12000, scoped, tag = 'internal scratch']
  %s0 = inlined_call_operand.vmem [shape: f32[16,32], index: 0, kind: input, shape index: {}]
  %s1 = inlined_call_operand.vmem [shape: f32[1,32], index: 1, kind: input, shape index: {}]
  %s2 = inlined_call_operand.vmem [shape: f32[1,32], index: 2, kind: input, shape index: {}]
  %s3 = inlined_call_operand.vmem [shape: bf16[32,64], index: 3, kind: input, shape index: {}]
  %s4 = inlined_call_operand.vmem [shape: f32[1,64], index: 4, kind: input, shape index: {}]
  %s5 = inlined_call_operand.vmem [shape: bf16[64,32], index: 5, kind: input, shape index: {}]
  %s6 = inlined_call_operand.vmem [shape: f32[1,32], index: 6, kind: input, shape index: {}]
  %s7 = inlined_call_operand.hbm [shape: f32[16,32], index: 7, kind: output, shape index: {}]
  %s8 = sld [smem:[#allocation0]]
  $region38: #{decoder_layer.5} parent=0
    _
  %s10 = ssub.s32 1, %s8
  %s11 = scalar_select 0, %s10, %s8
  $region1: #{decoder_layer.5} parent=0
    #allocation2 [shape = 'u8[8192]{0}', space=vmem, size = 0x2000, scoped, tag = 'output window, operand 0, single buffered']
    #allocation3 [shape = 's32[1]{0}', space=sflag, size = 0x4, scoped, tag = 'scoped memory for decoder_layer.5']
    %12 = vsyncpa [#allocation3], 0
    // Predicated region
    $region2: #{decoder_layer.5} parent=1 // pred_check
      _
    $region3: #{decoder_layer.5} parent=1 // pred_check_branch
      %14 = sbr.rel (0) target = $region5
    $region4: #{decoder_layer.5} parent=1 // pred_region
      _
    $region5: #{decoder_layer.5} parent=1 // pred_fallthru
      _
    // Predicated region
    $region6: #{decoder_layer.5} parent=1 // pred_check
      _
    $region7: #{decoder_layer.5} parent=1 // pred_check_branch
      %16 = sbr.rel (0) target = $region9
    $region8: #{decoder_layer.5} parent=1 // pred_region
      _
    $region9: #{decoder_layer.5} parent=1 // pred_fallthru
      _
    // Predicated region
    $region10: #{decoder_layer.5} parent=1 // pred_check
      _
    $region11: #{decoder_layer.5} parent=1 // pred_check_branch
      %18 = sbr.rel (0) target = $region13
    $region12: #{decoder_layer.5} parent=1 // pred_region
      _
    $region13: #{decoder_layer.5} parent=1 // pred_fallthru
      _
    // Predicated region
    $region14: #{decoder_layer.5} parent=1 // pred_check
      _
    $region15: #{decoder_layer.5} parent=1 // pred_check_branch
      %20 = sbr.rel (0) target = $region17
    $region16: #{decoder_layer.5} parent=1 // pred_region
      _
    $region17: #{decoder_layer.5} parent=1 // pred_fallthru
      _
    // Predicated region
    $region18: #{decoder_layer.5} parent=1 // pred_check
      _
    $region19: #{decoder_layer.5} parent=1 // pred_check_branch
      %22 = sbr.rel (0) target = $region21
    $region20: #{decoder_layer.5} parent=1 // pred_region
      _
    $region21: #{decoder_layer.5} parent=1 // pred_fallthru
      _
    // Predicated region
    $region22: #{decoder_layer.5} parent=1 // pred_check
      _
    $region23: #{decoder_layer.5} parent=1 // pred_check_branch
      %24 = sbr.rel (0) target = $region25
    $region24: #{decoder_layer.5} parent=1 // pred_region
      _
    $region25: #{decoder_layer.5} parent=1 // pred_fallthru
      _
    // Predicated region
    $region26: #{decoder_layer.5} parent=1 // pred_check
      _
    $region27: #{decoder_layer.5} parent=1 // pred_check_branch
      %26 = sbr.rel (0) target = $region29
    $region28: #{decoder_layer.5} parent=1 // pred_region
      _
    $region29: #{decoder_layer.5} parent=1 // pred_fallthru
      _
    %v28 = vld [vmem:[%s0] sm:$0xff]
    %v29 = vld [vmem:[%s0 + $0x8] sm:$0xff]
    %v30 = vld [vmem:[%s1] sm:$0x1]
    %v31 = vld [vmem:[%s2] sm:$0x1]
    %vm32 = vcmask 261120
    %v33 = vsel %vm32, %v28, 0.0
    %34 = vadd.xlane.f32.xlu0 %v33
    %v35 = vpop.xlane.xlu0 %34
    %v36 = vsel %vm32, %v29, 0.0
    %37 = vadd.xlane.f32.xlu0 %v36
    %v38 = vpop.xlane.xlu0 %37
    %v39 = vrcp.pop 32.0
    %v40 = vmul.f32 %v35, %v39
    %v41 = vmul.f32 %v38, %v39
    %v42 = vmul.f32 %v28, %v28
    %v43 = vmul.f32 %v29, %v29
    %v44 = vsel %vm32, %v42, 0.0
    %45 = vadd.xlane.f32.xlu0 %v44
    %v46 = vpop.xlane.xlu0 %45
    %v47 = vsel %vm32, %v43, 0.0
    %48 = vadd.xlane.f32.xlu0 %v47
    %v49 = vpop.xlane.xlu0 %48
    %v50 = vmul.f32 %v40, 32.0
    %v51 = vmul.f32 %v41, 32.0
    %v52 = vmul.f32 %v50, %v40
    %v53 = vmul.f32 %v51, %v41
    %v54 = vsub.f32 %v46, %v52
    %v55 = vsub.f32 %v49, %v53
    %v56 = vrcp.pop 31.0
    %v57 = vmul.f32 %v54, %v56
    %v58 = vmul.f32 %v55, %v56
    %v59 = vmax.f32 %v57, 0.0
    %v60 = vmax.f32 %v58, 0.0
    %v61 = vrsqrt.pop %v59
    %v62 = vmul.f32 %v59, %v61
    %vm63 = vcmp.eq.f32.partialorder %v59, inf
    %v64 = vsel %vm63, %v59, %v62
    %vm65 = vcmp.eq.f32.partialorder %v59, 0.0
    %v66 = vand.u32 %v59, 2147483648
    %v67 = vsel %vm65, %v66, %v64
    %v68 = vrsqrt.pop %v60
    %v69 = vmul.f32 %v60, %v68
    %vm70 = vcmp.eq.f32.partialorder %v60, inf
    %v71 = vsel %vm70, %v60, %v69
    %vm72 = vcmp.eq.f32.partialorder %v60, 0.0
    %v73 = vand.u32 %v60, 2147483648
    %v74 = vsel %vm72, %v73, %v71
    %v75 = vsub.f32 %v28, %v40
    %v76 = vsub.f32 %v29, %v41
    %v78 = vlaneseq
    %v79 = vshrl.u32 %v78, 7
    %v80 = vsub.s32 0, %v79
    %v81 = vrot.slane %v30, %v80
    %v83 = vmul.f32 %v81, %v75
    %v84 = vmul.f32 %v81, %v76
    %v85 = vadd.f32 %v67, 1e-06
    %v86 = vadd.f32 %v74, 1e-06
    %v87 = vrcp.pop %v85
    %v88 = vmul.f32 %v83, %v87
    %v89 = vrcp.pop %v86
    %v90 = vmul.f32 %v84, %v89
    %v92 = vlaneseq
    %v93 = vshrl.u32 %v92, 7
    %v94 = vsub.s32 0, %v93
    %v95 = vrot.slane %v31, %v94
    %v97 = vadd.f32 %v88, %v95
    %v98 = vadd.f32 %v90, %v95
    %v99 = vpack.c.bf16 %v98, %v97
    %v100 = vld [vmem:[%s3] sm:$0xf]
    %v101 = vld [vmem:[%s3 + $0x4] sm:$0xf]
    %v102 = vld [vmem:[%s3 + $0x8] sm:$0xf]
    %v103 = vld [vmem:[%s3 + $0xc] sm:$0xf]
    %v104 = vld [vmem:[%s4] sm:$0x1]
    %v106 = vlaneseq
    %v107 = vshrl.u32 %v106, 7
    %v108 = vsub.s32 0, %v107
    %v109 = vrot.slane %v104, %v108
    %v115 = vunpack.c.l.b16 %v100
    %v116 = vunpack.c.l.b16 %v101
    %v117 = vunpack.c.l.b16 %v102
    %v118 = vunpack.c.l.b16 %v103
    %v119 = vpack.c.b16 %v116, %v115
    %v120 = vpack.c.b16 %v118, %v117
    %v124 = vsel %vm32, %v99, 0
    %126 = vmatprep.subr.bf16.mxu0 0
    %127 = vmatpush1.bf16.msra.mxu0 0
    %128 = vmatprep.subr.bf16.mxu0 0
    %129 = vmatpush1.bf16.msra.mxu0 0
    %130 = vmatprep.subr.bf16.mxu0 0
    %131 = vmatpush1.bf16.msra.mxu0 0
    %132 = vmatprep.subr.bf16.mxu0 0
    %133 = vmatpush1.bf16.msra.mxu0 0
    %134 = vmatprep.subr.bf16.mxu0 0
    %135 = vmatpush1.bf16.msra.mxu0 0
    %136 = vmatprep.subr.bf16.mxu0 0
    %137 = vmatpush1.bf16.msra.mxu0 0
    %138 = vmatprep.subr.bf16.mxu0 0
    %139 = vmatpush1.bf16.msra.mxu0 %v120
    %140 = vmatprep.subr.bf16.mxu0 0
    %141 = vmatpush1.bf16.msra.mxu0 %v119
    %142 = vmatprep.subr.bf16.mxu0 0
    %143 = vmatpush2.bf16.msra.mxu0 0
    %144 = vmatprep.subr.bf16.mxu0 0
    %145 = vmatpush2.bf16.msra.mxu0 0
    %146 = vmatprep.subr.bf16.mxu0 0
    %147 = vmatpush2.bf16.msra.mxu0 0
    %148 = vmatprep.subr.bf16.mxu0 0
    %149 = vmatpush2.bf16.msra.mxu0 0
    %150 = vmatprep.subr.bf16.mxu0 0
    %151 = vmatpush2.bf16.msra.mxu0 0
    %152 = vmatprep.subr.bf16.mxu0 0
    %153 = vmatpush2.bf16.msra.mxu0 0
    %154 = vmatprep.subr.bf16.mxu0 0
    %155 = vmatpush2.bf16.msra.mxu0 0
    %156 = vmatprep.subr.bf16.mxu0 0
    %157 = vmatpush2.bf16.msra.mxu0 0
    %158 = vmatprep.mubr.bf16.mxu0 0
    %159 = vmatmul.mubr.bf16.gmra.mxu0 %v124
    %v160 = vpop.f32.mrf.mxu0
    %v161 = vadd.f32 %v109, %v160
    %v162 = vpop.f32.mrf.mxu0
    %v163 = vpop.f32.mrf.mxu0
    %v164 = vadd.f32 %v109, %v163
    %v165 = vpop.f32.mrf.mxu0
    %166 = vdwg.mxu0
    %v167 = vmax.f32 %v161, 0.0
    %v168 = vmax.f32 %v164, 0.0
    %v169 = vpack.c.bf16 %v168, %v167
    %v170 = vld [vmem:[%s5] sm:$0xf]
    %v171 = vld [vmem:[%s5 + $0x4] sm:$0xf]
    %v172 = vld [vmem:[%s5 + $0x8] sm:$0xf]
    %v173 = vld [vmem:[%s5 + $0xc] sm:$0xf]
    %v174 = vld [vmem:[%s5 + $0x10] sm:$0xf]
    %v175 = vld [vmem:[%s5 + $0x14] sm:$0xf]
    %v176 = vld [vmem:[%s5 + $0x18] sm:$0xf]
    %v177 = vld [vmem:[%s5 + $0x1c] sm:$0xf]
    %v178 = vld [vmem:[%s6] sm:$0x1]
    %v180 = vlaneseq
    %v181 = vshrl.u32 %v180, 7
    %v182 = vsub.s32 0, %v181
    %v183 = vrot.slane %v178, %v182
    %v193 = vunpack.c.l.b16 %v170
    %v194 = vunpack.c.l.b16 %v171
    %v195 = vunpack.c.l.b16 %v172
    %v196 = vunpack.c.l.b16 %v173
    %v197 = vunpack.c.l.b16 %v174
    %v198 = vunpack.c.l.b16 %v175
    %v199 = vunpack.c.l.b16 %v176
    %v200 = vunpack.c.l.b16 %v177
    %v201 = vpack.c.b16 %v194, %v193
    %v202 = vpack.c.b16 %v196, %v195
    %v203 = vpack.c.b16 %v198, %v197
    %v204 = vpack.c.b16 %v200, %v199
    %vm209 = vcmask 523264
    %v211 = vsel %vm209, %v169, 0
    %213 = vmatprep.subr.bf16.mxu0 0
    %214 = vmatpush1.bf16.msra.mxu0 0
    %215 = vmatprep.subr.bf16.mxu0 0
    %216 = vmatpush1.bf16.msra.mxu0 0
    %217 = vmatprep.subr.bf16.mxu0 0
    %218 = vmatpush1.bf16.msra.mxu0 0
    %219 = vmatprep.subr.bf16.mxu0 0
    %220 = vmatpush1.bf16.msra.mxu0 0
    %221 = vmatprep.subr.bf16.mxu0 0
    %222 = vmatpush1.bf16.msra.mxu0 %v204
    %223 = vmatprep.subr.bf16.mxu0 0
    %224 = vmatpush1.bf16.msra.mxu0 %v203
    %225 = vmatprep.subr.bf16.mxu0 0
    %226 = vmatpush1.bf16.msra.mxu0 %v202
    %227 = vmatprep.subr.bf16.mxu0 0
    %228 = vmatpush1.bf16.msra.mxu0 %v201
    %229 = vmatprep.subr.bf16.mxu0 0
    %230 = vmatpush2.bf16.msra.mxu0 0
    %231 = vmatprep.subr.bf16.mxu0 0
    %232 = vmatpush2.bf16.msra.mxu0 0
    %233 = vmatprep.subr.bf16.mxu0 0
    %234 = vmatpush2.bf16.msra.mxu0 0
    %235 = vmatprep.subr.bf16.mxu0 0
    %236 = vmatpush2.bf16.msra.mxu0 0
    %237 = vmatprep.subr.bf16.mxu0 0
    %238 = vmatpush2.bf16.msra.mxu0 0
    %239 = vmatprep.subr.bf16.mxu0 0
    %240 = vmatpush2.bf16.msra.mxu0 0
    %241 = vmatprep.subr.bf16.mxu0 0
    %242 = vmatpush2.bf16.msra.mxu0 0
    %243 = vmatprep.subr.bf16.mxu0 0
    %244 = vmatpush2.bf16.msra.mxu0 0
    %245 = vmatprep.mubr.bf16.mxu0 0
    %246 = vmatmul.mubr.bf16.gmra.mxu0 %v211
    %v247 = vpop.f32.mrf.mxu0
    %v248 = vadd.f32 %v183, %v247
    %v249 = vpop.f32.mrf.mxu0
    %v250 = vpop.f32.mrf.mxu0
    %v251 = vadd.f32 %v183, %v250
    %v252 = vpop.f32.mrf.mxu0
    %253 = vdwg.mxu0
    %v254 = vadd.f32 %v28, %v248
    %v255 = vadd.f32 %v29, %v251
    %256 = vst.msk [vmem:[#allocation2] sm:$0xff] %vm32, %v254
    %257 = vst.msk [vmem:[#allocation2 + $0x8] sm:$0xff] %vm32, %v255
    // Predicated region
    $region30: #{decoder_layer.5} parent=1 // pred_check
      _
    $region31: #{decoder_layer.5} parent=1 // pred_check_branch
      %259 = sbr.rel (0) target = $region33
    $region32: #{decoder_layer.5} parent=1 // pred_region
      %s261 = ssub.s32 256, 256
      %262 = vsyncadd [#allocation3], %s261
      %s263 = sshll.u32 [#allocation2], 4
      %s264 = int_to_ptr.vmem [resolvable:$true] %s263
      %269 = dma.vmem_to_hbm [thread:$0]  %s264, 256, %s7, [#allocation3], 128, 128, 8
    $region33: #{decoder_layer.5} parent=1 // pred_fallthru
      _
    // Predicated region
    $region34: #{decoder_layer.5} parent=1 // pred_check
      _
    $region35: #{decoder_layer.5} parent=1 // pred_check_branch
      %271 = sbr.rel (0) target = $region37
    $region36: #{decoder_layer.5} parent=1 // pred_region
      %272 = dma.done [#allocation3], 256
    $region37: #{decoder_layer.5} parent=1 // pred_fallthru
      _
    %273 = vsyncpa [#allocation3], 1

// kernel: decoder_layer.4
$region0: #{decoder_layer.4}
  #allocation0 [shape = 'u32[]', space=smem, size = 0x4, offset = 0x4, fixed_abs, tag = 'smem constant byte address 0x4 - core index']
  #allocation1 [shape = 'u32[144,128]{1,0:T(1,128)}', space=vmem, size = 0x12000, scoped, tag = 'internal scratch']
  %s0 = inlined_call_operand.vmem [shape: f32[2,8,32], index: 0, kind: input, shape index: {}]
  %s1 = inlined_call_operand.vmem [shape: f32[2,8,32], index: 1, kind: input, shape index: {}]
  %s2 = inlined_call_operand.vmem [shape: f32[2,8,8], index: 2, kind: input, shape index: {}]
  %s3 = inlined_call_operand.vmem [shape: f32[1,32], index: 3, kind: input, shape index: {}]
  %s4 = inlined_call_operand.vmem [shape: f32[1,32], index: 4, kind: input, shape index: {}]
  %s5 = inlined_call_operand.vmem [shape: bf16[32,32], index: 5, kind: input, shape index: {}]
  %s6 = inlined_call_operand.vmem [shape: f32[1,32], index: 6, kind: input, shape index: {}]
  %s7 = inlined_call_operand.vmem [shape: bf16[32,64], index: 7, kind: input, shape index: {}]
  %s8 = inlined_call_operand.vmem [shape: f32[1,64], index: 8, kind: input, shape index: {}]
  %s9 = inlined_call_operand.vmem [shape: bf16[32,32], index: 9, kind: input, shape index: {}]
  %s10 = inlined_call_operand.vmem [shape: f32[1,32], index: 10, kind: input, shape index: {}]
  %s11 = inlined_call_operand.vmem [shape: f32[2,8,32], index: 11, kind: output, shape index: {}]
  %s12 = sld [smem:[#allocation0]]
  $region77: #{decoder_layer.4} parent=0
    _
  %s14 = ssub.s32 1, %s12
  %s15 = scalar_select 0, %s14, %s12
  loop: start=0, step=1, limit=4
  $region2: #{decoder_layer.4} parent=0 // loop_pre_header
    _
  $region3: #{decoder_layer.4} parent=0 // loop_header
    %s17 = sphi 0, %s21
    %p18 = scmp.ge.s32.totalorder %s17, 4
    %s27 = sphi 0, %s29
    %s30 = sphi 0, %s27
    %s31 = sphi 0, %s30
    %s47 = sphi 0, %s31
    %s53 = sphi 0, %s55
    %s56 = sphi 0, %s53
    %s57 = sphi 0, %s56
    %s73 = sphi 0, %s57
    %s79 = sphi 0, %s81
    %s82 = sphi 0, %s79
    %s83 = sphi 0, %s82
    %s99 = sphi 0, %s83
    %s103 = sphi 0, %s103
    %s105 = sphi 0, %s103
    %s106 = sphi 0, %s105
    %s120 = sphi 0, %s106
    %s124 = sphi 0, %s124
    %s126 = sphi 0, %s124
    %s127 = sphi 0, %s126
    %s141 = sphi 0, %s127
    %s145 = sphi 0, %s145
    %s147 = sphi 0, %s145
    %s148 = sphi 0, %s147
    %s162 = sphi 0, %s148
    %s166 = sphi 0, %s166
    %s168 = sphi 0, %s166
    %s169 = sphi 0, %s168
    %s183 = sphi 0, %s169
    %s187 = sphi 0, %s187
    %s189 = sphi 0, %s187
    %s190 = sphi 0, %s189
    %s204 = sphi 0, %s190
    %s208 = sphi 0, %s208
    %s210 = sphi 0, %s208
    %s211 = sphi 0, %s210
    %s225 = sphi 0, %s211
    %s229 = sphi 0, %s229
    %s231 = sphi 0, %s229
    %s232 = sphi 0, %s231
    %s246 = sphi 0, %s232
    %s250 = sphi 0, %s250
    %s252 = sphi 0, %s250
    %s253 = sphi 0, %s252
    %s267 = sphi 0, %s253
    %s273 = sphi 0, %s275
    %s276 = sphi 0, %s273
    %s277 = sphi 0, %s276
    %s293 = sphi 0, %s277
  $region4: #{decoder_layer.4} parent=0 // loop_header_branch
    %20 = sbr.rel (%p18) target = $region8
  $region5: #{decoder_layer.4} parent=0 // loop_body
    %s22 = ssub.s32 %s17, 1
    %s23 = ssub.s32 %s17, 2
    %s24 = sadd.s32 %s17, 1
    %s25 = ssub.s32 %s17, %s24
    %p26 = scmp.eq.s32.totalorder %s25, 0
    %s28 = sadd.s32 %s27, 1
    %s29 = scalar_select %p26, %s27, %s28
    %p32 = pneg %p26
    %p33 = scmp.eq.s32.totalorder %s17, 1
    %p34 = por %p32, %p33
    %p35 = scmp.ne.s32.totalorder %s27, %s30
    %p36 = scmp.eq.s32.totalorder %s17, 0
    %p37 = por %p35, %p36
    %p38 = scmp.ne.s32.totalorder %s27, %s30
    %p39 = scmp.eq.s32.totalorder %s22, 1
    %p40 = por %p38, %p39
    %p41 = scmp.ne.s32.totalorder %s30, %s31
    %p42 = scmp.eq.s32.totalorder %s22, 0
    %p43 = por %p41, %p42
    %p44 = scmp.ne.s32.totalorder %s30, %s31
    %p45 = scmp.eq.s32.totalorder %s23, 1
    %p46 = por %p44, %p45
    %p48 = scmp.ne.s32.totalorder %s31, %s47
    %p49 = scmp.eq.s32.totalorder %s23, 0
    %p50 = por %p48, %p49
    %s51 = ssub.s32 %s17, %s24
    %p52 = scmp.eq.s32.totalorder %s51, 0
    %s54 = sadd.s32 %s53, 1
    %s55 = scalar_select %p52, %s53, %s54
    %p58 = pneg %p52
    %p59 = scmp.eq.s32.totalorder %s17, 1
    %p60 = por %p58, %p59
    %p61 = scmp.ne.s32.totalorder %s53, %s56
    %p62 = scmp.eq.s32.totalorder %s17, 0
    %p63 = por %p61, %p62
    %p64 = scmp.ne.s32.totalorder %s53, %s56
    %p65 = scmp.eq.s32.totalorder %s22, 1
    %p66 = por %p64, %p65
    %p67 = scmp.ne.s32.totalorder %s56, %s57
    %p68 = scmp.eq.s32.totalorder %s22, 0
    %p69 = por %p67, %p68
    %p70 = scmp.ne.s32.totalorder %s56, %s57
    %p71 = scmp.eq.s32.totalorder %s23, 1
    %p72 = por %p70, %p71
    %p74 = scmp.ne.s32.totalorder %s57, %s73
    %p75 = scmp.eq.s32.totalorder %s23, 0
    %p76 = por %p74, %p75
    %s77 = ssub.s32 %s17, %s24
    %p78 = scmp.eq.s32.totalorder %s77, 0
    %s80 = sadd.s32 %s79, 1
    %s81 = scalar_select %p78, %s79, %s80
    %p84 = pneg %p78
    %p85 = scmp.eq.s32.totalorder %s17, 1
    %p86 = por %p84, %p85
    %p87 = scmp.ne.s32.totalorder %s79, %s82
    %p88 = scmp.eq.s32.totalorder %s17, 0
    %p89 = por %p87, %p88
    %p90 = scmp.ne.s32.totalorder %s79, %s82
    %p91 = scmp.eq.s32.totalorder %s22, 1
    %p92 = por %p90, %p91
    %p93 = scmp.ne.s32.totalorder %s82, %s83
    %p94 = scmp.eq.s32.totalorder %s22, 0
    %p95 = por %p93, %p94
    %p96 = scmp.ne.s32.totalorder %s82, %s83
    %p97 = scmp.eq.s32.totalorder %s23, 1
    %p98 = por %p96, %p97
    %p100 = scmp.ne.s32.totalorder %s83, %s99
    %p101 = scmp.eq.s32.totalorder %s23, 0
    %p102 = por %p100, %p101
    %s104 = sadd.s32 %s103, 1
    %p107 = scmp.eq.s32.totalorder %s17, 1
    %p108 = scmp.ne.s32.totalorder %s103, %s105
    %p109 = scmp.eq.s32.totalorder %s17, 0
    %p110 = por %p108, %p109
    %p111 = scmp.ne.s32.totalorder %s103, %s105
    %p112 = scmp.eq.s32.totalorder %s22, 1
    %p113 = por %p111, %p112
    %p114 = scmp.ne.s32.totalorder %s105, %s106
    %p115 = scmp.eq.s32.totalorder %s22, 0
    %p116 = por %p114, %p115
    %p117 = scmp.ne.s32.totalorder %s105, %s106
    %p118 = scmp.eq.s32.totalorder %s23, 1
    %p119 = por %p117, %p118
    %p121 = scmp.ne.s32.totalorder %s106, %s120
    %p122 = scmp.eq.s32.totalorder %s23, 0
    %p123 = por %p121, %p122
    %s125 = sadd.s32 %s124, 1
    %p128 = scmp.eq.s32.totalorder %s17, 1
    %p129 = scmp.ne.s32.totalorder %s124, %s126
    %p130 = scmp.eq.s32.totalorder %s17, 0
    %p131 = por %p129, %p130
    %p132 = scmp.ne.s32.totalorder %s124, %s126
    %p133 = scmp.eq.s32.totalorder %s22, 1
    %p134 = por %p132, %p133
    %p135 = scmp.ne.s32.totalorder %s126, %s127
    %p136 = scmp.eq.s32.totalorder %s22, 0
    %p137 = por %p135, %p136
    %p138 = scmp.ne.s32.totalorder %s126, %s127
    %p139 = scmp.eq.s32.totalorder %s23, 1
    %p140 = por %p138, %p139
    %p142 = scmp.ne.s32.totalorder %s127, %s141
    %p143 = scmp.eq.s32.totalorder %s23, 0
    %p144 = por %p142, %p143
    %s146 = sadd.s32 %s145, 1
    %p149 = scmp.eq.s32.totalorder %s17, 1
    %p150 = scmp.ne.s32.totalorder %s145, %s147
    %p151 = scmp.eq.s32.totalorder %s17, 0
    %p152 = por %p150, %p151
    %p153 = scmp.ne.s32.totalorder %s145, %s147
    %p154 = scmp.eq.s32.totalorder %s22, 1
    %p155 = por %p153, %p154
    %p156 = scmp.ne.s32.totalorder %s147, %s148
    %p157 = scmp.eq.s32.totalorder %s22, 0
    %p158 = por %p156, %p157
    %p159 = scmp.ne.s32.totalorder %s147, %s148
    %p160 = scmp.eq.s32.totalorder %s23, 1
    %p161 = por %p159, %p160
    %p163 = scmp.ne.s32.totalorder %s148, %s162
    %p164 = scmp.eq.s32.totalorder %s23, 0
    %p165 = por %p163, %p164
    %s167 = sadd.s32 %s166, 1
    %p170 = scmp.eq.s32.totalorder %s17, 1
    %p171 = scmp.ne.s32.totalorder %s166, %s168
    %p172 = scmp.eq.s32.totalorder %s17, 0
    %p173 = por %p171, %p172
    %p174 = scmp.ne.s32.totalorder %s166, %s168
    %p175 = scmp.eq.s32.totalorder %s22, 1
    %p176 = por %p174, %p175
    %p177 = scmp.ne.s32.totalorder %s168, %s169
    %p178 = scmp.eq.s32.totalorder %s22, 0
    %p179 = por %p177, %p178
    %p180 = scmp.ne.s32.totalorder %s168, %s169
    %p181 = scmp.eq.s32.totalorder %s23, 1
    %p182 = por %p180, %p181
    %p184 = scmp.ne.s32.totalorder %s169, %s183
    %p185 = scmp.eq.s32.totalorder %s23, 0
    %p186 = por %p184, %p185
    %s188 = sadd.s32 %s187, 1
    %p191 = scmp.eq.s32.totalorder %s17, 1
    %p192 = scmp.ne.s32.totalorder %s187, %s189
    %p193 = scmp.eq.s32.totalorder %s17, 0
    %p194 = por %p192, %p193
    %p195 = scmp.ne.s32.totalorder %s187, %s189
    %p196 = scmp.eq.s32.totalorder %s22, 1
    %p197 = por %p195, %p196
    %p198 = scmp.ne.s32.totalorder %s189, %s190
    %p199 = scmp.eq.s32.totalorder %s22, 0
    %p200 = por %p198, %p199
    %p201 = scmp.ne.s32.totalorder %s189, %s190
    %p202 = scmp.eq.s32.totalorder %s23, 1
    %p203 = por %p201, %p202
    %p205 = scmp.ne.s32.totalorder %s190, %s204
    %p206 = scmp.eq.s32.totalorder %s23, 0
    %p207 = por %p205, %p206
    %s209 = sadd.s32 %s208, 1
    %p212 = scmp.eq.s32.totalorder %s17, 1
    %p213 = scmp.ne.s32.totalorder %s208, %s210
    %p214 = scmp.eq.s32.totalorder %s17, 0
    %p215 = por %p213, %p214
    %p216 = scmp.ne.s32.totalorder %s208, %s210
    %p217 = scmp.eq.s32.totalorder %s22, 1
    %p218 = por %p216, %p217
    %p219 = scmp.ne.s32.totalorder %s210, %s211
    %p220 = scmp.eq.s32.totalorder %s22, 0
    %p221 = por %p219, %p220
    %p222 = scmp.ne.s32.totalorder %s210, %s211
    %p223 = scmp.eq.s32.totalorder %s23, 1
    %p224 = por %p222, %p223
    %p226 = scmp.ne.s32.totalorder %s211, %s225
    %p227 = scmp.eq.s32.totalorder %s23, 0
    %p228 = por %p226, %p227
    %s230 = sadd.s32 %s229, 1
    %p233 = scmp.eq.s32.totalorder %s17, 1
    %p234 = scmp.ne.s32.totalorder %s229, %s231
    %p235 = scmp.eq.s32.totalorder %s17, 0
    %p236 = por %p234, %p235
    %p237 = scmp.ne.s32.totalorder %s229, %s231
    %p238 = scmp.eq.s32.totalorder %s22, 1
    %p239 = por %p237, %p238
    %p240 = scmp.ne.s32.totalorder %s231, %s232
    %p241 = scmp.eq.s32.totalorder %s22, 0
    %p242 = por %p240, %p241
    %p243 = scmp.ne.s32.totalorder %s231, %s232
    %p244 = scmp.eq.s32.totalorder %s23, 1
    %p245 = por %p243, %p244
    %p247 = scmp.ne.s32.totalorder %s232, %s246
    %p248 = scmp.eq.s32.totalorder %s23, 0
    %p249 = por %p247, %p248
    %s251 = sadd.s32 %s250, 1
    %p254 = scmp.eq.s32.totalorder %s17, 1
    %p255 = scmp.ne.s32.totalorder %s250, %s252
    %p256 = scmp.eq.s32.totalorder %s17, 0
    %p257 = por %p255, %p256
    %p258 = scmp.ne.s32.totalorder %s250, %s252
    %p259 = scmp.eq.s32.totalorder %s22, 1
    %p260 = por %p258, %p259
    %p261 = scmp.ne.s32.totalorder %s252, %s253
    %p262 = scmp.eq.s32.totalorder %s22, 0
    %p263 = por %p261, %p262
    %p264 = scmp.ne.s32.totalorder %s252, %s253
    %p265 = scmp.eq.s32.totalorder %s23, 1
    %p266 = por %p264, %p265
    %p268 = scmp.ne.s32.totalorder %s253, %s267
    %p269 = scmp.eq.s32.totalorder %s23, 0
    %p270 = por %p268, %p269
    %s271 = ssub.s32 %s17, %s24
    %p272 = scmp.eq.s32.totalorder %s271, 0
    %s274 = sadd.s32 %s273, 1
    %s275 = scalar_select %p272, %s273, %s274
    %p278 = pneg %p272
    %p279 = scmp.eq.s32.totalorder %s17, 1
    %p280 = por %p278, %p279
    %p281 = scmp.ne.s32.totalorder %s273, %s276
    %p282 = scmp.eq.s32.totalorder %s17, 0
    %p283 = por %p281, %p282
    %p284 = scmp.ne.s32.totalorder %s273, %s276
    %p285 = scmp.eq.s32.totalorder %s22, 1
    %p286 = por %p284, %p285
    %p287 = scmp.ne.s32.totalorder %s276, %s277
    %p288 = scmp.eq.s32.totalorder %s22, 0
    %p289 = por %p287, %p288
    %p290 = scmp.ne.s32.totalorder %s276, %s277
    %p291 = scmp.eq.s32.totalorder %s23, 1
    %p292 = por %p290, %p291
    %p294 = scmp.ne.s32.totalorder %s277, %s293
    %p295 = scmp.eq.s32.totalorder %s23, 0
    %p296 = por %p294, %p295
    %p297 = scmp.le.s32.totalorder 1, %s17
    %p298 = scmp.lt.s32.totalorder %s17, 3
    %p299 = pnand %p297, %p298
    %p300 = pneg %p299
    // Predicated region
    $region9: #{decoder_layer.4} parent=5 // pred_check
      _
    $region10: #{decoder_layer.4} parent=5 // pred_check_branch
      %302 = sbr.rel (%p299) target = $region12
    $region11: #{decoder_layer.4} parent=5 // pred_region
      %s303 = ssub.s32 %s17, 1
      // Predicated region
      $region13: #{decoder_layer.4} parent=11 // pred_check
        %p304 = pneg %p116
      $region14: #{decoder_layer.4} parent=11 // pred_check_branch
        %306 = sbr.rel (%p304) target = $region16
      $region15: #{decoder_layer.4} parent=11 // pred_region
        _
      $region16: #{decoder_layer.4} parent=11 // pred_fallthru
        _
      // Predicated region
      $region17: #{decoder_layer.4} parent=11 // pred_check
        %p307 = pneg %p137
      $region18: #{decoder_layer.4} parent=11 // pred_check_branch
        %309 = sbr.rel (%p307) target = $region20
      $region19: #{decoder_layer.4} parent=11 // pred_region
        _
      $region20: #{decoder_layer.4} parent=11 // pred_fallthru
        _
      // Predicated region
      $region21: #{decoder_layer.4} parent=11 // pred_check
        %p310 = pneg %p158
      $region22: #{decoder_layer.4} parent=11 // pred_check_branch
        %312 = sbr.rel (%p310) target = $region24
      $region23: #{decoder_layer.4} parent=11 // pred_region
        _
      $region24: #{decoder_layer.4} parent=11 // pred_fallthru
        _
      // Predicated region
      $region25: #{decoder_layer.4} parent=11 // pred_check
        %p313 = pneg %p179
      $region26: #{decoder_layer.4} parent=11 // pred_check_branch
        %315 = sbr.rel (%p313) target = $region28
      $region27: #{decoder_layer.4} parent=11 // pred_region
        _
      $region28: #{decoder_layer.4} parent=11 // pred_fallthru
        _
      // Predicated region
      $region29: #{decoder_layer.4} parent=11 // pred_check
        %p316 = pneg %p200
      $region30: #{decoder_layer.4} parent=11 // pred_check_branch
        %318 = sbr.rel (%p316) target = $region32
      $region31: #{decoder_layer.4} parent=11 // pred_region
        _
      $region32: #{decoder_layer.4} parent=11 // pred_fallthru
        _
      // Predicated region
      $region33: #{decoder_layer.4} parent=11 // pred_check
        %p319 = pneg %p221
      $region34: #{decoder_layer.4} parent=11 // pred_check_branch
        %321 = sbr.rel (%p319) target = $region36
      $region35: #{decoder_layer.4} parent=11 // pred_region
        _
      $region36: #{decoder_layer.4} parent=11 // pred_fallthru
        _
      // Predicated region
      $region37: #{decoder_layer.4} parent=11 // pred_check
        %p322 = pneg %p242
      $region38: #{decoder_layer.4} parent=11 // pred_check_branch
        %324 = sbr.rel (%p322) target = $region40
      $region39: #{decoder_layer.4} parent=11 // pred_region
        _
      $region40: #{decoder_layer.4} parent=11 // pred_fallthru
        _
      // Predicated region
      $region41: #{decoder_layer.4} parent=11 // pred_check
        %p325 = pneg %p263
      $region42: #{decoder_layer.4} parent=11 // pred_check_branch
        %327 = sbr.rel (%p325) target = $region44
      $region43: #{decoder_layer.4} parent=11 // pred_region
        _
      $region44: #{decoder_layer.4} parent=11 // pred_fallthru
        _
    $region12: #{decoder_layer.4} parent=5 // pred_fallthru
      _
    %p328 = scmp.lt.s32.totalorder %s17, 2
    // Predicated region
    $region45: #{decoder_layer.4} parent=5 // pred_check
      %p329 = pneg %p328
    $region46: #{decoder_layer.4} parent=5 // pred_check_branch
      %331 = sbr.rel (%p329) target = $region48
    $region47: #{decoder_layer.4} parent=5 // pred_region
      // Predicated region
      $region49: #{decoder_layer.4} parent=47 // pred_check
        %p332 = pneg %p37
      $region50: #{decoder_layer.4} parent=47 // pred_check_branch
        %334 = sbr.rel (%p332) target = $region52
      $region51: #{decoder_layer.4} parent=47 // pred_region
        %p335 = scmp.lt.s32.totalorder %s17, 1
        %s336 = scalar_select %p335, %s17, 1
        %s337 = smul.addr %s336, 8
        %s338 = scalar_lea.vmem %s0, %s337
      $region52: #{decoder_layer.4} parent=47 // pred_fallthru
        _
      // Predicated region
      $region53: #{decoder_layer.4} parent=47 // pred_check
        %p339 = pneg %p63
      $region54: #{decoder_layer.4} parent=47 // pred_check_branch
        %341 = sbr.rel (%p339) target = $region56
      $region55: #{decoder_layer.4} parent=47 // pred_region
        %p342 = scmp.lt.s32.totalorder %s17, 1
        %s343 = scalar_select %p342, %s17, 1
        %s344 = smul.addr %s343, 8
        %s345 = scalar_lea.vmem %s1, %s344
      $region56: #{decoder_layer.4} parent=47 // pred_fallthru
        _
      // Predicated region
      $region57: #{decoder_layer.4} parent=47 // pred_check
        %p346 = pneg %p89
      $region58: #{decoder_layer.4} parent=47 // pred_check_branch
        %348 = sbr.rel (%p346) target = $region60
      $region59: #{decoder_layer.4} parent=47 // pred_region
        %p349 = scmp.lt.s32.totalorder %s17, 1
        %s350 = scalar_select %p349, %s17, 1
        %s351 = smul.addr %s350, 8
        %s352 = scalar_lea.vmem %s2, %s351
      $region60: #{decoder_layer.4} parent=47 // pred_fallthru
        _
    $region48: #{decoder_layer.4} parent=5 // pred_fallthru
      _
    %p353 = scmp.le.s32.totalorder 1, %s17
    %p354 = scmp.lt.s32.totalorder %s17, 3
    %p355 = pnand %p353, %p354
    %p356 = pneg %p355
    // Predicated region
    $region61: #{decoder_layer.4} parent=5 // pred_check
      _
    $region62: #{decoder_layer.4} parent=5 // pred_check_branch
      %358 = sbr.rel (%p355) target = $region64
    $region63: #{decoder_layer.4} parent=5 // pred_region
      %s359 = ssub.s32 %s17, 1
      %p360 = scmp.lt.s32.totalorder %s22, 1
      %s361 = scalar_select %p360, %s22, 1
      %s362 = smul.addr %s361, 8
      %s363 = scalar_lea.vmem %s0, %s362
      %p364 = pneg %p43
      %p365 = pneg %p40
      %p366 = scmp.lt.s32.totalorder %s22, 1
      %s367 = scalar_select %p366, %s22, 1
      %s368 = smul.addr %s367, 8
      %s369 = scalar_lea.vmem %s1, %s368
      %p370 = pneg %p69
      %p371 = pneg %p66
      %p372 = scmp.lt.s32.totalorder %s22, 1
      %s373 = scalar_select %p372, %s22, 1
      %s374 = smul.addr %s373, 8
      %s375 = scalar_lea.vmem %s2, %s374
      %p376 = pneg %p95
      %p377 = pneg %p92
      %p378 = pneg %p116
      %p379 = pneg %p113
      %p380 = pneg %p137
      %p381 = pneg %p134
      %p382 = pneg %p158
      %p383 = pneg %p155
      %p384 = pneg %p179
      %p385 = pneg %p176
      %p386 = pneg %p200
      %p387 = pneg %p197
      %p388 = pneg %p221
      %p389 = pneg %p218
      %p390 = pneg %p242
      %p391 = pneg %p239
      %p392 = pneg %p263
      %p393 = pneg %p260
      %p394 = pneg %p289
      %p395 = pneg %p286
      %p396 = scmp.lt.s32.totalorder %s22, 1
      %s397 = scalar_select %p396, %s22, 1
      %s398 = smul.addr %s397, 8
      %s399 = scalar_lea.vmem %s11, %s398
      %p400 = scmp.lt.s32.totalorder %s22, 1
      %s401 = scalar_select %p400, %s22, 1
      %s402 = smul.addr %s401, 8
      %s403 = scalar_lea.vmem %s0, %s402
      %p404 = scmp.lt.s32.totalorder %s22, 1
      %s405 = scalar_select %p404, %s22, 1
      %s406 = smul.addr %s405, 8
      %s407 = scalar_lea.vmem %s1, %s406
      %p408 = scmp.lt.s32.totalorder %s22, 1
      %s409 = scalar_select %p408, %s22, 1
      %s410 = smul.addr %s409, 8
      %s411 = scalar_lea.vmem %s2, %s410
      %p412 = scmp.lt.s32.totalorder %s22, 1
      %s413 = scalar_select %p412, %s22, 1
      %s414 = smul.addr %s413, 8
      %s415 = scalar_lea.vmem %s11, %s414
      %v417 = vld [vmem:[%s403] sm:$0xff]
      %v418 = vld [vmem:[%s407] sm:$0xff]
      %v419 = vld [vmem:[%s3] sm:$0x1]
      %v420 = vld [vmem:[%s4] sm:$0x1]
      %vm421 = vcmask 261120
      %v422 = vsel %vm421, %v417, 0.0
      %423 = vadd.xlane.f32.xlu0 %v422
      %v424 = vpop.xlane.xlu0 %423
      %v425 = vrcp.pop 32.0
      %v426 = vmul.f32 %v424, %v425
      %v427 = vmul.f32 %v417, %v417
      %v428 = vsel %vm421, %v427, 0.0
      %429 = vadd.xlane.f32.xlu0 %v428
      %v430 = vpop.xlane.xlu0 %429
      %v431 = vmul.f32 %v426, 32.0
      %v432 = vmul.f32 %v431, %v426
      %v433 = vsub.f32 %v430, %v432
      %v434 = vrcp.pop 31.0
      %v435 = vmul.f32 %v433, %v434
      %v436 = vmax.f32 %v435, 0.0
      %v437 = vrsqrt.pop %v436
      %v438 = vmul.f32 %v436, %v437
      %vm439 = vcmp.eq.f32.partialorder %v436, inf
      %v440 = vsel %vm439, %v436, %v438
      %vm441 = vcmp.eq.f32.partialorder %v436, 0.0
      %v442 = vand.u32 %v436, 2147483648
      %v443 = vsel %vm441, %v442, %v440
      %v444 = vsub.f32 %v417, %v426
      %v446 = vlaneseq
      %v447 = vshrl.u32 %v446, 7
      %v448 = vsub.s32 0, %v447
      %v449 = vrot.slane %v419, %v448
      %v451 = vmul.f32 %v449, %v444
      %v452 = vadd.f32 %v443, 1e-06
      %v453 = vrcp.pop %v452
      %v454 = vmul.f32 %v451, %v453
      %v456 = vlaneseq
      %v457 = vshrl.u32 %v456, 7
      %v458 = vsub.s32 0, %v457
      %v459 = vrot.slane %v420, %v458
      %v461 = vadd.f32 %v454, %v459
      %v462 = vpack.c.bf16 %v461, %v461
      %v463 = vld [vmem:[%s5] sm:$0xf]
      %v464 = vld [vmem:[%s5 + $0x4] sm:$0xf]
      %v465 = vld [vmem:[%s5 + $0x8] sm:$0xf]
      %v466 = vld [vmem:[%s5 + $0xc] sm:$0xf]
      %v467 = vld [vmem:[%s6] sm:$0x1]
      %v469 = vlaneseq
      %v470 = vshrl.u32 %v469, 7
      %v471 = vsub.s32 0, %v470
      %v472 = vrot.slane %v467, %v471
      %v478 = vunpack.c.l.b16 %v463
      %v479 = vunpack.c.l.b16 %v464
      %v480 = vunpack.c.l.b16 %v465
      %v481 = vunpack.c.l.b16 %v466
      %v482 = vpack.c.b16 %v479, %v478
      %v483 = vpack.c.b16 %v481, %v480
      %v487 = vsel %vm421, %v462, 0
      %489 = vmatprep.subr.bf16.mxu0 0
      %490 = vmatpush1.bf16.msra.mxu0 0
      %491 = vmatprep.subr.bf16.mxu0 0
      %492 = vmatpush1.bf16.msra.mxu0 0
      %493 = vmatprep.subr.bf16.mxu0 0
      %494 = vmatpush1.bf16.msra.mxu0 0
      %495 = vmatprep.subr.bf16.mxu0 0
      %496 = vmatpush1.bf16.msra.mxu0 0
      %497 = vmatprep.subr.bf16.mxu0 0
      %498 = vmatpush1.bf16.msra.mxu0 0
      %499 = vmatprep.subr.bf16.mxu0 0
      %500 = vmatpush1.bf16.msra.mxu0 0
      %501 = vmatprep.subr.bf16.mxu0 0
      %502 = vmatpush1.bf16.msra.mxu0 %v483
      %503 = vmatprep.subr.bf16.mxu0 0
      %504 = vmatpush1.bf16.msra.mxu0 %v482
      %505 = vmatprep.subr.bf16.mxu0 0
      %506 = vmatpush2.bf16.msra.mxu0 0
      %507 = vmatprep.subr.bf16.mxu0 0
      %508 = vmatpush2.bf16.msra.mxu0 0
      %509 = vmatprep.subr.bf16.mxu0 0
      %510 = vmatpush2.bf16.msra.mxu0 0
      %511 = vmatprep.subr.bf16.mxu0 0
      %512 = vmatpush2.bf16.msra.mxu0 0
      %513 = vmatprep.subr.bf16.mxu0 0
      %514 = vmatpush2.bf16.msra.mxu0 0
      %515 = vmatprep.subr.bf16.mxu0 0
      %516 = vmatpush2.bf16.msra.mxu0 0
      %517 = vmatprep.subr.bf16.mxu0 0
      %518 = vmatpush2.bf16.msra.mxu0 0
      %519 = vmatprep.subr.bf16.mxu0 0
      %520 = vmatpush2.bf16.msra.mxu0 0
      %521 = vmatprep.mubr.bf16.mxu0 0
      %522 = vmatmul.mubr.bf16.gmra.mxu0 %v487
      %v523 = vpop.f32.mrf.mxu0
      %v524 = vadd.f32 %v472, %v523
      %v525 = vpop.f32.mrf.mxu0
      %v526 = vpop.f32.mrf.mxu0
      %v527 = vpop.f32.mrf.mxu0
      %528 = vdwg.mxu0
      %v529 = vmul.f32 %v524, 0.35355338
      %v530 = vpack.c.bf16 %v418, %v418
      %v531 = vld [vmem:[%s7] sm:$0xf]
      %v532 = vld [vmem:[%s7 + $0x4] sm:$0xf]
      %v533 = vld [vmem:[%s7 + $0x8] sm:$0xf]
      %v534 = vld [vmem:[%s7 + $0xc] sm:$0xf]
      %v535 = vld [vmem:[%s8] sm:$0x1]
      %v537 = vlaneseq
      %v538 = vshrl.u32 %v537, 7
      %v539 = vsub.s32 0, %v538
      %v540 = vrot.slane %v535, %v539
      %v546 = vunpack.c.l.b16 %v531
      %v547 = vunpack.c.l.b16 %v532
      %v548 = vunpack.c.l.b16 %v533
      %v549 = vunpack.c.l.b16 %v534
      %v550 = vpack.c.b16 %v547, %v546
      %v551 = vpack.c.b16 %v549, %v548
      %v555 = vsel %vm421, %v530, 0
      %557 = vmatprep.subr.bf16.mxu0 0
      %558 = vmatpush1.bf16.msra.mxu0 0
      %559 = vmatprep.subr.bf16.mxu0 0
      %560 = vmatpush1.bf16.msra.mxu0 0
      %561 = vmatprep.subr.bf16.mxu0 0
      %562 = vmatpush1.bf16.msra.mxu0 0
      %563 = vmatprep.subr.bf16.mxu0 0
      %564 = vmatpush1.bf16.msra.mxu0 0
      %565 = vmatprep.subr.bf16.mxu0 0
      %566 = vmatpush1.bf16.msra.mxu0 0
      %567 = vmatprep.subr.bf16.mxu0 0
      %568 = vmatpush1.bf16.msra.mxu0 0
      %569 = vmatprep.subr.bf16.mxu0 0
      %570 = vmatpush1.bf16.msra.mxu0 %v551
      %571 = vmatprep.subr.bf16.mxu0 0
      %572 = vmatpush1.bf16.msra.mxu0 %v550
      %573 = vmatprep.subr.bf16.mxu0 0
      %574 = vmatpush2.bf16.msra.mxu0 0
      %575 = vmatprep.subr.bf16.mxu0 0
      %576 = vmatpush2.bf16.msra.mxu0 0
      %577 = vmatprep.subr.bf16.mxu0 0
      %578 = vmatpush2.bf16.msra.mxu0 0
      %579 = vmatprep.subr.bf16.mxu0 0
      %580 = vmatpush2.bf16.msra.mxu0 0
      %581 = vmatprep.subr.bf16.mxu0 0
      %582 = vmatpush2.bf16.msra.mxu0 0
      %583 = vmatprep.subr.bf16.mxu0 0
      %584 = vmatpush2.bf16.msra.mxu0 0
      %585 = vmatprep.subr.bf16.mxu0 0
      %586 = vmatpush2.bf16.msra.mxu0 0
      %587 = vmatprep.subr.bf16.mxu0 0
      %588 = vmatpush2.bf16.msra.mxu0 0
      %589 = vmatprep.mubr.bf16.mxu0 0
      %590 = vmatmul.mubr.bf16.gmra.mxu0 %v555
      %v591 = vpop.f32.mrf.mxu0
      %v592 = vadd.f32 %v540, %v591
      %v593 = vpop.f32.mrf.mxu0
      %v594 = vpop.f32.mrf.mxu0
      %v595 = vpop.f32.mrf.mxu0
      %596 = vdwg.mxu0
      %v597 = vld [vmem:[%s411] sm:$0xff]
      %v598 = vld [vmem:[%s9] sm:$0xf]
      %v599 = vld [vmem:[%s9 + $0x4] sm:$0xf]
      %v600 = vld [vmem:[%s9 + $0x8] sm:$0xf]
      %v601 = vld [vmem:[%s9 + $0xc] sm:$0xf]
      %v602 = vpack.c.bf16 %v529, %v529
      %v603 = vpack.c.bf16 %v592, %v592
      %vm604 = vcmask 64512
      %v606 = vsel %vm604, %v602, 0
      %v609 = vsel %vm604, %v603, 0
      %611 = vmatprep.subr.bf16.mxu0 0
      %612 = vmatpush1.bf16.xpose.msra.mxu0 0
      %613 = vmatprep.subr.bf16.mxu0 0
      %614 = vmatpush1.bf16.xpose.msra.mxu0 0
      %615 = vmatprep.subr.bf16.mxu0 0
      %616 = vmatpush1.bf16.xpose.msra.mxu0 0
      %617 = vmatprep.subr.bf16.mxu0 0
      %618 = vmatpush1.bf16.xpose.msra.mxu0 0
      %619 = vmatprep.subr.bf16.mxu0 0
      %620 = vmatpush1.bf16.xpose.msra.mxu0 0
      %621 = vmatprep.subr.bf16.mxu0 0
      %622 = vmatpush1.bf16.xpose.msra.mxu0 0
      %623 = vmatprep.subr.bf16.mxu0 0
      %624 = vmatpush1.bf16.xpose.msra.mxu0 0
      %625 = vmatprep.subr.bf16.mxu0 0
      %626 = vmatpush1.bf16.xpose.msra.mxu0 %v609
      %627 = vmatprep.subr.bf16.mxu0 0
      %628 = vmatpush2.bf16.xpose.msra.mxu0 0
      %629 = vmatprep.subr.bf16.mxu0 0
      %630 = vmatpush2.bf16.xpose.msra.mxu0 0
      %631 = vmatprep.subr.bf16.mxu0 0
      %632 = vmatpush2.bf16.xpose.msra.mxu0 0
      %633 = vmatprep.subr.bf16.mxu0 0
      %634 = vmatpush2.bf16.xpose.msra.mxu0 0
      %635 = vmatprep.subr.bf16.mxu0 0
      %636 = vmatpush2.bf16.xpose.msra.mxu0 0
      %637 = vmatprep.subr.bf16.mxu0 0
      %638 = vmatpush2.bf16.xpose.msra.mxu0 0
      %639 = vmatprep.subr.bf16.mxu0 0
      %640 = vmatpush2.bf16.xpose.msra.mxu0 0
      %641 = vmatprep.subr.bf16.mxu0 0
      %642 = vmatpush2.bf16.xpose.msra.mxu0 0
      %643 = vmatprep.mubr.bf16.mxu0 0
      %644 = vmatmul.mubr.bf16.gmra.mxu0 %v606
      %v645 = vpop.f32.mrf.mxu0
      %v646 = vadd.f32 %v597, %v645
      %v647 = vpop.f32.mrf.mxu0
      %v648 = vpop.f32.mrf.mxu0
      %v649 = vpop.f32.mrf.mxu0
      %650 = vdwg.mxu0
      %v651 = vsel %vm604, %v646, -inf
      %652 = vmax.xlane.f32.xlu0 %v651
      %v653 = vpop.xlane.xlu0 %652
      %v654 = vsub.f32 %v646, %v653
      %v655 = vmul.f32 %v654, 1.442695
      %v656 = vpow.pop %v655
      %v657 = vsel %vm604, %v656, 0.0
      %658 = vadd.xlane.f32.xlu0 %v657
      %v659 = vpop.xlane.xlu0 %658
      %v660 = vrcp.pop %v659
      %v661 = vmul.f32 %v656, %v660
      %v662 = vpack.c.bf16 %v661, %v661
      %664 = vrot.lane.b32.xlu0 %v603, 96
      %v665 = vpop.permute.xlu0 %664
      %v667 = vsel %vm604, %v662, 0
      %vm669 = vcmask 1043456
      %v671 = vsel %vm669, %v665, 0
      %673 = vmatprep.subr.bf16.mxu0 0
      %674 = vmatpush1.bf16.msra.mxu0 0
      %675 = vmatprep.subr.bf16.mxu0 0
      %676 = vmatpush1.bf16.msra.mxu0 0
      %677 = vmatprep.subr.bf16.mxu0 0
      %678 = vmatpush1.bf16.msra.mxu0 0
      %679 = vmatprep.subr.bf16.mxu0 0
      %680 = vmatpush1.bf16.msra.mxu0 0
      %681 = vmatprep.subr.bf16.mxu0 0
      %682 = vmatpush1.bf16.msra.mxu0 0
      %683 = vmatprep.subr.bf16.mxu0 0
      %684 = vmatpush1.bf16.msra.mxu0 0
      %685 = vmatprep.subr.bf16.mxu0 0
      %686 = vmatpush1.bf16.msra.mxu0 0
      %687 = vmatprep.subr.bf16.mxu0 0
      %688 = vmatpush1.bf16.msra.mxu0 %v671
      %689 = vmatprep.subr.bf16.mxu0 0
      %690 = vmatpush2.bf16.msra.mxu0 0
      %691 = vmatprep.subr.bf16.mxu0 0
      %692 = vmatpush2.bf16.msra.mxu0 0
      %693 = vmatprep.subr.bf16.mxu0 0
      %694 = vmatpush2.bf16.msra.mxu0 0
      %695 = vmatprep.subr.bf16.mxu0 0
      %696 = vmatpush2.bf16.msra.mxu0 0
      %697 = vmatprep.subr.bf16.mxu0 0
      %698 = vmatpush2.bf16.msra.mxu0 0
      %699 = vmatprep.subr.bf16.mxu0 0
      %700 = vmatpush2.bf16.msra.mxu0 0
      %701 = vmatprep.subr.bf16.mxu0 0
      %702 = vmatpush2.bf16.msra.mxu0 0
      %703 = vmatprep.subr.bf16.mxu0 0
      %704 = vmatpush2.bf16.msra.mxu0 0
      %705 = vmatprep.mubr.bf16.mxu0 0
      %706 = vmatmul.mubr.bf16.gmra.mxu0 %v667
      %v707 = vpop.f32.mrf.mxu0
      %v708 = vadd.f32 0.0, %v707
      %v709 = vpop.f32.mrf.mxu0
      %v710 = vpop.f32.mrf.mxu0
      %v711 = vpop.f32.mrf.mxu0
      %712 = vdwg.mxu0
      %v713 = vpack.c.bf16 %v708, %v708
      %715 = vrot.lane.b32.xlu0 %v602, 120
      %v716 = vpop.permute.xlu0 %715
      %717 = vrot.lane.b32.xlu0 %v603, 120
      %v718 = vpop.permute.xlu0 %717
      %v720 = vsel %vm604, %v716, 0
      %v723 = vsel %vm604, %v718, 0
      %725 = vmatprep.subr.bf16.mxu0 0
      %726 = vmatpush1.bf16.xpose.msra.mxu0 0
      %727 = vmatprep.subr.bf16.mxu0 0
      %728 = vmatpush1.bf16.xpose.msra.mxu0 0
      %729 = vmatprep.subr.bf16.mxu0 0
      %730 = vmatpush1.bf16.xpose.msra.mxu0 0
      %731 = vmatprep.subr.bf16.mxu0 0
      %732 = vmatpush1.bf16.xpose.msra.mxu0 0
      %733 = vmatprep.subr.bf16.mxu0 0
      %734 = vmatpush1.bf16.xpose.msra.mxu0 0
      %735 = vmatprep.subr.bf16.mxu0 0
      %736 = vmatpush1.bf16.xpose.msra.mxu0 0
      %737 = vmatprep.subr.bf16.mxu0 0
      %738 = vmatpush1.bf16.xpose.msra.mxu0 0
      %739 = vmatprep.subr.bf16.mxu0 0
      %740 = vmatpush1.bf16.xpose.msra.mxu0 %v723
      %741 = vmatprep.subr.bf16.mxu0 0
      %742 = vmatpush2.bf16.xpose.msra.mxu0 0
      %743 = vmatprep.subr.bf16.mxu0 0
      %744 = vmatpush2.bf16.xpose.msra.mxu0 0
      %745 = vmatprep.subr.bf16.mxu0 0
      %746 = vmatpush2.bf16.xpose.msra.mxu0 0
      %747 = vmatprep.subr.bf16.mxu0 0
      %748 = vmatpush2.bf16.xpose.msra.mxu0 0
      %749 = vmatprep.subr.bf16.mxu0 0
      %750 = vmatpush2.bf16.xpose.msra.mxu0 0
      %751 = vmatprep.subr.bf16.mxu0 0
      %752 = vmatpush2.bf16.xpose.msra.mxu0 0
      %753 = vmatprep.subr.bf16.mxu0 0
      %754 = vmatpush2.bf16.xpose.msra.mxu0 0
      %755 = vmatprep.subr.bf16.mxu0 0
      %756 = vmatpush2.bf16.xpose.msra.mxu0 0
      %757 = vmatprep.mubr.bf16.mxu0 0
      %758 = vmatmul.mubr.bf16.gmra.mxu0 %v720
      %v759 = vpop.f32.mrf.mxu0
      %v760 = vadd.f32 %v597, %v759
      %v761 = vpop.f32.mrf.mxu0
      %v762 = vpop.f32.mrf.mxu0
      %v763 = vpop.f32.mrf.mxu0
      %764 = vdwg.mxu0
      %v765 = vsel %vm604, %v760, -inf
      %766 = vmax.xlane.f32.xlu0 %v765
      %v767 = vpop.xlane.xlu0 %766
      %v768 = vsub.f32 %v760, %v767
      %v769 = vmul.f32 %v768, 1.442695
      %v770 = vpow.pop %v769
      %v771 = vsel %vm604, %v770, 0.0
      %772 = vadd.xlane.f32.xlu0 %v771
      %v773 = vpop.xlane.xlu0 %772
      %v774 = vrcp.pop %v773
      %v775 = vmul.f32 %v770, %v774
      %v776 = vpack.c.bf16 %v775, %v775
      %777 = vrot.lane.b32.xlu0 %v603, 88
      %v778 = vpop.permute.xlu0 %777
      %v780 = vsel %vm604, %v776, 0
      %v783 = vsel %vm669, %v778, 0
      %785 = vmatprep.subr.bf16.mxu0 0
      %786 = vmatpush1.bf16.msra.mxu0 0
      %787 = vmatprep.subr.bf16.mxu0 0
      %788 = vmatpush1.bf16.msra.mxu0 0
      %789 = vmatprep.subr.bf16.mxu0 0
      %790 = vmatpush1.bf16.msra.mxu0 0
      %791 = vmatprep.subr.bf16.mxu0 0
      %792 = vmatpush1.bf16.msra.mxu0 0
      %793 = vmatprep.subr.bf16.mxu0 0
      %794 = vmatpush1.bf16.msra.mxu0 0
      %795 = vmatprep.subr.bf16.mxu0 0
      %796 = vmatpush1.bf16.msra.mxu0 0
      %797 = vmatprep.subr.bf16.mxu0 0
      %798 = vmatpush1.bf16.msra.mxu0 0
      %799 = vmatprep.subr.bf16.mxu0 0
      %800 = vmatpush1.bf16.msra.mxu0 %v783
      %801 = vmatprep.subr.bf16.mxu0 0
      %802 = vmatpush2.bf16.msra.mxu0 0
      %803 = vmatprep.subr.bf16.mxu0 0
      %804 = vmatpush2.bf16.msra.mxu0 0
      %805 = vmatprep.subr.bf16.mxu0 0
      %806 = vmatpush2.bf16.msra.mxu0 0
      %807 = vmatprep.subr.bf16.mxu0 0
      %808 = vmatpush2.bf16.msra.mxu0 0
      %809 = vmatprep.subr.bf16.mxu0 0
      %810 = vmatpush2.bf16.msra.mxu0 0
      %811 = vmatprep.subr.bf16.mxu0 0
      %812 = vmatpush2.bf16.msra.mxu0 0
      %813 = vmatprep.subr.bf16.mxu0 0
      %814 = vmatpush2.bf16.msra.mxu0 0
      %815 = vmatprep.subr.bf16.mxu0 0
      %816 = vmatpush2.bf16.msra.mxu0 0
      %817 = vmatprep.mubr.bf16.mxu0 0
      %818 = vmatmul.mubr.bf16.gmra.mxu0 %v780
      %v819 = vpop.f32.mrf.mxu0
      %v820 = vadd.f32 0.0, %v819
      %v821 = vpop.f32.mrf.mxu0
      %v822 = vpop.f32.mrf.mxu0
      %v823 = vpop.f32.mrf.mxu0
      %824 = vdwg.mxu0
      %v825 = vpack.c.bf16 %v820, %v820
      %v827 = vsel %vm604, %v825, 0
      %v830 = vsel %vm669, %v599, 0
      %832 = vmatprep.subr.bf16.mxu0 0
      %833 = vmatpush1.bf16.msra.mxu0 0
      %834 = vmatprep.subr.bf16.mxu0 0
      %835 = vmatpush1.bf16.msra.mxu0 0
      %836 = vmatprep.subr.bf16.mxu0 0
      %837 = vmatpush1.bf16.msra.mxu0 0
      %838 = vmatprep.subr.bf16.mxu0 0
      %839 = vmatpush1.bf16.msra.mxu0 0
      %840 = vmatprep.subr.bf16.mxu0 0
      %841 = vmatpush1.bf16.msra.mxu0 0
      %842 = vmatprep.subr.bf16.mxu0 0
      %843 = vmatpush1.bf16.msra.mxu0 0
      %844 = vmatprep.subr.bf16.mxu0 0
      %845 = vmatpush1.bf16.msra.mxu0 0
      %846 = vmatprep.subr.bf16.mxu0 0
      %847 = vmatpush1.bf16.msra.mxu0 %v830
      %848 = vmatprep.subr.bf16.mxu0 0
      %849 = vmatpush2.bf16.msra.mxu0 0
      %850 = vmatprep.subr.bf16.mxu0 0
      %851 = vmatpush2.bf16.msra.mxu0 0
      %852 = vmatprep.subr.bf16.mxu0 0
      %853 = vmatpush2.bf16.msra.mxu0 0
      %854 = vmatprep.subr.bf16.mxu0 0
      %855 = vmatpush2.bf16.msra.mxu0 0
      %856 = vmatprep.subr.bf16.mxu0 0
      %857 = vmatpush2.bf16.msra.mxu0 0
      %858 = vmatprep.subr.bf16.mxu0 0
      %859 = vmatpush2.bf16.msra.mxu0 0
      %860 = vmatprep.subr.bf16.mxu0 0
      %861 = vmatpush2.bf16.msra.mxu0 0
      %862 = vmatprep.subr.bf16.mxu0 0
      %863 = vmatpush2.bf16.msra.mxu0 0
      %864 = vmatprep.mubr.bf16.mxu0 0
      %865 = vmatmul.mubr.bf16.gmra.mxu0 %v827
      %v866 = vpop.f32.mrf.mxu0
      %v867 = vadd.f32 0.0, %v866
      %v868 = vpop.f32.mrf.mxu0
      %v869 = vpop.f32.mrf.mxu0
      %v870 = vpop.f32.mrf.mxu0
      %871 = vdwg.mxu0
      %v873 = vsel %vm604, %v713, 0
      %v876 = vsel %vm669, %v598, 0
      %878 = vmatprep.subr.bf16.mxu0 0
      %879 = vmatpush1.bf16.msra.mxu0 0
      %880 = vmatprep.subr.bf16.mxu0 0
      %881 = vmatpush1.bf16.msra.mxu0 0
      %882 = vmatprep.subr.bf16.mxu0 0
      %883 = vmatpush1.bf16.msra.mxu0 0
      %884 = vmatprep.subr.bf16.mxu0 0
      %885 = vmatpush1.bf16.msra.mxu0 0
      %886 = vmatprep.subr.bf16.mxu0 0
      %887 = vmatpush1.bf16.msra.mxu0 0
      %888 = vmatprep.subr.bf16.mxu0 0
      %889 = vmatpush1.bf16.msra.mxu0 0
      %890 = vmatprep.subr.bf16.mxu0 0
      %891 = vmatpush1.bf16.msra.mxu0 0
      %892 = vmatprep.subr.bf16.mxu0 0
      %893 = vmatpush1.bf16.msra.mxu0 %v876
      %894 = vmatprep.subr.bf16.mxu0 0
      %895 = vmatpush2.bf16.msra.mxu0 0
      %896 = vmatprep.subr.bf16.mxu0 0
      %897 = vmatpush2.bf16.msra.mxu0 0
      %898 = vmatprep.subr.bf16.mxu0 0
      %899 = vmatpush2.bf16.msra.mxu0 0
      %900 = vmatprep.subr.bf16.mxu0 0
      %901 = vmatpush2.bf16.msra.mxu0 0
      %902 = vmatprep.subr.bf16.mxu0 0
      %903 = vmatpush2.bf16.msra.mxu0 0
      %904 = vmatprep.subr.bf16.mxu0 0
      %905 = vmatpush2.bf16.msra.mxu0 0
      %906 = vmatprep.subr.bf16.mxu0 0
      %907 = vmatpush2.bf16.msra.mxu0 0
      %908 = vmatprep.subr.bf16.mxu0 0
      %909 = vmatpush2.bf16.msra.mxu0 0
      %910 = vmatprep.mubr.bf16.mxu0 0
      %911 = vmatmul.mubr.bf16.gmra.mxu0 %v873
      %v912 = vpop.f32.mrf.mxu0
      %v913 = vadd.f32 %v867, %v912
      %v914 = vpop.f32.mrf.mxu0
      %v915 = vpop.f32.mrf.mxu0
      %v916 = vpop.f32.mrf.mxu0
      %917 = vdwg.mxu0
      %918 = vrot.lane.b32.xlu0 %v602, 112
      %v919 = vpop.permute.xlu0 %918
      %920 = vrot.lane.b32.xlu0 %v603, 112
      %v921 = vpop.permute.xlu0 %920
      %v923 = vsel %vm604, %v919, 0
      %v926 = vsel %vm604, %v921, 0
      %928 = vmatprep.subr.bf16.mxu0 0
      %929 = vmatpush1.bf16.xpose.msra.mxu0 0
      %930 = vmatprep.subr.bf16.mxu0 0
      %931 = vmatpush1.bf16.xpose.msra.mxu0 0
      %932 = vmatprep.subr.bf16.mxu0 0
      %933 = vmatpush1.bf16.xpose.msra.mxu0 0
      %934 = vmatprep.subr.bf16.mxu0 0
      %935 = vmatpush1.bf16.xpose.msra.mxu0 0
      %936 = vmatprep.subr.bf16.mxu0 0
      %937 = vmatpush1.bf16.xpose.msra.mxu0 0
      %938 = vmatprep.subr.bf16.mxu0 0
      %939 = vmatpush1.bf16.xpose.msra.mxu0 0
      %940 = vmatprep.subr.bf16.mxu0 0
      %941 = vmatpush1.bf16.xpose.msra.mxu0 0
      %942 = vmatprep.subr.bf16.mxu0 0
      %943 = vmatpush1.bf16.xpose.msra.mxu0 %v926
      %944 = vmatprep.subr.bf16.mxu0 0
      %945 = vmatpush2.bf16.xpose.msra.mxu0 0
      %946 = vmatprep.subr.bf16.mxu0 0
      %947 = vmatpush2.bf16.xpose.msra.mxu0 0
      %948 = vmatprep.subr.bf16.mxu0 0
      %949 = vmatpush2.bf16.xpose.msra.mxu0 0
      %950 = vmatprep.subr.bf16.mxu0 0
      %951 = vmatpush2.bf16.xpose.msra.mxu0 0
      %952 = vmatprep.subr.bf16.mxu0 0
      %953 = vmatpush2.bf16.xpose.msra.mxu0 0
      %954 = vmatprep.subr.bf16.mxu0 0
      %955 = vmatpush2.bf16.xpose.msra.mxu0 0
      %956 = vmatprep.subr.bf16.mxu0 0
      %957 = vmatpush2.bf16.xpose.msra.mxu0 0
      %958 = vmatprep.subr.bf16.mxu0 0
      %959 = vmatpush2.bf16.xpose.msra.mxu0 0
      %960 = vmatprep.mubr.bf16.mxu0 0
      %961 = vmatmul.mubr.bf16.gmra.mxu0 %v923
      %v962 = vpop.f32.mrf.mxu0
      %v963 = vadd.f32 %v597, %v962
      %v964 = vpop.f32.mrf.mxu0
      %v965 = vpop.f32.mrf.mxu0
      %v966 = vpop.f32.mrf.mxu0
      %967 = vdwg.mxu0
      %v968 = vsel %vm604, %v963, -inf
      %969 = vmax.xlane.f32.xlu0 %v968
      %v970 = vpop.xlane.xlu0 %969
      %v971 = vsub.f32 %v963, %v970
      %v972 = vmul.f32 %v971, 1.442695
      %v973 = vpow.pop %v972
      %v974 = vsel %vm604, %v973, 0.0
      %975 = vadd.xlane.f32.xlu0 %v974
      %v976 = vpop.xlane.xlu0 %975
      %v977 = vrcp.pop %v976
      %v978 = vmul.f32 %v973, %v977
      %v979 = vpack.c.bf16 %v978, %v978
      %980 = vrot.lane.b32.xlu0 %v603, 80
      %v981 = vpop.permute.xlu0 %980
      %v983 = vsel %vm604, %v979, 0
      %v986 = vsel %vm669, %v981, 0
      %988 = vmatprep.subr.bf16.mxu0 0
      %989 = vmatpush1.bf16.msra.mxu0 0
      %990 = vmatprep.subr.bf16.mxu0 0
      %991 = vmatpush1.bf16.msra.mxu0 0
      %992 = vmatprep.subr.bf16.mxu0 0
      %993 = vmatpush1.bf16.msra.mxu0 0
      %994 = vmatprep.subr.bf16.mxu0 0
      %995 = vmatpush1.bf16.msra.mxu0 0
      %996 = vmatprep.subr.bf16.mxu0 0
      %997 = vmatpush1.bf16.msra.mxu0 0
      %998 = vmatprep.subr.bf16.mxu0 0
      %999 = vmatpush1.bf16.msra.mxu0 0
      %1000 = vmatprep.subr.bf16.mxu0 0
      %1001 = vmatpush1.bf16.msra.mxu0 0
      %1002 = vmatprep.subr.bf16.mxu0 0
      %1003 = vmatpush1.bf16.msra.mxu0 %v986
      %1004 = vmatprep.subr.bf16.mxu0 0
      %1005 = vmatpush2.bf16.msra.mxu0 0
      %1006 = vmatprep.subr.bf16.mxu0 0
      %1007 = vmatpush2.bf16.msra.mxu0 0
      %1008 = vmatprep.subr.bf16.mxu0 0
      %1009 = vmatpush2.bf16.msra.mxu0 0
      %1010 = vmatprep.subr.bf16.mxu0 0
      %1011 = vmatpush2.bf16.msra.mxu0 0
      %1012 = vmatprep.subr.bf16.mxu0 0
      %1013 = vmatpush2.bf16.msra.mxu0 0
      %1014 = vmatprep.subr.bf16.mxu0 0
      %1015 = vmatpush2.bf16.msra.mxu0 0
      %1016 = vmatprep.subr.bf16.mxu0 0
      %1017 = vmatpush2.bf16.msra.mxu0 0
      %1018 = vmatprep.subr.bf16.mxu0 0
      %1019 = vmatpush2.bf16.msra.mxu0 0
      %1020 = vmatprep.mubr.bf16.mxu0 0
      %1021 = vmatmul.mubr.bf16.gmra.mxu0 %v983
      %v1022 = vpop.f32.mrf.mxu0
      %v1023 = vadd.f32 0.0, %v1022
      %v1024 = vpop.f32.mrf.mxu0
      %v1025 = vpop.f32.mrf.mxu0
      %v1026 = vpop.f32.mrf.mxu0
      %1027 = vdwg.mxu0
      %v1028 = vpack.c.bf16 %v1023, %v1023
      %v1030 = vsel %vm604, %v1028, 0
      %v1033 = vsel %vm669, %v600, 0
      %1035 = vmatprep.subr.bf16.mxu0 0
      %1036 = vmatpush1.bf16.msra.mxu0 0
      %1037 = vmatprep.subr.bf16.mxu0 0
      %1038 = vmatpush1.bf16.msra.mxu0 0
      %1039 = vmatprep.subr.bf16.mxu0 0
      %1040 = vmatpush1.bf16.msra.mxu0 0
      %1041 = vmatprep.subr.bf16.mxu0 0
      %1042 = vmatpush1.bf16.msra.mxu0 0
      %1043 = vmatprep.subr.bf16.mxu0 0
      %1044 = vmatpush1.bf16.msra.mxu0 0
      %1045 = vmatprep.subr.bf16.mxu0 0
      %1046 = vmatpush1.bf16.msra.mxu0 0
      %1047 = vmatprep.subr.bf16.mxu0 0
      %1048 = vmatpush1.bf16.msra.mxu0 0
      %1049 = vmatprep.subr.bf16.mxu0 0
      %1050 = vmatpush1.bf16.msra.mxu0 %v1033
      %1051 = vmatprep.subr.bf16.mxu0 0
      %1052 = vmatpush2.bf16.msra.mxu0 0
      %1053 = vmatprep.subr.bf16.mxu0 0
      %1054 = vmatpush2.bf16.msra.mxu0 0
      %1055 = vmatprep.subr.bf16.mxu0 0
      %1056 = vmatpush2.bf16.msra.mxu0 0
      %1057 = vmatprep.subr.bf16.mxu0 0
      %1058 = vmatpush2.bf16.msra.mxu0 0
      %1059 = vmatprep.subr.bf16.mxu0 0
      %1060 = vmatpush2.bf16.msra.mxu0 0
      %1061 = vmatprep.subr.bf16.mxu0 0
      %1062 = vmatpush2.bf16.msra.mxu0 0
      %1063 = vmatprep.subr.bf16.mxu0 0
      %1064 = vmatpush2.bf16.msra.mxu0 0
      %1065 = vmatprep.subr.bf16.mxu0 0
      %1066 = vmatpush2.bf16.msra.mxu0 0
      %1067 = vmatprep.mubr.bf16.mxu0 0
      %1068 = vmatmul.mubr.bf16.gmra.mxu0 %v1030
      %v1069 = vpop.f32.mrf.mxu0
      %v1070 = vadd.f32 0.0, %v1069
      %v1071 = vpop.f32.mrf.mxu0
      %v1072 = vpop.f32.mrf.mxu0
      %v1073 = vpop.f32.mrf.mxu0
      %1074 = vdwg.mxu0
      %v1075 = vadd.f32 %v913, %v1070
      %1076 = vrot.lane.b32.xlu0 %v602, 104
      %v1077 = vpop.permute.xlu0 %1076
      %1078 = vrot.lane.b32.xlu0 %v603, 104
      %v1079 = vpop.permute.xlu0 %1078
      %v1081 = vsel %vm604, %v1077, 0
      %v1084 = vsel %vm604, %v1079, 0
      %1086 = vmatprep.subr.bf16.mxu0 0
      %1087 = vmatpush1.bf16.xpose.msra.mxu0 0
      %1088 = vmatprep.subr.bf16.mxu0 0
      %1089 = vmatpush1.bf16.xpose.msra.mxu0 0
      %1090 = vmatprep.subr.bf16.mxu0 0
      %1091 = vmatpush1.bf16.xpose.msra.mxu0 0
      %1092 = vmatprep.subr.bf16.mxu0 0
      %1093 = vmatpush1.bf16.xpose.msra.mxu0 0
      %1094 = vmatprep.subr.bf16.mxu0 0
      %1095 = vmatpush1.bf16.xpose.msra.mxu0 0
      %1096 = vmatprep.subr.bf16.mxu0 0
      %1097 = vmatpush1.bf16.xpose.msra.mxu0 0
      %1098 = vmatprep.subr.bf16.mxu0 0
      %1099 = vmatpush1.bf16.xpose.msra.mxu0 0
      %1100 = vmatprep.subr.bf16.mxu0 0
      %1101 = vmatpush1.bf16.xpose.msra.mxu0 %v1084
      %1102 = vmatprep.subr.bf16.mxu0 0
      %1103 = vmatpush2.bf16.xpose.msra.mxu0 0
      %1104 = vmatprep.subr.bf16.mxu0 0
      %1105 = vmatpush2.bf16.xpose.msra.mxu0 0
      %1106 = vmatprep.subr.bf16.mxu0 0
      %1107 = vmatpush2.bf16.xpose.msra.mxu0 0
      %1108 = vmatprep.subr.bf16.mxu0 0
      %1109 = vmatpush2.bf16.xpose.msra.mxu0 0
      %1110 = vmatprep.subr.bf16.mxu0 0
      %1111 = vmatpush2.bf16.xpose.msra.mxu0 0
      %1112 = vmatprep.subr.bf16.mxu0 0
      %1113 = vmatpush2.bf16.xpose.msra.mxu0 0
      %1114 = vmatprep.subr.bf16.mxu0 0
      %1115 = vmatpush2.bf16.xpose.msra.mxu0 0
      %1116 = vmatprep.subr.bf16.mxu0 0
      %1117 = vmatpush2.bf16.xpose.msra.mxu0 0
      %1118 = vmatprep.mubr.bf16.mxu0 0
      %1119 = vmatmul.mubr.bf16.gmra.mxu0 %v1081
      %v1120 = vpop.f32.mrf.mxu0
      %v1121 = vadd.f32 %v597, %v1120
      %v1122 = vpop.f32.mrf.mxu0
      %v1123 = vpop.f32.mrf.mxu0
      %v1124 = vpop.f32.mrf.mxu0
      %1125 = vdwg.mxu0
      %v1126 = vsel %vm604, %v1121, -inf
      %1127 = vmax.xlane.f32.xlu0 %v1126
      %v1128 = vpop.xlane.xlu0 %1127
      %v1129 = vsub.f32 %v1121, %v1128
      %v1130 = vmul.f32 %v1129, 1.442695
      %v1131 = vpow.pop %v1130
      %v1132 = vsel %vm604, %v1131, 0.0
      %1133 = vadd.xlane.f32.xlu0 %v1132
      %v1134 = vpop.xlane.xlu0 %1133
      %v1135 = vrcp.pop %v1134
      %v1136 = vmul.f32 %v1131, %v1135
      %v1137 = vpack.c.bf16 %v1136, %v1136
      %1138 = vrot.lane.b32.xlu0 %v603, 72
      %v1139 = vpop.permute.xlu0 %1138
      %v1141 = vsel %vm604, %v1137, 0
      %v1144 = vsel %vm669, %v1139, 0
      %1146 = vmatprep.subr.bf16.mxu0 0
      %1147 = vmatpush1.bf16.msra.mxu0 0
      %1148 = vmatprep.subr.bf16.mxu0 0
      %1149 = vmatpush1.bf16.msra.mxu0 0
      %1150 = vmatprep.subr.bf16.mxu0 0
      %1151 = vmatpush1.bf16.msra.mxu0 0
      %1152 = vmatprep.subr.bf16.mxu0 0
      %1153 = vmatpush1.bf16.msra.mxu0 0
      %1154 = vmatprep.subr.bf16.mxu0 0
      %1155 = vmatpush1.bf16.msra.mxu0 0
      %1156 = vmatprep.subr.bf16.mxu0 0
      %1157 = vmatpush1.bf16.msra.mxu0 0
      %1158 = vmatprep.subr.bf16.mxu0 0
      %1159 = vmatpush1.bf16.msra.mxu0 0
      %1160 = vmatprep.subr.bf16.mxu0 0
      %1161 = vmatpush1.bf16.msra.mxu0 %v1144
      %1162 = vmatprep.subr.bf16.mxu0 0
      %1163 = vmatpush2.bf16.msra.mxu0 0
      %1164 = vmatprep.subr.bf16.mxu0 0
      %1165 = vmatpush2.bf16.msra.mxu0 0
      %1166 = vmatprep.subr.bf16.mxu0 0
      %1167 = vmatpush2.bf16.msra.mxu0 0
      %1168 = vmatprep.subr.bf16.mxu0 0
      %1169 = vmatpush2.bf16.msra.mxu0 0
      %1170 = vmatprep.subr.bf16.mxu0 0
      %1171 = vmatpush2.bf16.msra.mxu0 0
      %1172 = vmatprep.subr.bf16.mxu0 0
      %1173 = vmatpush2.bf16.msra.mxu0 0
      %1174 = vmatprep.subr.bf16.mxu0 0
      %1175 = vmatpush2.bf16.msra.mxu0 0
      %1176 = vmatprep.subr.bf16.mxu0 0
      %1177 = vmatpush2.bf16.msra.mxu0 0
      %1178 = vmatprep.mubr.bf16.mxu0 0
      %1179 = vmatmul.mubr.bf16.gmra.mxu0 %v1141
      %v1180 = vpop.f32.mrf.mxu0
      %v1181 = vadd.f32 0.0, %v1180
      %v1182 = vpop.f32.mrf.mxu0
      %v1183 = vpop.f32.mrf.mxu0
      %v1184 = vpop.f32.mrf.mxu0
      %1185 = vdwg.mxu0
      %v1186 = vpack.c.bf16 %v1181, %v1181
      %v1188 = vsel %vm604, %v1186, 0
      %v1191 = vsel %vm669, %v601, 0
      %1193 = vmatprep.subr.bf16.mxu0 0
      %1194 = vmatpush1.bf16.msra.mxu0 0
      %1195 = vmatprep.subr.bf16.mxu0 0
      %1196 = vmatpush1.bf16.msra.mxu0 0
      %1197 = vmatprep.subr.bf16.mxu0 0
      %1198 = vmatpush1.bf16.msra.mxu0 0
      %1199 = vmatprep.subr.bf16.mxu0 0
      %1200 = vmatpush1.bf16.msra.mxu0 0
      %1201 = vmatprep.subr.bf16.mxu0 0
      %1202 = vmatpush1.bf16.msra.mxu0 0
      %1203 = vmatprep.subr.bf16.mxu0 0
      %1204 = vmatpush1.bf16.msra.mxu0 0
      %1205 = vmatprep.subr.bf16.mxu0 0
      %1206 = vmatpush1.bf16.msra.mxu0 0
      %1207 = vmatprep.subr.bf16.mxu0 0
      %1208 = vmatpush1.bf16.msra.mxu0 %v1191
      %1209 = vmatprep.subr.bf16.mxu0 0
      %1210 = vmatpush2.bf16.msra.mxu0 0
      %1211 = vmatprep.subr.bf16.mxu0 0
      %1212 = vmatpush2.bf16.msra.mxu0 0
      %1213 = vmatprep.subr.bf16.mxu0 0
      %1214 = vmatpush2.bf16.msra.mxu0 0
      %1215 = vmatprep.subr.bf16.mxu0 0
      %1216 = vmatpush2.bf16.msra.mxu0 0
      %1217 = vmatprep.subr.bf16.mxu0 0
      %1218 = vmatpush2.bf16.msra.mxu0 0
      %1219 = vmatprep.subr.bf16.mxu0 0
      %1220 = vmatpush2.bf16.msra.mxu0 0
      %1221 = vmatprep.subr.bf16.mxu0 0
      %1222 = vmatpush2.bf16.msra.mxu0 0
      %1223 = vmatprep.subr.bf16.mxu0 0
      %1224 = vmatpush2.bf16.msra.mxu0 0
      %1225 = vmatprep.mubr.bf16.mxu0 0
      %1226 = vmatmul.mubr.bf16.gmra.mxu0 %v1188
      %v1227 = vpop.f32.mrf.mxu0
      %v1228 = vadd.f32 0.0, %v1227
      %v1229 = vpop.f32.mrf.mxu0
      %v1230 = vpop.f32.mrf.mxu0
      %v1231 = vpop.f32.mrf.mxu0
      %1232 = vdwg.mxu0
      %v1233 = vadd.f32 %v1075, %v1228
      %v1234 = vadd.f32 %v417, %v1233
      %v1235 = vld [vmem:[%s10] sm:$0x1]
      %v1237 = vlaneseq
      %v1238 = vshrl.u32 %v1237, 7
      %v1239 = vsub.s32 0, %v1238
      %v1240 = vrot.slane %v1235, %v1239
      %v1242 = vadd.f32 %v1234, %v1240
      %1243 = vst.msk [vmem:[%s415] sm:$0xff] %vm421, %v1242
      %p1244 = scmp.lt.s32.totalorder %s22, 1
      %s1245 = scalar_select %p1244, %s22, 1
      %s1246 = smul.addr %s1245, 8
      %s1247 = scalar_lea.vmem %s11, %s1246
      // Predicated region
      $region65: #{decoder_layer.4} parent=63 // pred_check
        %p1248 = pneg %p286
      $region66: #{decoder_layer.4} parent=63 // pred_check_branch
        %1250 = sbr.rel (%p1248) target = $region68
      $region67: #{decoder_layer.4} parent=63 // pred_region
        _
      $region68: #{decoder_layer.4} parent=63 // pred_fallthru
        _
    $region64: #{decoder_layer.4} parent=5 // pred_fallthru
      _
    %p1251 = scmp.le.s32.totalorder 2, %s17
    // Predicated region
    $region69: #{decoder_layer.4} parent=5 // pred_check
      %p1252 = pneg %p1251
    $region70: #{decoder_layer.4} parent=5 // pred_check_branch
      %1254 = sbr.rel (%p1252) target = $region72
    $region71: #{decoder_layer.4} parent=5 // pred_region
      %s1255 = ssub.s32 %s17, 2
      // Predicated region
      $region73: #{decoder_layer.4} parent=71 // pred_check
        %p1256 = pneg %p292
      $region74: #{decoder_layer.4} parent=71 // pred_check_branch
        %1258 = sbr.rel (%p1256) target = $region76
      $region75: #{decoder_layer.4} parent=71 // pred_region
        %p1259 = scmp.lt.s32.totalorder %s23, 1
        %s1260 = scalar_select %p1259, %s23, 1
        %s1261 = smul.addr %s1260, 8
        %s1262 = scalar_lea.vmem %s11, %s1261
      $region76: #{decoder_layer.4} parent=71 // pred_fallthru
        _
    $region72: #{decoder_layer.4} parent=5 // pred_fallthru
      _
  $region6: #{decoder_layer.4} parent=0 // loop_footer
    %s21 = sadd.s32 1, %s17
  $region7: #{decoder_layer.4} parent=0 // loop_footer_branch
    %16 = sbr.rel target = $region3
  $region8: #{decoder_layer.4} parent=0 // loop_exit
    _

// kernel: decoder_layer.3
$region0: #{decoder_layer.3}
  #allocation0 [shape = 'u32[]', space=smem, size = 0x4, offset = 0x4, fixed_abs, tag = 'smem constant byte address 0x4 - core index']
  #allocation1 [shape = 'u32[144,128]{1,0:T(1,128)}', space=vmem, size = 0x12000, scoped, tag = 'internal scratch']
  %s0 = inlined_call_operand.vmem [shape: f32[2,8,32], index: 0, kind: input, shape index: {}]
  %s1 = inlined_call_operand.vmem [shape: f32[2,8,8], index: 1, kind: input, shape index: {}]
  %s2 = inlined_call_operand.vmem [shape: f32[1,32], index: 2, kind: input, shape index: {}]
  %s3 = inlined_call_operand.vmem [shape: f32[1,32], index: 3, kind: input, shape index: {}]
  %s4 = inlined_call_operand.vmem [shape: bf16[32,96], index: 4, kind: input, shape index: {}]
  %s5 = inlined_call_operand.vmem [shape: f32[1,96], index: 5, kind: input, shape index: {}]
  %s6 = inlined_call_operand.vmem [shape: bf16[32,32], index: 6, kind: input, shape index: {}]
  %s7 = inlined_call_operand.vmem [shape: f32[1,32], index: 7, kind: input, shape index: {}]
  %s8 = inlined_call_operand.vmem [shape: f32[2,8,32], index: 8, kind: output, shape index: {}]
  %s9 = sld [smem:[#allocation0]]
  $region65: #{decoder_layer.3} parent=0
    _
  %s11 = ssub.s32 1, %s9
  %s12 = scalar_select 0, %s11, %s9
  loop: start=0, step=1, limit=4
  $region2: #{decoder_layer.3} parent=0 // loop_pre_header
    _
  $region3: #{decoder_layer.3} parent=0 // loop_header
    %s14 = sphi 0, %s18
    %p15 = scmp.ge.s32.totalorder %s14, 4
    %s24 = sphi 0, %s26
    %s27 = sphi 0, %s24
    %s28 = sphi 0, %s27
    %s44 = sphi 0, %s28
    %s50 = sphi 0, %s52
    %s53 = sphi 0, %s50
    %s54 = sphi 0, %s53
    %s70 = sphi 0, %s54
    %s74 = sphi 0, %s74
    %s76 = sphi 0, %s74
    %s77 = sphi 0, %s76
    %s91 = sphi 0, %s77
    %s95 = sphi 0, %s95
    %s97 = sphi 0, %s95
    %s98 = sphi 0, %s97
    %s112 = sphi 0, %s98
    %s116 = sphi 0, %s116
    %s118 = sphi 0, %s116
    %s119 = sphi 0, %s118
    %s133 = sphi 0, %s119
    %s137 = sphi 0, %s137
    %s139 = sphi 0, %s137
    %s140 = sphi 0, %s139
    %s154 = sphi 0, %s140
    %s158 = sphi 0, %s158
    %s160 = sphi 0, %s158
    %s161 = sphi 0, %s160
    %s175 = sphi 0, %s161
    %s179 = sphi 0, %s179
    %s181 = sphi 0, %s179
    %s182 = sphi 0, %s181
    %s196 = sphi 0, %s182
    %s202 = sphi 0, %s204
    %s205 = sphi 0, %s202
    %s206 = sphi 0, %s205
    %s222 = sphi 0, %s206
  $region4: #{decoder_layer.3} parent=0 // loop_header_branch
    %17 = sbr.rel (%p15) target = $region8
  $region5: #{decoder_layer.3} parent=0 // loop_body
    %s19 = ssub.s32 %s14, 1
    %s20 = ssub.s32 %s14, 2
    %s21 = sadd.s32 %s14, 1
    %s22 = ssub.s32 %s14, %s21
    %p23 = scmp.eq.s32.totalorder %s22, 0
    %s25 = sadd.s32 %s24, 1
    %s26 = scalar_select %p23, %s24, %s25
    %p29 = pneg %p23
    %p30 = scmp.eq.s32.totalorder %s14, 1
    %p31 = por %p29, %p30
    %p32 = scmp.ne.s32.totalorder %s24, %s27
    %p33 = scmp.eq.s32.totalorder %s14, 0
    %p34 = por %p32, %p33
    %p35 = scmp.ne.s32.totalorder %s24, %s27
    %p36 = scmp.eq.s32.totalorder %s19, 1
    %p37 = por %p35, %p36
    %p38 = scmp.ne.s32.totalorder %s27, %s28
    %p39 = scmp.eq.s32.totalorder %s19, 0
    %p40 = por %p38, %p39
    %p41 = scmp.ne.s32.totalorder %s27, %s28
    %p42 = scmp.eq.s32.totalorder %s20, 1
    %p43 = por %p41, %p42
    %p45 = scmp.ne.s32.totalorder %s28, %s44
    %p46 = scmp.eq.s32.totalorder %s20, 0
    %p47 = por %p45, %p46
    %s48 = ssub.s32 %s14, %s21
    %p49 = scmp.eq.s32.totalorder %s48, 0
    %s51 = sadd.s32 %s50, 1
    %s52 = scalar_select %p49, %s50, %s51
    %p55 = pneg %p49
    %p56 = scmp.eq.s32.totalorder %s14, 1
    %p57 = por %p55, %p56
    %p58 = scmp.ne.s32.totalorder %s50, %s53
    %p59 = scmp.eq.s32.totalorder %s14, 0
    %p60 = por %p58, %p59
    %p61 = scmp.ne.s32.totalorder %s50, %s53
    %p62 = scmp.eq.s32.totalorder %s19, 1
    %p63 = por %p61, %p62
    %p64 = scmp.ne.s32.totalorder %s53, %s54
    %p65 = scmp.eq.s32.totalorder %s19, 0
    %p66 = por %p64, %p65
    %p67 = scmp.ne.s32.totalorder %s53, %s54
    %p68 = scmp.eq.s32.totalorder %s20, 1
    %p69 = por %p67, %p68
    %p71 = scmp.ne.s32.totalorder %s54, %s70
    %p72 = scmp.eq.s32.totalorder %s20, 0
    %p73 = por %p71, %p72
    %s75 = sadd.s32 %s74, 1
    %p78 = scmp.eq.s32.totalorder %s14, 1
    %p79 = scmp.ne.s32.totalorder %s74, %s76
    %p80 = scmp.eq.s32.totalorder %s14, 0
    %p81 = por %p79, %p80
    %p82 = scmp.ne.s32.totalorder %s74, %s76
    %p83 = scmp.eq.s32.totalorder %s19, 1
    %p84 = por %p82, %p83
    %p85 = scmp.ne.s32.totalorder %s76, %s77
    %p86 = scmp.eq.s32.totalorder %s19, 0
    %p87 = por %p85, %p86
    %p88 = scmp.ne.s32.totalorder %s76, %s77
    %p89 = scmp.eq.s32.totalorder %s20, 1
    %p90 = por %p88, %p89
    %p92 = scmp.ne.s32.totalorder %s77, %s91
    %p93 = scmp.eq.s32.totalorder %s20, 0
    %p94 = por %p92, %p93
    %s96 = sadd.s32 %s95, 1
    %p99 = scmp.eq.s32.totalorder %s14, 1
    %p100 = scmp.ne.s32.totalorder %s95, %s97
    %p101 = scmp.eq.s32.totalorder %s14, 0
    %p102 = por %p100, %p101
    %p103 = scmp.ne.s32.totalorder %s95, %s97
    %p104 = scmp.eq.s32.totalorder %s19, 1
    %p105 = por %p103, %p104
    %p106 = scmp.ne.s32.totalorder %s97, %s98
    %p107 = scmp.eq.s32.totalorder %s19, 0
    %p108 = por %p106, %p107
    %p109 = scmp.ne.s32.totalorder %s97, %s98
    %p110 = scmp.eq.s32.totalorder %s20, 1
    %p111 = por %p109, %p110
    %p113 = scmp.ne.s32.totalorder %s98, %s112
    %p114 = scmp.eq.s32.totalorder %s20, 0
    %p115 = por %p113, %p114
    %s117 = sadd.s32 %s116, 1
    %p120 = scmp.eq.s32.totalorder %s14, 1
    %p121 = scmp.ne.s32.totalorder %s116, %s118
    %p122 = scmp.eq.s32.totalorder %s14, 0
    %p123 = por %p121, %p122
    %p124 = scmp.ne.s32.totalorder %s116, %s118
    %p125 = scmp.eq.s32.totalorder %s19, 1
    %p126 = por %p124, %p125
    %p127 = scmp.ne.s32.totalorder %s118, %s119
    %p128 = scmp.eq.s32.totalorder %s19, 0
    %p129 = por %p127, %p128
    %p130 = scmp.ne.s32.totalorder %s118, %s119
    %p131 = scmp.eq.s32.totalorder %s20, 1
    %p132 = por %p130, %p131
    %p134 = scmp.ne.s32.totalorder %s119, %s133
    %p135 = scmp.eq.s32.totalorder %s20, 0
    %p136 = por %p134, %p135
    %s138 = sadd.s32 %s137, 1
    %p141 = scmp.eq.s32.totalorder %s14, 1
    %p142 = scmp.ne.s32.totalorder %s137, %s139
    %p143 = scmp.eq.s32.totalorder %s14, 0
    %p144 = por %p142, %p143
    %p145 = scmp.ne.s32.totalorder %s137, %s139
    %p146 = scmp.eq.s32.totalorder %s19, 1
    %p147 = por %p145, %p146
    %p148 = scmp.ne.s32.totalorder %s139, %s140
    %p149 = scmp.eq.s32.totalorder %s19, 0
    %p150 = por %p148, %p149
    %p151 = scmp.ne.s32.totalorder %s139, %s140
    %p152 = scmp.eq.s32.totalorder %s20, 1
    %p153 = por %p151, %p152
    %p155 = scmp.ne.s32.totalorder %s140, %s154
    %p156 = scmp.eq.s32.totalorder %s20, 0
    %p157 = por %p155, %p156
    %s159 = sadd.s32 %s158, 1
    %p162 = scmp.eq.s32.totalorder %s14, 1
    %p163 = scmp.ne.s32.totalorder %s158, %s160
    %p164 = scmp.eq.s32.totalorder %s14, 0
    %p165 = por %p163, %p164
    %p166 = scmp.ne.s32.totalorder %s158, %s160
    %p167 = scmp.eq.s32.totalorder %s19, 1
    %p168 = por %p166, %p167
    %p169 = scmp.ne.s32.totalorder %s160, %s161
    %p170 = scmp.eq.s32.totalorder %s19, 0
    %p171 = por %p169, %p170
    %p172 = scmp.ne.s32.totalorder %s160, %s161
    %p173 = scmp.eq.s32.totalorder %s20, 1
    %p174 = por %p172, %p173
    %p176 = scmp.ne.s32.totalorder %s161, %s175
    %p177 = scmp.eq.s32.totalorder %s20, 0
    %p178 = por %p176, %p177
    %s180 = sadd.s32 %s179, 1
    %p183 = scmp.eq.s32.totalorder %s14, 1
    %p184 = scmp.ne.s32.totalorder %s179, %s181
    %p185 = scmp.eq.s32.totalorder %s14, 0
    %p186 = por %p184, %p185
    %p187 = scmp.ne.s32.totalorder %s179, %s181
    %p188 = scmp.eq.s32.totalorder %s19, 1
    %p189 = por %p187, %p188
    %p190 = scmp.ne.s32.totalorder %s181, %s182
    %p191 = scmp.eq.s32.totalorder %s19, 0
    %p192 = por %p190, %p191
    %p193 = scmp.ne.s32.totalorder %s181, %s182
    %p194 = scmp.eq.s32.totalorder %s20, 1
    %p195 = por %p193, %p194
    %p197 = scmp.ne.s32.totalorder %s182, %s196
    %p198 = scmp.eq.s32.totalorder %s20, 0
    %p199 = por %p197, %p198
    %s200 = ssub.s32 %s14, %s21
    %p201 = scmp.eq.s32.totalorder %s200, 0
    %s203 = sadd.s32 %s202, 1
    %s204 = scalar_select %p201, %s202, %s203
    %p207 = pneg %p201
    %p208 = scmp.eq.s32.totalorder %s14, 1
    %p209 = por %p207, %p208
    %p210 = scmp.ne.s32.totalorder %s202, %s205
    %p211 = scmp.eq.s32.totalorder %s14, 0
    %p212 = por %p210, %p211
    %p213 = scmp.ne.s32.totalorder %s202, %s205
    %p214 = scmp.eq.s32.totalorder %s19, 1
    %p215 = por %p213, %p214
    %p216 = scmp.ne.s32.totalorder %s205, %s206
    %p217 = scmp.eq.s32.totalorder %s19, 0
    %p218 = por %p216, %p217
    %p219 = scmp.ne.s32.totalorder %s205, %s206
    %p220 = scmp.eq.s32.totalorder %s20, 1
    %p221 = por %p219, %p220
    %p223 = scmp.ne.s32.totalorder %s206, %s222
    %p224 = scmp.eq.s32.totalorder %s20, 0
    %p225 = por %p223, %p224
    %p226 = scmp.le.s32.totalorder 1, %s14
    %p227 = scmp.lt.s32.totalorder %s14, 3
    %p228 = pnand %p226, %p227
    %p229 = pneg %p228
    // Predicated region
    $region9: #{decoder_layer.3} parent=5 // pred_check
      _
    $region10: #{decoder_layer.3} parent=5 // pred_check_branch
      %231 = sbr.rel (%p228) target = $region12
    $region11: #{decoder_layer.3} parent=5 // pred_region
      %s232 = ssub.s32 %s14, 1
      // Predicated region
      $region13: #{decoder_layer.3} parent=11 // pred_check
        %p233 = pneg %p87
      $region14: #{decoder_layer.3} parent=11 // pred_check_branch
        %235 = sbr.rel (%p233) target = $region16
      $region15: #{decoder_layer.3} parent=11 // pred_region
        _
      $region16: #{decoder_layer.3} parent=11 // pred_fallthru
        _
      // Predicated region
      $region17: #{decoder_layer.3} parent=11 // pred_check
        %p236 = pneg %p108
      $region18: #{decoder_layer.3} parent=11 // pred_check_branch
        %238 = sbr.rel (%p236) target = $region20
      $region19: #{decoder_layer.3} parent=11 // pred_region
        _
      $region20: #{decoder_layer.3} parent=11 // pred_fallthru
        _
      // Predicated region
      $region21: #{decoder_layer.3} parent=11 // pred_check
        %p239 = pneg %p129
      $region22: #{decoder_layer.3} parent=11 // pred_check_branch
        %241 = sbr.rel (%p239) target = $region24
      $region23: #{decoder_layer.3} parent=11 // pred_region
        _
      $region24: #{decoder_layer.3} parent=11 // pred_fallthru
        _
      // Predicated region
      $region25: #{decoder_layer.3} parent=11 // pred_check
        %p242 = pneg %p150
      $region26: #{decoder_layer.3} parent=11 // pred_check_branch
        %244 = sbr.rel (%p242) target = $region28
      $region27: #{decoder_layer.3} parent=11 // pred_region
        _
      $region28: #{decoder_layer.3} parent=11 // pred_fallthru
        _
      // Predicated region
      $region29: #{decoder_layer.3} parent=11 // pred_check
        %p245 = pneg %p171
      $region30: #{decoder_layer.3} parent=11 // pred_check_branch
        %247 = sbr.rel (%p245) target = $region32
      $region31: #{decoder_layer.3} parent=11 // pred_region
        _
      $region32: #{decoder_layer.3} parent=11 // pred_fallthru
        _
      // Predicated region
      $region33: #{decoder_layer.3} parent=11 // pred_check
        %p248 = pneg %p192
      $region34: #{decoder_layer.3} parent=11 // pred_check_branch
        %250 = sbr.rel (%p248) target = $region36
      $region35: #{decoder_layer.3} parent=11 // pred_region
        _
      $region36: #{decoder_layer.3} parent=11 // pred_fallthru
        _
    $region12: #{decoder_layer.3} parent=5 // pred_fallthru
      _
    %p251 = scmp.lt.s32.totalorder %s14, 2
    // Predicated region
    $region37: #{decoder_layer.3} parent=5 // pred_check
      %p252 = pneg %p251
    $region38: #{decoder_layer.3} parent=5 // pred_check_branch
      %254 = sbr.rel (%p252) target = $region40
    $region39: #{decoder_layer.3} parent=5 // pred_region
      // Predicated region
      $region41: #{decoder_layer.3} parent=39 // pred_check
        %p255 = pneg %p34
      $region42: #{decoder_layer.3} parent=39 // pred_check_branch
        %257 = sbr.rel (%p255) target = $region44
      $region43: #{decoder_layer.3} parent=39 // pred_region
        %p258 = scmp.lt.s32.totalorder %s14, 1
        %s259 = scalar_select %p258, %s14, 1
        %s260 = smul.addr %s259, 8
        %s261 = scalar_lea.vmem %s0, %s260
      $region44: #{decoder_layer.3} parent=39 // pred_fallthru
        _
      // Predicated region
      $region45: #{decoder_layer.3} parent=39 // pred_check
        %p262 = pneg %p60
      $region46: #{decoder_layer.3} parent=39 // pred_check_branch
        %264 = sbr.rel (%p262) target = $region48
      $region47: #{decoder_layer.3} parent=39 // pred_region
        %p265 = scmp.lt.s32.totalorder %s14, 1
        %s266 = scalar_select %p265, %s14, 1
        %s267 = smul.addr %s266, 8
        %s268 = scalar_lea.vmem %s1, %s267
      $region48: #{decoder_layer.3} parent=39 // pred_fallthru
        _
    $region40: #{decoder_layer.3} parent=5 // pred_fallthru
      _
    %p269 = scmp.le.s32.totalorder 1, %s14
    %p270 = scmp.lt.s32.totalorder %s14, 3
    %p271 = pnand %p269, %p270
    %p272 = pneg %p271
    // Predicated region
    $region49: #{decoder_layer.3} parent=5 // pred_check
      _
    $region50: #{decoder_layer.3} parent=5 // pred_check_branch
      %274 = sbr.rel (%p271) target = $region52
    $region51: #{decoder_layer.3} parent=5 // pred_region
      %s275 = ssub.s32 %s14, 1
      %p276 = scmp.lt.s32.totalorder %s19, 1
      %s277 = scalar_select %p276, %s19, 1
      %s278 = smul.addr %s277, 8
      %s279 = scalar_lea.vmem %s0, %s278
      %p280 = pneg %p40
      %p281 = pneg %p37
      %p282 = scmp.lt.s32.totalorder %s19, 1
      %s283 = scalar_select %p282, %s19, 1
      %s284 = smul.addr %s283, 8
      %s285 = scalar_lea.vmem %s1, %s284
      %p286 = pneg %p66
      %p287 = pneg %p63
      %p288 = pneg %p87
      %p289 = pneg %p84
      %p290 = pneg %p108
      %p291 = pneg %p105
      %p292 = pneg %p129
      %p293 = pneg %p126
      %p294 = pneg %p150
      %p295 = pneg %p147
      %p296 = pneg %p171
      %p297 = pneg %p168
      %p298 = pneg %p192
      %p299 = pneg %p189
      %p300 = pneg %p218
      %p301 = pneg %p215
      %p302 = scmp.lt.s32.totalorder %s19, 1
      %s303 = scalar_select %p302, %s19, 1
      %s304 = smul.addr %s303, 8
      %s305 = scalar_lea.vmem %s8, %s304
      %p306 = scmp.lt.s32.totalorder %s19, 1
      %s307 = scalar_select %p306, %s19, 1
      %s308 = smul.addr %s307, 8
      %s309 = scalar_lea.vmem %s0, %s308
      %p310 = scmp.lt.s32.totalorder %s19, 1
      %s311 = scalar_select %p310, %s19, 1
      %s312 = smul.addr %s311, 8
      %s313 = scalar_lea.vmem %s1, %s312
      %p314 = scmp.lt.s32.totalorder %s19, 1
      %s315 = scalar_select %p314, %s19, 1
      %s316 = smul.addr %s315, 8
      %s317 = scalar_lea.vmem %s8, %s316
      %v319 = vld [vmem:[%s309] sm:$0xff]
      %v320 = vld [vmem:[%s2] sm:$0x1]
      %v321 = vld [vmem:[%s3] sm:$0x1]
      %vm322 = vcmask 261120
      %v323 = vsel %vm322, %v319, 0.0
      %324 = vadd.xlane.f32.xlu0 %v323
      %v325 = vpop.xlane.xlu0 %324
      %v326 = vrcp.pop 32.0
      %v327 = vmul.f32 %v325, %v326
      %v328 = vmul.f32 %v319, %v319
      %v329 = vsel %vm322, %v328, 0.0
      %330 = vadd.xlane.f32.xlu0 %v329
      %v331 = vpop.xlane.xlu0 %330
      %v332 = vmul.f32 %v327, 32.0
      %v333 = vmul.f32 %v332, %v327
      %v334 = vsub.f32 %v331, %v333
      %v335 = vrcp.pop 31.0
      %v336 = vmul.f32 %v334, %v335
      %v337 = vmax.f32 %v336, 0.0
      %v338 = vrsqrt.pop %v337
      %v339 = vmul.f32 %v337, %v338
      %vm340 = vcmp.eq.f32.partialorder %v337, inf
      %v341 = vsel %vm340, %v337, %v339
      %vm342 = vcmp.eq.f32.partialorder %v337, 0.0
      %v343 = vand.u32 %v337, 2147483648
      %v344 = vsel %vm342, %v343, %v341
      %v345 = vsub.f32 %v319, %v327
      %v347 = vlaneseq
      %v348 = vshrl.u32 %v347, 7
      %v349 = vsub.s32 0, %v348
      %v350 = vrot.slane %v320, %v349
      %v352 = vmul.f32 %v350, %v345
      %v353 = vadd.f32 %v344, 1e-06
      %v354 = vrcp.pop %v353
      %v355 = vmul.f32 %v352, %v354
      %v357 = vlaneseq
      %v358 = vshrl.u32 %v357, 7
      %v359 = vsub.s32 0, %v358
      %v360 = vrot.slane %v321, %v359
      %v362 = vadd.f32 %v355, %v360
      %v363 = vpack.c.bf16 %v362, %v362
      %v364 = vld [vmem:[%s4] sm:$0xf]
      %v365 = vld [vmem:[%s4 + $0x4] sm:$0xf]
      %v366 = vld [vmem:[%s4 + $0x8] sm:$0xf]
      %v367 = vld [vmem:[%s4 + $0xc] sm:$0xf]
      %v368 = vld [vmem:[%s5] sm:$0x1]
      %v370 = vlaneseq
      %v371 = vshrl.u32 %v370, 7
      %v372 = vsub.s32 0, %v371
      %v373 = vrot.slane %v368, %v372
      %v379 = vunpack.c.l.b16 %v364
      %v380 = vunpack.c.l.b16 %v365
      %v381 = vunpack.c.l.b16 %v366
      %v382 = vunpack.c.l.b16 %v367
      %v383 = vpack.c.b16 %v380, %v379
      %v384 = vpack.c.b16 %v382, %v381
      %v388 = vsel %vm322, %v363, 0
      %390 = vmatprep.subr.bf16.mxu0 0
      %391 = vmatpush1.bf16.msra.mxu0 0
      %392 = vmatprep.subr.bf16.mxu0 0
      %393 = vmatpush1.bf16.msra.mxu0 0
      %394 = vmatprep.subr.bf16.mxu0 0
      %395 = vmatpush1.bf16.msra.mxu0 0
      %396 = vmatprep.subr.bf16.mxu0 0
      %397 = vmatpush1.bf16.msra.mxu0 0
      %398 = vmatprep.subr.bf16.mxu0 0
      %399 = vmatpush1.bf16.msra.mxu0 0
      %400 = vmatprep.subr.bf16.mxu0 0
      %401 = vmatpush1.bf16.msra.mxu0 0
      %402 = vmatprep.subr.bf16.mxu0 0
      %403 = vmatpush1.bf16.msra.mxu0 %v384
      %404 = vmatprep.subr.bf16.mxu0 0
      %405 = vmatpush1.bf16.msra.mxu0 %v383
      %406 = vmatprep.subr.bf16.mxu0 0
      %407 = vmatpush2.bf16.msra.mxu0 0
      %408 = vmatprep.subr.bf16.mxu0 0
      %409 = vmatpush2.bf16.msra.mxu0 0
      %410 = vmatprep.subr.bf16.mxu0 0
      %411 = vmatpush2.bf16.msra.mxu0 0
      %412 = vmatprep.subr.bf16.mxu0 0
      %413 = vmatpush2.bf16.msra.mxu0 0
      %414 = vmatprep.subr.bf16.mxu0 0
      %415 = vmatpush2.bf16.msra.mxu0 0
      %416 = vmatprep.subr.bf16.mxu0 0
      %417 = vmatpush2.bf16.msra.mxu0 0
      %418 = vmatprep.subr.bf16.mxu0 0
      %419 = vmatpush2.bf16.msra.mxu0 0
      %420 = vmatprep.subr.bf16.mxu0 0
      %421 = vmatpush2.bf16.msra.mxu0 0
      %422 = vmatprep.mubr.bf16.mxu0 0
      %423 = vmatmul.mubr.bf16.gmra.mxu0 %v388
      %v424 = vpop.f32.mrf.mxu0
      %v425 = vadd.f32 %v373, %v424
      %v426 = vpop.f32.mrf.mxu0
      %v427 = vpop.f32.mrf.mxu0
      %v428 = vpop.f32.mrf.mxu0
      %429 = vdwg.mxu0
      %v430 = vmul.f32 %v425, 0.35355338
      %v431 = vld [vmem:[%s313] sm:$0xff]
      %v432 = vld [vmem:[%s6] sm:$0xf]
      %v433 = vld [vmem:[%s6 + $0x4] sm:$0xf]
      %v434 = vld [vmem:[%s6 + $0x8] sm:$0xf]
      %v435 = vld [vmem:[%s6 + $0xc] sm:$0xf]
      %v436 = vpack.c.bf16 %v430, %v430
      %v437 = vpack.c.bf16 %v425, %v425
      %439 = vrot.lane.b32.xlu0 %v437, 96
      %v440 = vpop.permute.xlu0 %439
      %vm441 = vcmask 64512
      %v443 = vsel %vm441, %v436, 0
      %v446 = vsel %vm441, %v440, 0
      %448 = vmatprep.subr.bf16.mxu0 0
      %449 = vmatpush1.bf16.xpose.msra.mxu0 0
      %450 = vmatprep.subr.bf16.mxu0 0
      %451 = vmatpush1.bf16.xpose.msra.mxu0 0
      %452 = vmatprep.subr.bf16.mxu0 0
      %453 = vmatpush1.bf16.xpose.msra.mxu0 0
      %454 = vmatprep.subr.bf16.mxu0 0
      %455 = vmatpush1.bf16.xpose.msra.mxu0 0
      %456 = vmatprep.subr.bf16.mxu0 0
      %457 = vmatpush1.bf16.xpose.msra.mxu0 0
      %458 = vmatprep.subr.bf16.mxu0 0
      %459 = vmatpush1.bf16.xpose.msra.mxu0 0
      %460 = vmatprep.subr.bf16.mxu0 0
      %461 = vmatpush1.bf16.xpose.msra.mxu0 0
      %462 = vmatprep.subr.bf16.mxu0 0
      %463 = vmatpush1.bf16.xpose.msra.mxu0 %v446
      %464 = vmatprep.subr.bf16.mxu0 0
      %465 = vmatpush2.bf16.xpose.msra.mxu0 0
      %466 = vmatprep.subr.bf16.mxu0 0
      %467 = vmatpush2.bf16.xpose.msra.mxu0 0
      %468 = vmatprep.subr.bf16.mxu0 0
      %469 = vmatpush2.bf16.xpose.msra.mxu0 0
      %470 = vmatprep.subr.bf16.mxu0 0
      %471 = vmatpush2.bf16.xpose.msra.mxu0 0
      %472 = vmatprep.subr.bf16.mxu0 0
      %473 = vmatpush2.bf16.xpose.msra.mxu0 0
      %474 = vmatprep.subr.bf16.mxu0 0
      %475 = vmatpush2.bf16.xpose.msra.mxu0 0
      %476 = vmatprep.subr.bf16.mxu0 0
      %477 = vmatpush2.bf16.xpose.msra.mxu0 0
      %478 = vmatprep.subr.bf16.mxu0 0
      %479 = vmatpush2.bf16.xpose.msra.mxu0 0
      %480 = vmatprep.mubr.bf16.mxu0 0
      %481 = vmatmul.mubr.bf16.gmra.mxu0 %v443
      %v482 = vpop.f32.mrf.mxu0
      %v483 = vadd.f32 %v431, %v482
      %v484 = vpop.f32.mrf.mxu0
      %v485 = vpop.f32.mrf.mxu0
      %v486 = vpop.f32.mrf.mxu0
      %487 = vdwg.mxu0
      %v488 = vsel %vm441, %v483, -inf
      %489 = vmax.xlane.f32.xlu0 %v488
      %v490 = vpop.xlane.xlu0 %489
      %v491 = vsub.f32 %v483, %v490
      %v492 = vmul.f32 %v491, 1.442695
      %v493 = vpow.pop %v492
      %v494 = vsel %vm441, %v493, 0.0
      %495 = vadd.xlane.f32.xlu0 %v494
      %v496 = vpop.xlane.xlu0 %495
      %v497 = vrcp.pop %v496
      %v498 = vmul.f32 %v493, %v497
      %v499 = vpack.c.bf16 %v498, %v498
      %500 = vrot.lane.b32.xlu0 %v437, 64
      %v501 = vpop.permute.xlu0 %500
      %v503 = vsel %vm441, %v499, 0
      %vm505 = vcmask 1043456
      %v507 = vsel %vm505, %v501, 0
      %509 = vmatprep.subr.bf16.mxu0 0
      %510 = vmatpush1.bf16.msra.mxu0 0
      %511 = vmatprep.subr.bf16.mxu0 0
      %512 = vmatpush1.bf16.msra.mxu0 0
      %513 = vmatprep.subr.bf16.mxu0 0
      %514 = vmatpush1.bf16.msra.mxu0 0
      %515 = vmatprep.subr.bf16.mxu0 0
      %516 = vmatpush1.bf16.msra.mxu0 0
      %517 = vmatprep.subr.bf16.mxu0 0
      %518 = vmatpush1.bf16.msra.mxu0 0
      %519 = vmatprep.subr.bf16.mxu0 0
      %520 = vmatpush1.bf16.msra.mxu0 0
      %521 = vmatprep.subr.bf16.mxu0 0
      %522 = vmatpush1.bf16.msra.mxu0 0
      %523 = vmatprep.subr.bf16.mxu0 0
      %524 = vmatpush1.bf16.msra.mxu0 %v507
      %525 = vmatprep.subr.bf16.mxu0 0
      %526 = vmatpush2.bf16.msra.mxu0 0
      %527 = vmatprep.subr.bf16.mxu0 0
      %528 = vmatpush2.bf16.msra.mxu0 0
      %529 = vmatprep.subr.bf16.mxu0 0
      %530 = vmatpush2.bf16.msra.mxu0 0
      %531 = vmatprep.subr.bf16.mxu0 0
      %532 = vmatpush2.bf16.msra.mxu0 0
      %533 = vmatprep.subr.bf16.mxu0 0
      %534 = vmatpush2.bf16.msra.mxu0 0
      %535 = vmatprep.subr.bf16.mxu0 0
      %536 = vmatpush2.bf16.msra.mxu0 0
      %537 = vmatprep.subr.bf16.mxu0 0
      %538 = vmatpush2.bf16.msra.mxu0 0
      %539 = vmatprep.subr.bf16.mxu0 0
      %540 = vmatpush2.bf16.msra.mxu0 0
      %541 = vmatprep.mubr.bf16.mxu0 0
      %542 = vmatmul.mubr.bf16.gmra.mxu0 %v503
      %v543 = vpop.f32.mrf.mxu0
      %v544 = vadd.f32 0.0, %v543
      %v545 = vpop.f32.mrf.mxu0
      %v546 = vpop.f32.mrf.mxu0
      %v547 = vpop.f32.mrf.mxu0
      %548 = vdwg.mxu0
      %v549 = vpack.c.bf16 %v544, %v544
      %551 = vrot.lane.b32.xlu0 %v436, 120
      %v552 = vpop.permute.xlu0 %551
      %553 = vrot.lane.b32.xlu0 %v437, 88
      %v554 = vpop.permute.xlu0 %553
      %v556 = vsel %vm441, %v552, 0
      %v559 = vsel %vm441, %v554, 0
      %561 = vmatprep.subr.bf16.mxu0 0
      %562 = vmatpush1.bf16.xpose.msra.mxu0 0
      %563 = vmatprep.subr.bf16.mxu0 0
      %564 = vmatpush1.bf16.xpose.msra.mxu0 0
      %565 = vmatprep.subr.bf16.mxu0 0
      %566 = vmatpush1.bf16.xpose.msra.mxu0 0
      %567 = vmatprep.subr.bf16.mxu0 0
      %568 = vmatpush1.bf16.xpose.msra.mxu0 0
      %569 = vmatprep.subr.bf16.mxu0 0
      %570 = vmatpush1.bf16.xpose.msra.mxu0 0
      %571 = vmatprep.subr.bf16.mxu0 0
      %572 = vmatpush1.bf16.xpose.msra.mxu0 0
      %573 = vmatprep.subr.bf16.mxu0 0
      %574 = vmatpush1.bf16.xpose.msra.mxu0 0
      %575 = vmatprep.subr.bf16.mxu0 0
      %576 = vmatpush1.bf16.xpose.msra.mxu0 %v559
      %577 = vmatprep.subr.bf16.mxu0 0
      %578 = vmatpush2.bf16.xpose.msra.mxu0 0
      %579 = vmatprep.subr.bf16.mxu0 0
      %580 = vmatpush2.bf16.xpose.msra.mxu0 0
      %581 = vmatprep.subr.bf16.mxu0 0
      %582 = vmatpush2.bf16.xpose.msra.mxu0 0
      %583 = vmatprep.subr.bf16.mxu0 0
      %584 = vmatpush2.bf16.xpose.msra.mxu0 0
      %585 = vmatprep.subr.bf16.mxu0 0
      %586 = vmatpush2.bf16.xpose.msra.mxu0 0
      %587 = vmatprep.subr.bf16.mxu0 0
      %588 = vmatpush2.bf16.xpose.msra.mxu0 0
      %589 = vmatprep.subr.bf16.mxu0 0
      %590 = vmatpush2.bf16.xpose.msra.mxu0 0
      %591 = vmatprep.subr.bf16.mxu0 0
      %592 = vmatpush2.bf16.xpose.msra.mxu0 0
      %593 = vmatprep.mubr.bf16.mxu0 0
      %594 = vmatmul.mubr.bf16.gmra.mxu0 %v556
      %v595 = vpop.f32.mrf.mxu0
      %v596 = vadd.f32 %v431, %v595
      %v597 = vpop.f32.mrf.mxu0
      %v598 = vpop.f32.mrf.mxu0
      %v599 = vpop.f32.mrf.mxu0
      %600 = vdwg.mxu0
      %v601 = vsel %vm441, %v596, -inf
      %602 = vmax.xlane.f32.xlu0 %v601
      %v603 = vpop.xlane.xlu0 %602
      %v604 = vsub.f32 %v596, %v603
      %v605 = vmul.f32 %v604, 1.442695
      %v606 = vpow.pop %v605
      %v607 = vsel %vm441, %v606, 0.0
      %608 = vadd.xlane.f32.xlu0 %v607
      %v609 = vpop.xlane.xlu0 %608
      %v610 = vrcp.pop %v609
      %v611 = vmul.f32 %v606, %v610
      %v612 = vpack.c.bf16 %v611, %v611
      %613 = vrot.lane.b32.xlu0 %v437, 56
      %v614 = vpop.permute.xlu0 %613
      %v616 = vsel %vm441, %v612, 0
      %v619 = vsel %vm505, %v614, 0
      %621 = vmatprep.subr.bf16.mxu0 0
      %622 = vmatpush1.bf16.msra.mxu0 0
      %623 = vmatprep.subr.bf16.mxu0 0
      %624 = vmatpush1.bf16.msra.mxu0 0
      %625 = vmatprep.subr.bf16.mxu0 0
      %626 = vmatpush1.bf16.msra.mxu0 0
      %627 = vmatprep.subr.bf16.mxu0 0
      %628 = vmatpush1.bf16.msra.mxu0 0
      %629 = vmatprep.subr.bf16.mxu0 0
      %630 = vmatpush1.bf16.msra.mxu0 0
      %631 = vmatprep.subr.bf16.mxu0 0
      %632 = vmatpush1.bf16.msra.mxu0 0
      %633 = vmatprep.subr.bf16.mxu0 0
      %634 = vmatpush1.bf16.msra.mxu0 0
      %635 = vmatprep.subr.bf16.mxu0 0
      %636 = vmatpush1.bf16.msra.mxu0 %v619
      %637 = vmatprep.subr.bf16.mxu0 0
      %638 = vmatpush2.bf16.msra.mxu0 0
      %639 = vmatprep.subr.bf16.mxu0 0
      %640 = vmatpush2.bf16.msra.mxu0 0
      %641 = vmatprep.subr.bf16.mxu0 0
      %642 = vmatpush2.bf16.msra.mxu0 0
      %643 = vmatprep.subr.bf16.mxu0 0
      %644 = vmatpush2.bf16.msra.mxu0 0
      %645 = vmatprep.subr.bf16.mxu0 0
      %646 = vmatpush2.bf16.msra.mxu0 0
      %647 = vmatprep.subr.bf16.mxu0 0
      %648 = vmatpush2.bf16.msra.mxu0 0
      %649 = vmatprep.subr.bf16.mxu0 0
      %650 = vmatpush2.bf16.msra.mxu0 0
      %651 = vmatprep.subr.bf16.mxu0 0
      %652 = vmatpush2.bf16.msra.mxu0 0
      %653 = vmatprep.mubr.bf16.mxu0 0
      %654 = vmatmul.mubr.bf16.gmra.mxu0 %v616
      %v655 = vpop.f32.mrf.mxu0
      %v656 = vadd.f32 0.0, %v655
      %v657 = vpop.f32.mrf.mxu0
      %v658 = vpop.f32.mrf.mxu0
      %v659 = vpop.f32.mrf.mxu0
      %660 = vdwg.mxu0
      %v661 = vpack.c.bf16 %v656, %v656
      %v663 = vsel %vm441, %v661, 0
      %v666 = vsel %vm505, %v433, 0
      %668 = vmatprep.subr.bf16.mxu0 0
      %669 = vmatpush1.bf16.msra.mxu0 0
      %670 = vmatprep.subr.bf16.mxu0 0
      %671 = vmatpush1.bf16.msra.mxu0 0
      %672 = vmatprep.subr.bf16.mxu0 0
      %673 = vmatpush1.bf16.msra.mxu0 0
      %674 = vmatprep.subr.bf16.mxu0 0
      %675 = vmatpush1.bf16.msra.mxu0 0
      %676 = vmatprep.subr.bf16.mxu0 0
      %677 = vmatpush1.bf16.msra.mxu0 0
      %678 = vmatprep.subr.bf16.mxu0 0
      %679 = vmatpush1.bf16.msra.mxu0 0
      %680 = vmatprep.subr.bf16.mxu0 0
      %681 = vmatpush1.bf16.msra.mxu0 0
      %682 = vmatprep.subr.bf16.mxu0 0
      %683 = vmatpush1.bf16.msra.mxu0 %v666
      %684 = vmatprep.subr.bf16.mxu0 0
      %685 = vmatpush2.bf16.msra.mxu0 0
      %686 = vmatprep.subr.bf16.mxu0 0
      %687 = vmatpush2.bf16.msra.mxu0 0
      %688 = vmatprep.subr.bf16.mxu0 0
      %689 = vmatpush2.bf16.msra.mxu0 0
      %690 = vmatprep.subr.bf16.mxu0 0
      %691 = vmatpush2.bf16.msra.mxu0 0
      %692 = vmatprep.subr.bf16.mxu0 0
      %693 = vmatpush2.bf16.msra.mxu0 0
      %694 = vmatprep.subr.bf16.mxu0 0
      %695 = vmatpush2.bf16.msra.mxu0 0
      %696 = vmatprep.subr.bf16.mxu0 0
      %697 = vmatpush2.bf16.msra.mxu0 0
      %698 = vmatprep.subr.bf16.mxu0 0
      %699 = vmatpush2.bf16.msra.mxu0 0
      %700 = vmatprep.mubr.bf16.mxu0 0
      %701 = vmatmul.mubr.bf16.gmra.mxu0 %v663
      %v702 = vpop.f32.mrf.mxu0
      %v703 = vadd.f32 0.0, %v702
      %v704 = vpop.f32.mrf.mxu0
      %v705 = vpop.f32.mrf.mxu0
      %v706 = vpop.f32.mrf.mxu0
      %707 = vdwg.mxu0
      %v709 = vsel %vm441, %v549, 0
      %v712 = vsel %vm505, %v432, 0
      %714 = vmatprep.subr.bf16.mxu0 0
      %715 = vmatpush1.bf16.msra.mxu0 0
      %716 = vmatprep.subr.bf16.mxu0 0
      %717 = vmatpush1.bf16.msra.mxu0 0
      %718 = vmatprep.subr.bf16.mxu0 0
      %719 = vmatpush1.bf16.msra.mxu0 0
      %720 = vmatprep.subr.bf16.mxu0 0
      %721 = vmatpush1.bf16.msra.mxu0 0
      %722 = vmatprep.subr.bf16.mxu0 0
      %723 = vmatpush1.bf16.msra.mxu0 0
      %724 = vmatprep.subr.bf16.mxu0 0
      %725 = vmatpush1.bf16.msra.mxu0 0
      %726 = vmatprep.subr.bf16.mxu0 0
      %727 = vmatpush1.bf16.msra.mxu0 0
      %728 = vmatprep.subr.bf16.mxu0 0
      %729 = vmatpush1.bf16.msra.mxu0 %v712
      %730 = vmatprep.subr.bf16.mxu0 0
      %731 = vmatpush2.bf16.msra.mxu0 0
      %732 = vmatprep.subr.bf16.mxu0 0
      %733 = vmatpush2.bf16.msra.mxu0 0
      %734 = vmatprep.subr.bf16.mxu0 0
      %735 = vmatpush2.bf16.msra.mxu0 0
      %736 = vmatprep.subr.bf16.mxu0 0
      %737 = vmatpush2.bf16.msra.mxu0 0
      %738 = vmatprep.subr.bf16.mxu0 0
      %739 = vmatpush2.bf16.msra.mxu0 0
      %740 = vmatprep.subr.bf16.mxu0 0
      %741 = vmatpush2.bf16.msra.mxu0 0
      %742 = vmatprep.subr.bf16.mxu0 0
      %743 = vmatpush2.bf16.msra.mxu0 0
      %744 = vmatprep.subr.bf16.mxu0 0
      %745 = vmatpush2.bf16.msra.mxu0 0
      %746 = vmatprep.mubr.bf16.mxu0 0
      %747 = vmatmul.mubr.bf16.gmra.mxu0 %v709
      %v748 = vpop.f32.mrf.mxu0
      %v749 = vadd.f32 %v703, %v748
      %v750 = vpop.f32.mrf.mxu0
      %v751 = vpop.f32.mrf.mxu0
      %v752 = vpop.f32.mrf.mxu0
      %753 = vdwg.mxu0
      %754 = vrot.lane.b32.xlu0 %v436, 112
      %v755 = vpop.permute.xlu0 %754
      %756 = vrot.lane.b32.xlu0 %v437, 80
      %v757 = vpop.permute.xlu0 %756
      %v759 = vsel %vm441, %v755, 0
      %v762 = vsel %vm441, %v757, 0
      %764 = vmatprep.subr.bf16.mxu0 0
      %765 = vmatpush1.bf16.xpose.msra.mxu0 0
      %766 = vmatprep.subr.bf16.mxu0 0
      %767 = vmatpush1.bf16.xpose.msra.mxu0 0
      %768 = vmatprep.subr.bf16.mxu0 0
      %769 = vmatpush1.bf16.xpose.msra.mxu0 0
      %770 = vmatprep.subr.bf16.mxu0 0
      %771 = vmatpush1.bf16.xpose.msra.mxu0 0
      %772 = vmatprep.subr.bf16.mxu0 0
      %773 = vmatpush1.bf16.xpose.msra.mxu0 0
      %774 = vmatprep.subr.bf16.mxu0 0
      %775 = vmatpush1.bf16.xpose.msra.mxu0 0
      %776 = vmatprep.subr.bf16.mxu0 0
      %777 = vmatpush1.bf16.xpose.msra.mxu0 0
      %778 = vmatprep.subr.bf16.mxu0 0
      %779 = vmatpush1.bf16.xpose.msra.mxu0 %v762
      %780 = vmatprep.subr.bf16.mxu0 0
      %781 = vmatpush2.bf16.xpose.msra.mxu0 0
      %782 = vmatprep.subr.bf16.mxu0 0
      %783 = vmatpush2.bf16.xpose.msra.mxu0 0
      %784 = vmatprep.subr.bf16.mxu0 0
      %785 = vmatpush2.bf16.xpose.msra.mxu0 0
      %786 = vmatprep.subr.bf16.mxu0 0
      %787 = vmatpush2.bf16.xpose.msra.mxu0 0
      %788 = vmatprep.subr.bf16.mxu0 0
      %789 = vmatpush2.bf16.xpose.msra.mxu0 0
      %790 = vmatprep.subr.bf16.mxu0 0
      %791 = vmatpush2.bf16.xpose.msra.mxu0 0
      %792 = vmatprep.subr.bf16.mxu0 0
      %793 = vmatpush2.bf16.xpose.msra.mxu0 0
      %794 = vmatprep.subr.bf16.mxu0 0
      %795 = vmatpush2.bf16.xpose.msra.mxu0 0
      %796 = vmatprep.mubr.bf16.mxu0 0
      %797 = vmatmul.mubr.bf16.gmra.mxu0 %v759
      %v798 = vpop.f32.mrf.mxu0
      %v799 = vadd.f32 %v431, %v798
      %v800 = vpop.f32.mrf.mxu0
      %v801 = vpop.f32.mrf.mxu0
      %v802 = vpop.f32.mrf.mxu0
      %803 = vdwg.mxu0
      %v804 = vsel %vm441, %v799, -inf
      %805 = vmax.xlane.f32.xlu0 %v804
      %v806 = vpop.xlane.xlu0 %805
      %v807 = vsub.f32 %v799, %v806
      %v808 = vmul.f32 %v807, 1.442695
      %v809 = vpow.pop %v808
      %v810 = vsel %vm441, %v809, 0.0
      %811 = vadd.xlane.f32.xlu0 %v810
      %v812 = vpop.xlane.xlu0 %811
      %v813 = vrcp.pop %v812
      %v814 = vmul.f32 %v809, %v813
      %v815 = vpack.c.bf16 %v814, %v814
      %816 = vrot.lane.b32.xlu0 %v437, 48
      %v817 = vpop.permute.xlu0 %816
      %v819 = vsel %vm441, %v815, 0
      %v822 = vsel %vm505, %v817, 0
      %824 = vmatprep.subr.bf16.mxu0 0
      %825 = vmatpush1.bf16.msra.mxu0 0
      %826 = vmatprep.subr.bf16.mxu0 0
      %827 = vmatpush1.bf16.msra.mxu0 0
      %828 = vmatprep.subr.bf16.mxu0 0
      %829 = vmatpush1.bf16.msra.mxu0 0
      %830 = vmatprep.subr.bf16.mxu0 0
      %831 = vmatpush1.bf16.msra.mxu0 0
      %832 = vmatprep.subr.bf16.mxu0 0
      %833 = vmatpush1.bf16.msra.mxu0 0
      %834 = vmatprep.subr.bf16.mxu0 0
      %835 = vmatpush1.bf16.msra.mxu0 0
      %836 = vmatprep.subr.bf16.mxu0 0
      %837 = vmatpush1.bf16.msra.mxu0 0
      %838 = vmatprep.subr.bf16.mxu0 0
      %839 = vmatpush1.bf16.msra.mxu0 %v822
      %840 = vmatprep.subr.bf16.mxu0 0
      %841 = vmatpush2.bf16.msra.mxu0 0
      %842 = vmatprep.subr.bf16.mxu0 0
      %843 = vmatpush2.bf16.msra.mxu0 0
      %844 = vmatprep.subr.bf16.mxu0 0
      %845 = vmatpush2.bf16.msra.mxu0 0
      %846 = vmatprep.subr.bf16.mxu0 0
      %847 = vmatpush2.bf16.msra.mxu0 0
      %848 = vmatprep.subr.bf16.mxu0 0
      %849 = vmatpush2.bf16.msra.mxu0 0
      %850 = vmatprep.subr.bf16.mxu0 0
      %851 = vmatpush2.bf16.msra.mxu0 0
      %852 = vmatprep.subr.bf16.mxu0 0
      %853 = vmatpush2.bf16.msra.mxu0 0
      %854 = vmatprep.subr.bf16.mxu0 0
      %855 = vmatpush2.bf16.msra.mxu0 0
      %856 = vmatprep.mubr.bf16.mxu0 0
      %857 = vmatmul.mubr.bf16.gmra.mxu0 %v819
      %v858 = vpop.f32.mrf.mxu0
      %v859 = vadd.f32 0.0, %v858
      %v860 = vpop.f32.mrf.mxu0
      %v861 = vpop.f32.mrf.mxu0
      %v862 = vpop.f32.mrf.mxu0
      %863 = vdwg.mxu0
      %v864 = vpack.c.bf16 %v859, %v859
      %v866 = vsel %vm441, %v864, 0
      %v869 = vsel %vm505, %v434, 0
      %871 = vmatprep.subr.bf16.mxu0 0
      %872 = vmatpush1.bf16.msra.mxu0 0
      %873 = vmatprep.subr.bf16.mxu0 0
      %874 = vmatpush1.bf16.msra.mxu0 0
      %875 = vmatprep.subr.bf16.mxu0 0
      %876 = vmatpush1.bf16.msra.mxu0 0
      %877 = vmatprep.subr.bf16.mxu0 0
      %878 = vmatpush1.bf16.msra.mxu0 0
      %879 = vmatprep.subr.bf16.mxu0 0
      %880 = vmatpush1.bf16.msra.mxu0 0
      %881 = vmatprep.subr.bf16.mxu0 0
      %882 = vmatpush1.bf16.msra.mxu0 0
      %883 = vmatprep.subr.bf16.mxu0 0
      %884 = vmatpush1.bf16.msra.mxu0 0
      %885 = vmatprep.subr.bf16.mxu0 0
      %886 = vmatpush1.bf16.msra.mxu0 %v869
      %887 = vmatprep.subr.bf16.mxu0 0
      %888 = vmatpush2.bf16.msra.mxu0 0
      %889 = vmatprep.subr.bf16.mxu0 0
      %890 = vmatpush2.bf16.msra.mxu0 0
      %891 = vmatprep.subr.bf16.mxu0 0
      %892 = vmatpush2.bf16.msra.mxu0 0
      %893 = vmatprep.subr.bf16.mxu0 0
      %894 = vmatpush2.bf16.msra.mxu0 0
      %895 = vmatprep.subr.bf16.mxu0 0
      %896 = vmatpush2.bf16.msra.mxu0 0
      %897 = vmatprep.subr.bf16.mxu0 0
      %898 = vmatpush2.bf16.msra.mxu0 0
      %899 = vmatprep.subr.bf16.mxu0 0
      %900 = vmatpush2.bf16.msra.mxu0 0
      %901 = vmatprep.subr.bf16.mxu0 0
      %902 = vmatpush2.bf16.msra.mxu0 0
      %903 = vmatprep.mubr.bf16.mxu0 0
      %904 = vmatmul.mubr.bf16.gmra.mxu0 %v866
      %v905 = vpop.f32.mrf.mxu0
      %v906 = vadd.f32 0.0, %v905
      %v907 = vpop.f32.mrf.mxu0
      %v908 = vpop.f32.mrf.mxu0
      %v909 = vpop.f32.mrf.mxu0
      %910 = vdwg.mxu0
      %v911 = vadd.f32 %v749, %v906
      %912 = vrot.lane.b32.xlu0 %v436, 104
      %v913 = vpop.permute.xlu0 %912
      %914 = vrot.lane.b32.xlu0 %v437, 72
      %v915 = vpop.permute.xlu0 %914
      %v917 = vsel %vm441, %v913, 0
      %v920 = vsel %vm441, %v915, 0
      %922 = vmatprep.subr.bf16.mxu0 0
      %923 = vmatpush1.bf16.xpose.msra.mxu0 0
      %924 = vmatprep.subr.bf16.mxu0 0
      %925 = vmatpush1.bf16.xpose.msra.mxu0 0
      %926 = vmatprep.subr.bf16.mxu0 0
      %927 = vmatpush1.bf16.xpose.msra.mxu0 0
      %928 = vmatprep.subr.bf16.mxu0 0
      %929 = vmatpush1.bf16.xpose.msra.mxu0 0
      %930 = vmatprep.subr.bf16.mxu0 0
      %931 = vmatpush1.bf16.xpose.msra.mxu0 0
      %932 = vmatprep.subr.bf16.mxu0 0
      %933 = vmatpush1.bf16.xpose.msra.mxu0 0
      %934 = vmatprep.subr.bf16.mxu0 0
      %935 = vmatpush1.bf16.xpose.msra.mxu0 0
      %936 = vmatprep.subr.bf16.mxu0 0
      %937 = vmatpush1.bf16.xpose.msra.mxu0 %v920
      %938 = vmatprep.subr.bf16.mxu0 0
      %939 = vmatpush2.bf16.xpose.msra.mxu0 0
      %940 = vmatprep.subr.bf16.mxu0 0
      %941 = vmatpush2.bf16.xpose.msra.mxu0 0
      %942 = vmatprep.subr.bf16.mxu0 0
      %943 = vmatpush2.bf16.xpose.msra.mxu0 0
      %944 = vmatprep.subr.bf16.mxu0 0
      %945 = vmatpush2.bf16.xpose.msra.mxu0 0
      %946 = vmatprep.subr.bf16.mxu0 0
      %947 = vmatpush2.bf16.xpose.msra.mxu0 0
      %948 = vmatprep.subr.bf16.mxu0 0
      %949 = vmatpush2.bf16.xpose.msra.mxu0 0
      %950 = vmatprep.subr.bf16.mxu0 0
      %951 = vmatpush2.bf16.xpose.msra.mxu0 0
      %952 = vmatprep.subr.bf16.mxu0 0
      %953 = vmatpush2.bf16.xpose.msra.mxu0 0
      %954 = vmatprep.mubr.bf16.mxu0 0
      %955 = vmatmul.mubr.bf16.gmra.mxu0 %v917
      %v956 = vpop.f32.mrf.mxu0
      %v957 = vadd.f32 %v431, %v956
      %v958 = vpop.f32.mrf.mxu0
      %v959 = vpop.f32.mrf.mxu0
      %v960 = vpop.f32.mrf.mxu0
      %961 = vdwg.mxu0
      %v962 = vsel %vm441, %v957, -inf
      %963 = vmax.xlane.f32.xlu0 %v962
      %v964 = vpop.xlane.xlu0 %963
      %v965 = vsub.f32 %v957, %v964
      %v966 = vmul.f32 %v965, 1.442695
      %v967 = vpow.pop %v966
      %v968 = vsel %vm441, %v967, 0.0
      %969 = vadd.xlane.f32.xlu0 %v968
      %v970 = vpop.xlane.xlu0 %969
      %v971 = vrcp.pop %v970
      %v972 = vmul.f32 %v967, %v971
      %v973 = vpack.c.bf16 %v972, %v972
      %974 = vrot.lane.b32.xlu0 %v437, 40
      %v975 = vpop.permute.xlu0 %974
      %v977 = vsel %vm441, %v973, 0
      %v980 = vsel %vm505, %v975, 0
      %982 = vmatprep.subr.bf16.mxu0 0
      %983 = vmatpush1.bf16.msra.mxu0 0
      %984 = vmatprep.subr.bf16.mxu0 0
      %985 = vmatpush1.bf16.msra.mxu0 0
      %986 = vmatprep.subr.bf16.mxu0 0
      %987 = vmatpush1.bf16.msra.mxu0 0
      %988 = vmatprep.subr.bf16.mxu0 0
      %989 = vmatpush1.bf16.msra.mxu0 0
      %990 = vmatprep.subr.bf16.mxu0 0
      %991 = vmatpush1.bf16.msra.mxu0 0
      %992 = vmatprep.subr.bf16.mxu0 0
      %993 = vmatpush1.bf16.msra.mxu0 0
      %994 = vmatprep.subr.bf16.mxu0 0
      %995 = vmatpush1.bf16.msra.mxu0 0
      %996 = vmatprep.subr.bf16.mxu0 0
      %997 = vmatpush1.bf16.msra.mxu0 %v980
      %998 = vmatprep.subr.bf16.mxu0 0
      %999 = vmatpush2.bf16.msra.mxu0 0
      %1000 = vmatprep.subr.bf16.mxu0 0
      %1001 = vmatpush2.bf16.msra.mxu0 0
      %1002 = vmatprep.subr.bf16.mxu0 0
      %1003 = vmatpush2.bf16.msra.mxu0 0
      %1004 = vmatprep.subr.bf16.mxu0 0
      %1005 = vmatpush2.bf16.msra.mxu0 0
      %1006 = vmatprep.subr.bf16.mxu0 0
      %1007 = vmatpush2.bf16.msra.mxu0 0
      %1008 = vmatprep.subr.bf16.mxu0 0
      %1009 = vmatpush2.bf16.msra.mxu0 0
      %1010 = vmatprep.subr.bf16.mxu0 0
      %1011 = vmatpush2.bf16.msra.mxu0 0
      %1012 = vmatprep.subr.bf16.mxu0 0
      %1013 = vmatpush2.bf16.msra.mxu0 0
      %1014 = vmatprep.mubr.bf16.mxu0 0
      %1015 = vmatmul.mubr.bf16.gmra.mxu0 %v977
      %v1016 = vpop.f32.mrf.mxu0
      %v1017 = vadd.f32 0.0, %v1016
      %v1018 = vpop.f32.mrf.mxu0
      %v1019 = vpop.f32.mrf.mxu0
      %v1020 = vpop.f32.mrf.mxu0
      %1021 = vdwg.mxu0
      %v1022 = vpack.c.bf16 %v1017, %v1017
      %v1024 = vsel %vm441, %v1022, 0
      %v1027 = vsel %vm505, %v435, 0
      %1029 = vmatprep.subr.bf16.mxu0 0
      %1030 = vmatpush1.bf16.msra.mxu0 0
      %1031 = vmatprep.subr.bf16.mxu0 0
      %1032 = vmatpush1.bf16.msra.mxu0 0
      %1033 = vmatprep.subr.bf16.mxu0 0
      %1034 = vmatpush1.bf16.msra.mxu0 0
      %1035 = vmatprep.subr.bf16.mxu0 0
      %1036 = vmatpush1.bf16.msra.mxu0 0
      %1037 = vmatprep.subr.bf16.mxu0 0
      %1038 = vmatpush1.bf16.msra.mxu0 0
      %1039 = vmatprep.subr.bf16.mxu0 0
      %1040 = vmatpush1.bf16.msra.mxu0 0
      %1041 = vmatprep.subr.bf16.mxu0 0
      %1042 = vmatpush1.bf16.msra.mxu0 0
      %1043 = vmatprep.subr.bf16.mxu0 0
      %1044 = vmatpush1.bf16.msra.mxu0 %v1027
      %1045 = vmatprep.subr.bf16.mxu0 0
      %1046 = vmatpush2.bf16.msra.mxu0 0
      %1047 = vmatprep.subr.bf16.mxu0 0
      %1048 = vmatpush2.bf16.msra.mxu0 0
      %1049 = vmatprep.subr.bf16.mxu0 0
      %1050 = vmatpush2.bf16.msra.mxu0 0
      %1051 = vmatprep.subr.bf16.mxu0 0
      %1052 = vmatpush2.bf16.msra.mxu0 0
      %1053 = vmatprep.subr.bf16.mxu0 0
      %1054 = vmatpush2.bf16.msra.mxu0 0
      %1055 = vmatprep.subr.bf16.mxu0 0
      %1056 = vmatpush2.bf16.msra.mxu0 0
      %1057 = vmatprep.subr.bf16.mxu0 0
      %1058 = vmatpush2.bf16.msra.mxu0 0
      %1059 = vmatprep.subr.bf16.mxu0 0
      %1060 = vmatpush2.bf16.msra.mxu0 0
      %1061 = vmatprep.mubr.bf16.mxu0 0
      %1062 = vmatmul.mubr.bf16.gmra.mxu0 %v1024
      %v1063 = vpop.f32.mrf.mxu0
      %v1064 = vadd.f32 0.0, %v1063
      %v1065 = vpop.f32.mrf.mxu0
      %v1066 = vpop.f32.mrf.mxu0
      %v1067 = vpop.f32.mrf.mxu0
      %1068 = vdwg.mxu0
      %v1069 = vadd.f32 %v911, %v1064
      %v1070 = vadd.f32 %v319, %v1069
      %v1071 = vld [vmem:[%s7] sm:$0x1]
      %v1073 = vlaneseq
      %v1074 = vshrl.u32 %v1073, 7
      %v1075 = vsub.s32 0, %v1074
      %v1076 = vrot.slane %v1071, %v1075
      %v1078 = vadd.f32 %v1070, %v1076
      %1079 = vst.msk [vmem:[%s317] sm:$0xff] %vm322, %v1078
      %p1080 = scmp.lt.s32.totalorder %s19, 1
      %s1081 = scalar_select %p1080, %s19, 1
      %s1082 = smul.addr %s1081, 8
      %s1083 = scalar_lea.vmem %s8, %s1082
      // Predicated region
      $region53: #{decoder_layer.3} parent=51 // pred_check
        %p1084 = pneg %p215
      $region54: #{decoder_layer.3} parent=51 // pred_check_branch
        %1086 = sbr.rel (%p1084) target = $region56
      $region55: #{decoder_layer.3} parent=51 // pred_region
        _
      $region56: #{decoder_layer.3} parent=51 // pred_fallthru
        _
    $region52: #{decoder_layer.3} parent=5 // pred_fallthru
      _
    %p1087 = scmp.le.s32.totalorder 2, %s14
    // Predicated region
    $region57: #{decoder_layer.3} parent=5 // pred_check
      %p1088 = pneg %p1087
    $region58: #{decoder_layer.3} parent=5 // pred_check_branch
      %1090 = sbr.rel (%p1088) target = $region60
    $region59: #{decoder_layer.3} parent=5 // pred_region
      %s1091 = ssub.s32 %s14, 2
      // Predicated region
      $region61: #{decoder_layer.3} parent=59 // pred_check
        %p1092 = pneg %p221
      $region62: #{decoder_layer.3} parent=59 // pred_check_branch
        %1094 = sbr.rel (%p1092) target = $region64
      $region63: #{decoder_layer.3} parent=59 // pred_region
        %p1095 = scmp.lt.s32.totalorder %s20, 1
        %s1096 = scalar_select %p1095, %s20, 1
        %s1097 = smul.addr %s1096, 8
        %s1098 = scalar_lea.vmem %s8, %s1097
      $region64: #{decoder_layer.3} parent=59 // pred_fallthru
        _
    $region60: #{decoder_layer.3} parent=5 // pred_fallthru
      _
  $region6: #{decoder_layer.3} parent=0 // loop_footer
    %s18 = sadd.s32 1, %s14
  $region7: #{decoder_layer.3} parent=0 // loop_footer_branch
    %13 = sbr.rel target = $region3
  $region8: #{decoder_layer.3} parent=0 // loop_exit
    _

</llo_original>
